<compile_context>
chip_gen: v7x
topology: tpu7x:2x2x1
jax: 0.10.0
libtpu: 0.0.40
codegen_flags: <defaults>
</compile_context>

<pallas_src>
import functools
import math

import jax
import jax.numpy as jnp
from jax.experimental import pallas as pl
from jax.experimental.pallas import tpu as pltpu

HIDDEN = 32
HEADS = 2
HEAD_DIM = HIDDEN // HEADS
FFN = 64
LAYERS = 2
VOCAB = 64
MAX_POS = 64
LN_EPS = 1e-5
ATTN_SCALE = 1.0 / math.sqrt(HEAD_DIM)


# --------------------------- in-kernel helpers -------------------------------

def _mm(a, b):
    """MXU matmul: bf16 inputs, f32 accumulate."""
    return jnp.dot(a.astype(jnp.bfloat16), b.astype(jnp.bfloat16),
                   preferred_element_type=jnp.float32)


def _mm_nt(a, b):
    """a @ b.T (contract last dims of both), bf16 in / f32 out."""
    return jax.lax.dot_general(
        a.astype(jnp.bfloat16), b.astype(jnp.bfloat16),
        dimension_numbers=(((1,), (1,)), ((), ())),
        preferred_element_type=jnp.float32)


def _ln(x, g, b):
    """LayerNorm over the last dim, f32 math."""
    mu = jnp.mean(x, axis=-1, keepdims=True)
    var = jnp.mean(jnp.square(x - mu), axis=-1, keepdims=True)
    return (x - mu) * jax.lax.rsqrt(var + LN_EPS) * g + b


# --------------------------- fused Pallas kernel -----------------------------

def _fused_encoder_kernel(x_ref, bias_ref, eg_ref, eb_ref,
                          wq_ref, bq_ref, wk_ref, bk_ref, wv_ref, bv_ref,
                          wo_ref, bo_ref, ln1g_ref, ln1b_ref,
                          w1_ref, b1_ref, w2_ref, b2_ref,
                          ln2g_ref, ln2b_ref, pw_ref, pb_ref,
                          seq_ref, pool_ref):
    """One grid step = one batch element.  Embedding LN + all encoder layers +
    tanh pooler run on VMEM-resident activations."""
    x = _ln(x_ref[0], eg_ref[...], eb_ref[...])          # (S, H) f32
    bias = bias_ref[0]                                   # (1, S) additive mask

    for l in range(LAYERS):                              # static unroll (LAYERS=2)
        attn = jnp.zeros_like(x)
        for h in range(HEADS):                           # static unroll (HEADS=2)
            i = l * HEADS + h
            q = _mm(x, wq_ref[i]) + bq_ref[i]            # (S, Dh)
            k = _mm(x, wk_ref[i]) + bk_ref[i]
            v = _mm(x, wv_ref[i]) + bv_ref[i]
            s = _mm_nt(q, k) * ATTN_SCALE + bias         # (S, S)
            s = s - jnp.max(s, axis=-1, keepdims=True)
            p = jnp.exp(s)
            p = p * pl.reciprocal(jnp.sum(p, axis=-1, keepdims=True),
                                  approx=True)
            ctx = _mm(p, v)                              # (S, Dh)
            # head merge == sum over heads of ctx_h @ Wo_h  (no lane concat)
            attn = attn + _mm(ctx, wo_ref[i])
        attn = attn + bo_ref[l]
        x = _ln(x + attn, ln1g_ref[l], ln1b_ref[l])

        # TODO(synk): HF RoBERTa uses exact erf GELU; tanh approximation here.
        hid = jax.nn.gelu(_mm(x, w1_ref[l]) + b1_ref[l], approximate=True)
        ffn = _mm(hid, w2_ref[l]) + b2_ref[l]
        x = _ln(x + ffn, ln2g_ref[l], ln2b_ref[l])

    seq_ref[0] = x                                       # full sequence output
    cls = x[0:1, :]                                      # <s> token
    pool_ref[0] = jnp.tanh(_mm(cls, pw_ref[...]) + pb_ref[...])


def fused_encoder(x_pre, bias, params):
    """Single pallas_call for the whole encoder stack + pooler."""
    B, S, H = x_pre.shape
    emb, enc = params["emb"], params["enc"]
    weights = (emb["ln_g"], emb["ln_b"],
               enc["wq"], enc["bq"], enc["wk"], enc["bk"], enc["wv"], enc["bv"],
               enc["wo"], enc["bo"], enc["ln1_g"], enc["ln1_b"],
               enc["w1"], enc["b1"], enc["w2"], enc["b2"],
               enc["ln2_g"], enc["ln2_b"], params["pool_w"], params["pool_b"])

    def batch_spec(shape):
        nd = len(shape)
        return pl.BlockSpec((1,) + tuple(shape[1:]),
                            lambda b, _nd=nd: (b,) + (0,) * (_nd - 1))

    def resident_spec(arr):
        nd = arr.ndim
        return pl.BlockSpec(arr.shape, lambda b, _nd=nd: (0,) * _nd)

    seq, pooled = pl.pallas_call(
        _fused_encoder_kernel,
        grid=(B,),
        in_specs=[batch_spec(x_pre.shape), batch_spec(bias.shape)]
                 + [resident_spec(w) for w in weights],
        out_specs=(batch_spec((B, S, H)), batch_spec((B, 1, H))),
        out_shape=(jax.ShapeDtypeStruct((B, S, H), jnp.float32),
                   jax.ShapeDtypeStruct((B, 1, H), jnp.float32)),
        compiler_params=pltpu.CompilerParams(
            dimension_semantics=("parallel",)),
    )(x_pre, bias, *weights)
    return seq, pooled.reshape(B, H)


# --------------------------- model (glue + kernel) ---------------------------

def roberta_ent_forward(params, word, mask, entity_embeddings,
                        entity_position_ids, pos1=None, pos2=None,
                        cat_entity_rep=False):
    B, L = word.shape
    E = entity_embeddings.shape[1]
    emb = params["emb"]

    # word-stream embeddings (roberta position offset of padding_idx+1 = 2)
    we = emb["word"][word]                                   # (B, L, H)
    pe = emb["pos"][jnp.arange(L) + 2][None, :, :]           # (1, L, H)
    tte = emb["type"][0]                                     # (H,)
    word_pre = we + pe + tte

    # entity-stream embeddings (token_type / LayerNorm tied to word stream,
    # as copied in the PyTorch __init__)
    epe = emb["pos"][entity_position_ids + 2]                # (B, E, H)
    ent_pre = entity_embeddings + epe + tte

    # both streams concatenated BEFORE the (in-kernel) embedding LayerNorm
    x_pre = jnp.concatenate([word_pre, ent_pre], axis=1)     # (B, L+E, H)
    mask_full = jnp.concatenate(
        [mask.astype(jnp.float32), jnp.ones((B, E), jnp.float32)], axis=1)
    bias = ((1.0 - mask_full) * (-1e9))[:, None, :]          # (B, 1, L+E)

    seq, pooled = fused_encoder(x_pre, bias, params)
    sequence_output = seq[:, :L]                             # outputs[0]

    if not cat_entity_rep:
        return pooled                                        # outputs[2] ("x")
    rng = jnp.arange(B)
    h_state = sequence_output[rng, pos1]
    t_state = sequence_output[rng, pos2]
    return jnp.concatenate([h_state, t_state], axis=-1)


# --------------------------- parameter init ----------------------------------

def init_params(key):
    def nrm(k, shape, scale=0.02):
        return scale * jax.random.normal(k, shape, jnp.float32)

    keys = iter(jax.random.split(key, 32))
    LH = LAYERS * HEADS
    emb = dict(
        word=nrm(next(keys), (VOCAB, HIDDEN)),
        pos=nrm(next(keys), (MAX_POS, HIDDEN)),
        type=nrm(next(keys), (2, HIDDEN)),
        ln_g=jnp.ones((1, HIDDEN), jnp.float32),
        ln_b=jnp.zeros((1, HIDDEN), jnp.float32),
    )
    enc = dict(
        wq=nrm(next(keys), (LH, HIDDEN, HEAD_DIM)),
        bq=jnp.zeros((LH, 1, HEAD_DIM), jnp.float32),
        wk=nrm(next(keys), (LH, HIDDEN, HEAD_DIM)),
        bk=jnp.zeros((LH, 1, HEAD_DIM), jnp.float32),
        wv=nrm(next(keys), (LH, HIDDEN, HEAD_DIM)),
        bv=jnp.zeros((LH, 1, HEAD_DIM), jnp.float32),
        wo=nrm(next(keys), (LH, HEAD_DIM, HIDDEN)),
        bo=jnp.zeros((LAYERS, 1, HIDDEN), jnp.float32),
        ln1_g=jnp.ones((LAYERS, 1, HIDDEN), jnp.float32),
        ln1_b=jnp.zeros((LAYERS, 1, HIDDEN), jnp.float32),
        w1=nrm(next(keys), (LAYERS, HIDDEN, FFN)),
        b1=jnp.zeros((LAYERS, 1, FFN), jnp.float32),
        w2=nrm(next(keys), (LAYERS, FFN, HIDDEN)),
        b2=jnp.zeros((LAYERS, 1, HIDDEN), jnp.float32),
        ln2_g=jnp.ones((LAYERS, 1, HIDDEN), jnp.float32),
        ln2_b=jnp.zeros((LAYERS, 1, HIDDEN), jnp.float32),
    )
    return dict(emb=emb, enc=enc,
                pool_w=nrm(next(keys), (HIDDEN, HIDDEN)),
                pool_b=jnp.zeros((1, HIDDEN), jnp.float32))


# --------------------------- main --------------------------------------------

if __name__ == "__main__":
    key = jax.random.PRNGKey(0)
    kp, kw, ke = jax.random.split(key, 3)
    params = init_params(kp)

    B, L, E = 2, 8, 2
    word = jax.random.randint(kw, (B, L), 0, VOCAB, dtype=jnp.int32)
    mask = jnp.ones((B, L), jnp.int32).at[1, 6:].set(0)
    entity_embeddings = 0.02 * jax.random.normal(ke, (B, E, HIDDEN), jnp.float32)
    entity_position_ids = jnp.array([[1, 4], [2, 5]], jnp.int32)
    pos1 = jnp.array([1, 2], jnp.int32)
    pos2 = jnp.array([4, 5], jnp.int32)

    fwd_pooled = jax.jit(functools.partial(roberta_ent_forward,
                                           cat_entity_rep=False))
    fwd_state = jax.jit(functools.partial(roberta_ent_forward,
                                          cat_entity_rep=True))

    # cat_entity_rep=False path: pooled output "x"
    pooled = fwd_pooled(params, word, mask, entity_embeddings,
                        entity_position_ids)
    # cat_entity_rep=True path: concat of hidden states at pos1 / pos2
    state = fwd_state(params, word, mask, entity_embeddings,
                      entity_position_ids, pos1, pos2)

    jax.block_until_ready((pooled, state))
    assert pooled.shape == (B, HIDDEN) and pooled.dtype == jnp.float32
    assert state.shape == (B, 2 * HIDDEN) and state.dtype == jnp.float32
    assert bool(jnp.all(jnp.isfinite(pooled))) and bool(jnp.all(jnp.isfinite(state)))
    print("KERNEL_OK")
</pallas_src>

<mosaic_0001>
module attributes {stable_mosaic.version = 11 : i64} {
  func.func @_fused_encoder_kernel(%arg0: i32, %arg1: memref<1x10x32xf32, #tpu.memory_space<vmem>>, %arg2: memref<1x1x10xf32, #tpu.memory_space<vmem>>, %arg3: memref<1x32xf32, #tpu.memory_space<vmem>>, %arg4: memref<1x32xf32, #tpu.memory_space<vmem>>, %arg5: memref<4x32x16xf32, #tpu.memory_space<vmem>>, %arg6: memref<4x1x16xf32, #tpu.memory_space<vmem>>, %arg7: memref<4x32x16xf32, #tpu.memory_space<vmem>>, %arg8: memref<4x1x16xf32, #tpu.memory_space<vmem>>, %arg9: memref<4x32x16xf32, #tpu.memory_space<vmem>>, %arg10: memref<4x1x16xf32, #tpu.memory_space<vmem>>, %arg11: memref<4x16x32xf32, #tpu.memory_space<vmem>>, %arg12: memref<2x1x32xf32, #tpu.memory_space<vmem>>, %arg13: memref<2x1x32xf32, #tpu.memory_space<vmem>>, %arg14: memref<2x1x32xf32, #tpu.memory_space<vmem>>, %arg15: memref<2x32x64xf32, #tpu.memory_space<vmem>>, %arg16: memref<2x1x64xf32, #tpu.memory_space<vmem>>, %arg17: memref<2x64x32xf32, #tpu.memory_space<vmem>>, %arg18: memref<2x1x32xf32, #tpu.memory_space<vmem>>, %arg19: memref<2x1x32xf32, #tpu.memory_space<vmem>>, %arg20: memref<2x1x32xf32, #tpu.memory_space<vmem>>, %arg21: memref<32x32xf32, #tpu.memory_space<vmem>>, %arg22: memref<1x32xf32, #tpu.memory_space<vmem>>, %arg23: memref<1x10x32xf32, #tpu.memory_space<vmem>>, %arg24: memref<1x1x32xf32, #tpu.memory_space<vmem>>) attributes {dimension_semantics = [#tpu.dimension_semantics<parallel>], iteration_bounds = array<i64: 2>, scalar_prefetch = 0 : i64, scratch_operands = 0 : i64, tpu.core_type = #tpu.core_type<tc>, window_params = [{transform_indices = @transform_0, window_bounds = array<i64: 1, 10, 32>}, {transform_indices = @transform_1, window_bounds = array<i64: 1, 1, 10>}, {pipeline_mode = #tpu.pipeline_mode<synchronous>, transform_indices = @transform_2, window_bounds = array<i64: 1, 32>}, {pipeline_mode = #tpu.pipeline_mode<synchronous>, transform_indices = @transform_3, window_bounds = array<i64: 1, 32>}, {pipeline_mode = #tpu.pipeline_mode<synchronous>, transform_indices = @transform_4, window_bounds = array<i64: 4, 32, 16>}, {pipeline_mode = #tpu.pipeline_mode<synchronous>, transform_indices = @transform_5, window_bounds = array<i64: 4, 1, 16>}, {pipeline_mode = #tpu.pipeline_mode<synchronous>, transform_indices = @transform_6, window_bounds = array<i64: 4, 32, 16>}, {pipeline_mode = #tpu.pipeline_mode<synchronous>, transform_indices = @transform_7, window_bounds = array<i64: 4, 1, 16>}, {pipeline_mode = #tpu.pipeline_mode<synchronous>, transform_indices = @transform_8, window_bounds = array<i64: 4, 32, 16>}, {pipeline_mode = #tpu.pipeline_mode<synchronous>, transform_indices = @transform_9, window_bounds = array<i64: 4, 1, 16>}, {pipeline_mode = #tpu.pipeline_mode<synchronous>, transform_indices = @transform_10, window_bounds = array<i64: 4, 16, 32>}, {pipeline_mode = #tpu.pipeline_mode<synchronous>, transform_indices = @transform_11, window_bounds = array<i64: 2, 1, 32>}, {pipeline_mode = #tpu.pipeline_mode<synchronous>, transform_indices = @transform_12, window_bounds = array<i64: 2, 1, 32>}, {pipeline_mode = #tpu.pipeline_mode<synchronous>, transform_indices = @transform_13, window_bounds = array<i64: 2, 1, 32>}, {pipeline_mode = #tpu.pipeline_mode<synchronous>, transform_indices = @transform_14, window_bounds = array<i64: 2, 32, 64>}, {pipeline_mode = #tpu.pipeline_mode<synchronous>, transform_indices = @transform_15, window_bounds = array<i64: 2, 1, 64>}, {pipeline_mode = #tpu.pipeline_mode<synchronous>, transform_indices = @transform_16, window_bounds = array<i64: 2, 64, 32>}, {pipeline_mode = #tpu.pipeline_mode<synchronous>, transform_indices = @transform_17, window_bounds = array<i64: 2, 1, 32>}, {pipeline_mode = #tpu.pipeline_mode<synchronous>, transform_indices = @transform_18, window_bounds = array<i64: 2, 1, 32>}, {pipeline_mode = #tpu.pipeline_mode<synchronous>, transform_indices = @transform_19, window_bounds = array<i64: 2, 1, 32>}, {pipeline_mode = #tpu.pipeline_mode<synchronous>, transform_indices = @transform_20, window_bounds = array<i64: 32, 32>}, {pipeline_mode = #tpu.pipeline_mode<synchronous>, transform_indices = @transform_21, window_bounds = array<i64: 1, 32>}, {transform_indices = @transform_22, window_bounds = array<i64: 1, 10, 32>}, {transform_indices = @transform_23, window_bounds = array<i64: 1, 1, 32>}]} {
    %c0 = arith.constant 0 : index
    %c0_0 = arith.constant 0 : index
    %c0_1 = arith.constant 0 : index
    %0 = vector.load %arg1[%c0, %c0_0, %c0_1] : memref<1x10x32xf32, #tpu.memory_space<vmem>>, vector<1x10x32xf32>
    %1 = vector.shape_cast %0 : vector<1x10x32xf32> to vector<10x32xf32>
    %c0_2 = arith.constant 0 : index
    %c0_3 = arith.constant 0 : index
    %2 = vector.load %arg3[%c0_2, %c0_3] : memref<1x32xf32, #tpu.memory_space<vmem>>, vector<1x32xf32>
    %c0_4 = arith.constant 0 : index
    %c0_5 = arith.constant 0 : index
    %3 = vector.load %arg4[%c0_4, %c0_5] : memref<1x32xf32, #tpu.memory_space<vmem>>, vector<1x32xf32>
    %cst = arith.constant dense<0.000000e+00> : vector<10xf32>
    %4 = vector.multi_reduction <add>, %1, %cst [1] : vector<10x32xf32> to vector<10xf32>
    %5 = vector.shape_cast %4 : vector<10xf32> to vector<10x1xf32>
    %cst_6 = arith.constant 3.200000e+01 : f32
    %6 = vector.broadcast %cst_6 : f32 to vector<10x1xf32>
    %7 = arith.divf %5, %6 : vector<10x1xf32>
    %8 = vector.broadcast %7 : vector<10x1xf32> to vector<10x32xf32>
    %9 = arith.subf %1, %8 : vector<10x32xf32>
    %10 = arith.mulf %9, %9 : vector<10x32xf32>
    %cst_7 = arith.constant dense<0.000000e+00> : vector<10xf32>
    %11 = vector.multi_reduction <add>, %10, %cst_7 [1] : vector<10x32xf32> to vector<10xf32>
    %12 = vector.shape_cast %11 : vector<10xf32> to vector<10x1xf32>
    %cst_8 = arith.constant 3.200000e+01 : f32
    %13 = vector.broadcast %cst_8 : f32 to vector<10x1xf32>
    %14 = arith.divf %12, %13 : vector<10x1xf32>
    %15 = vector.broadcast %7 : vector<10x1xf32> to vector<10x32xf32>
    %16 = arith.subf %1, %15 : vector<10x32xf32>
    %cst_9 = arith.constant 9.99999974E-6 : f32
    %17 = vector.broadcast %cst_9 : f32 to vector<10x1xf32>
    %18 = arith.addf %14, %17 : vector<10x1xf32>
    %19 = math.rsqrt %18 : vector<10x1xf32>
    %20 = vector.broadcast %19 : vector<10x1xf32> to vector<10x32xf32>
    %21 = arith.mulf %16, %20 : vector<10x32xf32>
    %22 = vector.broadcast %2 : vector<1x32xf32> to vector<10x32xf32>
    %23 = arith.mulf %21, %22 : vector<10x32xf32>
    %24 = vector.broadcast %3 : vector<1x32xf32> to vector<10x32xf32>
    %25 = arith.addf %23, %24 : vector<10x32xf32>
    %c0_10 = arith.constant 0 : index
    %c0_11 = arith.constant 0 : index
    %c0_12 = arith.constant 0 : index
    %26 = vector.load %arg2[%c0_10, %c0_11, %c0_12] : memref<1x1x10xf32, #tpu.memory_space<vmem>>, vector<1x1x10xf32>
    %27 = vector.shape_cast %26 : vector<1x1x10xf32> to vector<1x10xf32>
    %cst_13 = arith.constant 0.000000e+00 : f32
    %28 = vector.broadcast %cst_13 : f32 to vector<10x32xf32>
    %c0_14 = arith.constant 0 : index
    %c0_15 = arith.constant 0 : index
    %c0_16 = arith.constant 0 : index
    %29 = vector.load %arg5[%c0_14, %c0_15, %c0_16] : memref<4x32x16xf32, #tpu.memory_space<vmem>>, vector<1x32x16xf32>
    %30 = vector.shape_cast %29 : vector<1x32x16xf32> to vector<32x16xf32>
    %31 = arith.truncf %25 : vector<10x32xf32> to vector<10x32xbf16>
    %32 = arith.truncf %30 : vector<32x16xf32> to vector<32x16xbf16>
    %cst_17 = arith.constant dense<0.000000e+00> : vector<10x16xf32>
    %33 = tpu.matmul %31, %32, %cst_17 {dimension_numbers = #tpu.dot_dimension_numbers<[1], [0], [0], [1], [0, 0, 1, 1], [], []>} : vector<10x32xbf16>, vector<32x16xbf16>, vector<10x16xf32> -> vector<10x16xf32>
    %c0_18 = arith.constant 0 : index
    %c0_19 = arith.constant 0 : index
    %c0_20 = arith.constant 0 : index
    %34 = vector.load %arg6[%c0_18, %c0_19, %c0_20] : memref<4x1x16xf32, #tpu.memory_space<vmem>>, vector<1x1x16xf32>
    %35 = vector.shape_cast %34 : vector<1x1x16xf32> to vector<1x16xf32>
    %36 = vector.broadcast %35 : vector<1x16xf32> to vector<10x16xf32>
    %37 = arith.addf %33, %36 : vector<10x16xf32>
    %c0_21 = arith.constant 0 : index
    %c0_22 = arith.constant 0 : index
    %c0_23 = arith.constant 0 : index
    %38 = vector.load %arg7[%c0_21, %c0_22, %c0_23] : memref<4x32x16xf32, #tpu.memory_space<vmem>>, vector<1x32x16xf32>
    %39 = vector.shape_cast %38 : vector<1x32x16xf32> to vector<32x16xf32>
    %40 = arith.truncf %25 : vector<10x32xf32> to vector<10x32xbf16>
    %41 = arith.truncf %39 : vector<32x16xf32> to vector<32x16xbf16>
    %cst_24 = arith.constant dense<0.000000e+00> : vector<10x16xf32>
    %42 = tpu.matmul %40, %41, %cst_24 {dimension_numbers = #tpu.dot_dimension_numbers<[1], [0], [0], [1], [0, 0, 1, 1], [], []>} : vector<10x32xbf16>, vector<32x16xbf16>, vector<10x16xf32> -> vector<10x16xf32>
    %c0_25 = arith.constant 0 : index
    %c0_26 = arith.constant 0 : index
    %c0_27 = arith.constant 0 : index
    %43 = vector.load %arg8[%c0_25, %c0_26, %c0_27] : memref<4x1x16xf32, #tpu.memory_space<vmem>>, vector<1x1x16xf32>
    %44 = vector.shape_cast %43 : vector<1x1x16xf32> to vector<1x16xf32>
    %45 = vector.broadcast %44 : vector<1x16xf32> to vector<10x16xf32>
    %46 = arith.addf %42, %45 : vector<10x16xf32>
    %c0_28 = arith.constant 0 : index
    %c0_29 = arith.constant 0 : index
    %c0_30 = arith.constant 0 : index
    %47 = vector.load %arg9[%c0_28, %c0_29, %c0_30] : memref<4x32x16xf32, #tpu.memory_space<vmem>>, vector<1x32x16xf32>
    %48 = vector.shape_cast %47 : vector<1x32x16xf32> to vector<32x16xf32>
    %49 = arith.truncf %25 : vector<10x32xf32> to vector<10x32xbf16>
    %50 = arith.truncf %48 : vector<32x16xf32> to vector<32x16xbf16>
    %cst_31 = arith.constant dense<0.000000e+00> : vector<10x16xf32>
    %51 = tpu.matmul %49, %50, %cst_31 {dimension_numbers = #tpu.dot_dimension_numbers<[1], [0], [0], [1], [0, 0, 1, 1], [], []>} : vector<10x32xbf16>, vector<32x16xbf16>, vector<10x16xf32> -> vector<10x16xf32>
    %c0_32 = arith.constant 0 : index
    %c0_33 = arith.constant 0 : index
    %c0_34 = arith.constant 0 : index
    %52 = vector.load %arg10[%c0_32, %c0_33, %c0_34] : memref<4x1x16xf32, #tpu.memory_space<vmem>>, vector<1x1x16xf32>
    %53 = vector.shape_cast %52 : vector<1x1x16xf32> to vector<1x16xf32>
    %54 = vector.broadcast %53 : vector<1x16xf32> to vector<10x16xf32>
    %55 = arith.addf %51, %54 : vector<10x16xf32>
    %56 = arith.truncf %37 : vector<10x16xf32> to vector<10x16xbf16>
    %57 = arith.truncf %46 : vector<10x16xf32> to vector<10x16xbf16>
    %cst_35 = arith.constant dense<0.000000e+00> : vector<10x10xf32>
    %58 = tpu.matmul %56, %57, %cst_35 {dimension_numbers = #tpu.dot_dimension_numbers<[1], [1], [0], [0], [0, 0, 1, 0], [], []>} : vector<10x16xbf16>, vector<10x16xbf16>, vector<10x10xf32> -> vector<10x10xf32>
    %cst_36 = arith.constant 2.500000e-01 : f32
    %59 = vector.broadcast %cst_36 : f32 to vector<10x10xf32>
    %60 = arith.mulf %58, %59 : vector<10x10xf32>
    %61 = vector.broadcast %27 : vector<1x10xf32> to vector<10x10xf32>
    %62 = arith.addf %60, %61 : vector<10x10xf32>
    %cst_37 = arith.constant dense<0xFF800000> : vector<10xf32>
    %63 = vector.multi_reduction <maximumf>, %62, %cst_37 [1] : vector<10x10xf32> to vector<10xf32>
    %64 = vector.shape_cast %63 : vector<10xf32> to vector<10x1xf32>
    %65 = vector.broadcast %64 : vector<10x1xf32> to vector<10x10xf32>
    %66 = arith.subf %62, %65 : vector<10x10xf32>
    %67 = math.exp %66 : vector<10x10xf32>
    %cst_38 = arith.constant dense<0.000000e+00> : vector<10xf32>
    %68 = vector.multi_reduction <add>, %67, %cst_38 [1] : vector<10x10xf32> to vector<10xf32>
    %69 = vector.shape_cast %68 : vector<10xf32> to vector<10x1xf32>
    %70 = tpu.reciprocal %69 {approx = true} : vector<10x1xf32> -> vector<10x1xf32>
    %71 = vector.broadcast %70 : vector<10x1xf32> to vector<10x10xf32>
    %72 = arith.mulf %67, %71 : vector<10x10xf32>
    %73 = arith.truncf %72 : vector<10x10xf32> to vector<10x10xbf16>
    %74 = arith.truncf %55 : vector<10x16xf32> to vector<10x16xbf16>
    %cst_39 = arith.constant dense<0.000000e+00> : vector<10x16xf32>
    %75 = tpu.matmul %73, %74, %cst_39 {dimension_numbers = #tpu.dot_dimension_numbers<[1], [0], [0], [1], [0, 0, 1, 1], [], []>} : vector<10x10xbf16>, vector<10x16xbf16>, vector<10x16xf32> -> vector<10x16xf32>
    %c0_40 = arith.constant 0 : index
    %c0_41 = arith.constant 0 : index
    %c0_42 = arith.constant 0 : index
    %76 = vector.load %arg11[%c0_40, %c0_41, %c0_42] : memref<4x16x32xf32, #tpu.memory_space<vmem>>, vector<1x16x32xf32>
    %77 = vector.shape_cast %76 : vector<1x16x32xf32> to vector<16x32xf32>
    %78 = arith.truncf %75 : vector<10x16xf32> to vector<10x16xbf16>
    %79 = arith.truncf %77 : vector<16x32xf32> to vector<16x32xbf16>
    %cst_43 = arith.constant dense<0.000000e+00> : vector<10x32xf32>
    %80 = tpu.matmul %78, %79, %cst_43 {dimension_numbers = #tpu.dot_dimension_numbers<[1], [0], [0], [1], [0, 0, 1, 1], [], []>} : vector<10x16xbf16>, vector<16x32xbf16>, vector<10x32xf32> -> vector<10x32xf32>
    %81 = arith.addf %28, %80 : vector<10x32xf32>
    %c1 = arith.constant 1 : index
    %c0_44 = arith.constant 0 : index
    %c0_45 = arith.constant 0 : index
    %82 = vector.load %arg5[%c1, %c0_44, %c0_45] : memref<4x32x16xf32, #tpu.memory_space<vmem>>, vector<1x32x16xf32>
    %83 = vector.shape_cast %82 : vector<1x32x16xf32> to vector<32x16xf32>
    %84 = arith.truncf %25 : vector<10x32xf32> to vector<10x32xbf16>
    %85 = arith.truncf %83 : vector<32x16xf32> to vector<32x16xbf16>
    %cst_46 = arith.constant dense<0.000000e+00> : vector<10x16xf32>
    %86 = tpu.matmul %84, %85, %cst_46 {dimension_numbers = #tpu.dot_dimension_numbers<[1], [0], [0], [1], [0, 0, 1, 1], [], []>} : vector<10x32xbf16>, vector<32x16xbf16>, vector<10x16xf32> -> vector<10x16xf32>
    %c1_47 = arith.constant 1 : index
    %c0_48 = arith.constant 0 : index
    %c0_49 = arith.constant 0 : index
    %87 = vector.load %arg6[%c1_47, %c0_48, %c0_49] : memref<4x1x16xf32, #tpu.memory_space<vmem>>, vector<1x1x16xf32>
    %88 = vector.shape_cast %87 : vector<1x1x16xf32> to vector<1x16xf32>
    %89 = vector.broadcast %88 : vector<1x16xf32> to vector<10x16xf32>
    %90 = arith.addf %86, %89 : vector<10x16xf32>
    %c1_50 = arith.constant 1 : index
    %c0_51 = arith.constant 0 : index
    %c0_52 = arith.constant 0 : index
    %91 = vector.load %arg7[%c1_50, %c0_51, %c0_52] : memref<4x32x16xf32, #tpu.memory_space<vmem>>, vector<1x32x16xf32>
    %92 = vector.shape_cast %91 : vector<1x32x16xf32> to vector<32x16xf32>
    %93 = arith.truncf %25 : vector<10x32xf32> to vector<10x32xbf16>
    %94 = arith.truncf %92 : vector<32x16xf32> to vector<32x16xbf16>
    %cst_53 = arith.constant dense<0.000000e+00> : vector<10x16xf32>
    %95 = tpu.matmul %93, %94, %cst_53 {dimension_numbers = #tpu.dot_dimension_numbers<[1], [0], [0], [1], [0, 0, 1, 1], [], []>} : vector<10x32xbf16>, vector<32x16xbf16>, vector<10x16xf32> -> vector<10x16xf32>
    %c1_54 = arith.constant 1 : index
    %c0_55 = arith.constant 0 : index
    %c0_56 = arith.constant 0 : index
    %96 = vector.load %arg8[%c1_54, %c0_55, %c0_56] : memref<4x1x16xf32, #tpu.memory_space<vmem>>, vector<1x1x16xf32>
    %97 = vector.shape_cast %96 : vector<1x1x16xf32> to vector<1x16xf32>
    %98 = vector.broadcast %97 : vector<1x16xf32> to vector<10x16xf32>
    %99 = arith.addf %95, %98 : vector<10x16xf32>
    %c1_57 = arith.constant 1 : index
    %c0_58 = arith.constant 0 : index
    %c0_59 = arith.constant 0 : index
    %100 = vector.load %arg9[%c1_57, %c0_58, %c0_59] : memref<4x32x16xf32, #tpu.memory_space<vmem>>, vector<1x32x16xf32>
    %101 = vector.shape_cast %100 : vector<1x32x16xf32> to vector<32x16xf32>
    %102 = arith.truncf %25 : vector<10x32xf32> to vector<10x32xbf16>
    %103 = arith.truncf %101 : vector<32x16xf32> to vector<32x16xbf16>
    %cst_60 = arith.constant dense<0.000000e+00> : vector<10x16xf32>
    %104 = tpu.matmul %102, %103, %cst_60 {dimension_numbers = #tpu.dot_dimension_numbers<[1], [0], [0], [1], [0, 0, 1, 1], [], []>} : vector<10x32xbf16>, vector<32x16xbf16>, vector<10x16xf32> -> vector<10x16xf32>
    %c1_61 = arith.constant 1 : index
    %c0_62 = arith.constant 0 : index
    %c0_63 = arith.constant 0 : index
    %105 = vector.load %arg10[%c1_61, %c0_62, %c0_63] : memref<4x1x16xf32, #tpu.memory_space<vmem>>, vector<1x1x16xf32>
    %106 = vector.shape_cast %105 : vector<1x1x16xf32> to vector<1x16xf32>
    %107 = vector.broadcast %106 : vector<1x16xf32> to vector<10x16xf32>
    %108 = arith.addf %104, %107 : vector<10x16xf32>
    %109 = arith.truncf %90 : vector<10x16xf32> to vector<10x16xbf16>
    %110 = arith.truncf %99 : vector<10x16xf32> to vector<10x16xbf16>
    %cst_64 = arith.constant dense<0.000000e+00> : vector<10x10xf32>
    %111 = tpu.matmul %109, %110, %cst_64 {dimension_numbers = #tpu.dot_dimension_numbers<[1], [1], [0], [0], [0, 0, 1, 0], [], []>} : vector<10x16xbf16>, vector<10x16xbf16>, vector<10x10xf32> -> vector<10x10xf32>
    %cst_65 = arith.constant 2.500000e-01 : f32
    %112 = vector.broadcast %cst_65 : f32 to vector<10x10xf32>
    %113 = arith.mulf %111, %112 : vector<10x10xf32>
    %114 = vector.broadcast %27 : vector<1x10xf32> to vector<10x10xf32>
    %115 = arith.addf %113, %114 : vector<10x10xf32>
    %cst_66 = arith.constant dense<0xFF800000> : vector<10xf32>
    %116 = vector.multi_reduction <maximumf>, %115, %cst_66 [1] : vector<10x10xf32> to vector<10xf32>
    %117 = vector.shape_cast %116 : vector<10xf32> to vector<10x1xf32>
    %118 = vector.broadcast %117 : vector<10x1xf32> to vector<10x10xf32>
    %119 = arith.subf %115, %118 : vector<10x10xf32>
    %120 = math.exp %119 : vector<10x10xf32>
    %cst_67 = arith.constant dense<0.000000e+00> : vector<10xf32>
    %121 = vector.multi_reduction <add>, %120, %cst_67 [1] : vector<10x10xf32> to vector<10xf32>
    %122 = vector.shape_cast %121 : vector<10xf32> to vector<10x1xf32>
    %123 = tpu.reciprocal %122 {approx = true} : vector<10x1xf32> -> vector<10x1xf32>
    %124 = vector.broadcast %123 : vector<10x1xf32> to vector<10x10xf32>
    %125 = arith.mulf %120, %124 : vector<10x10xf32>
    %126 = arith.truncf %125 : vector<10x10xf32> to vector<10x10xbf16>
    %127 = arith.truncf %108 : vector<10x16xf32> to vector<10x16xbf16>
    %cst_68 = arith.constant dense<0.000000e+00> : vector<10x16xf32>
    %128 = tpu.matmul %126, %127, %cst_68 {dimension_numbers = #tpu.dot_dimension_numbers<[1], [0], [0], [1], [0, 0, 1, 1], [], []>} : vector<10x10xbf16>, vector<10x16xbf16>, vector<10x16xf32> -> vector<10x16xf32>
    %c1_69 = arith.constant 1 : index
    %c0_70 = arith.constant 0 : index
    %c0_71 = arith.constant 0 : index
    %129 = vector.load %arg11[%c1_69, %c0_70, %c0_71] : memref<4x16x32xf32, #tpu.memory_space<vmem>>, vector<1x16x32xf32>
    %130 = vector.shape_cast %129 : vector<1x16x32xf32> to vector<16x32xf32>
    %131 = arith.truncf %128 : vector<10x16xf32> to vector<10x16xbf16>
    %132 = arith.truncf %130 : vector<16x32xf32> to vector<16x32xbf16>
    %cst_72 = arith.constant dense<0.000000e+00> : vector<10x32xf32>
    %133 = tpu.matmul %131, %132, %cst_72 {dimension_numbers = #tpu.dot_dimension_numbers<[1], [0], [0], [1], [0, 0, 1, 1], [], []>} : vector<10x16xbf16>, vector<16x32xbf16>, vector<10x32xf32> -> vector<10x32xf32>
    %134 = arith.addf %81, %133 : vector<10x32xf32>
    %c0_73 = arith.constant 0 : index
    %c0_74 = arith.constant 0 : index
    %c0_75 = arith.constant 0 : index
    %135 = vector.load %arg12[%c0_73, %c0_74, %c0_75] : memref<2x1x32xf32, #tpu.memory_space<vmem>>, vector<1x1x32xf32>
    %136 = vector.shape_cast %135 : vector<1x1x32xf32> to vector<1x32xf32>
    %137 = vector.broadcast %136 : vector<1x32xf32> to vector<10x32xf32>
    %138 = arith.addf %134, %137 : vector<10x32xf32>
    %139 = arith.addf %25, %138 : vector<10x32xf32>
    %c0_76 = arith.constant 0 : index
    %c0_77 = arith.constant 0 : index
    %c0_78 = arith.constant 0 : index
    %140 = vector.load %arg13[%c0_76, %c0_77, %c0_78] : memref<2x1x32xf32, #tpu.memory_space<vmem>>, vector<1x1x32xf32>
    %141 = vector.shape_cast %140 : vector<1x1x32xf32> to vector<1x32xf32>
    %c0_79 = arith.constant 0 : index
    %c0_80 = arith.constant 0 : index
    %c0_81 = arith.constant 0 : index
    %142 = vector.load %arg14[%c0_79, %c0_80, %c0_81] : memref<2x1x32xf32, #tpu.memory_space<vmem>>, vector<1x1x32xf32>
    %143 = vector.shape_cast %142 : vector<1x1x32xf32> to vector<1x32xf32>
    %cst_82 = arith.constant dense<0.000000e+00> : vector<10xf32>
    %144 = vector.multi_reduction <add>, %139, %cst_82 [1] : vector<10x32xf32> to vector<10xf32>
    %145 = vector.shape_cast %144 : vector<10xf32> to vector<10x1xf32>
    %cst_83 = arith.constant 3.200000e+01 : f32
    %146 = vector.broadcast %cst_83 : f32 to vector<10x1xf32>
    %147 = arith.divf %145, %146 : vector<10x1xf32>
    %148 = vector.broadcast %147 : vector<10x1xf32> to vector<10x32xf32>
    %149 = arith.subf %139, %148 : vector<10x32xf32>
    %150 = arith.mulf %149, %149 : vector<10x32xf32>
    %cst_84 = arith.constant dense<0.000000e+00> : vector<10xf32>
    %151 = vector.multi_reduction <add>, %150, %cst_84 [1] : vector<10x32xf32> to vector<10xf32>
    %152 = vector.shape_cast %151 : vector<10xf32> to vector<10x1xf32>
    %cst_85 = arith.constant 3.200000e+01 : f32
    %153 = vector.broadcast %cst_85 : f32 to vector<10x1xf32>
    %154 = arith.divf %152, %153 : vector<10x1xf32>
    %155 = vector.broadcast %147 : vector<10x1xf32> to vector<10x32xf32>
    %156 = arith.subf %139, %155 : vector<10x32xf32>
    %cst_86 = arith.constant 9.99999974E-6 : f32
    %157 = vector.broadcast %cst_86 : f32 to vector<10x1xf32>
    %158 = arith.addf %154, %157 : vector<10x1xf32>
    %159 = math.rsqrt %158 : vector<10x1xf32>
    %160 = vector.broadcast %159 : vector<10x1xf32> to vector<10x32xf32>
    %161 = arith.mulf %156, %160 : vector<10x32xf32>
    %162 = vector.broadcast %141 : vector<1x32xf32> to vector<10x32xf32>
    %163 = arith.mulf %161, %162 : vector<10x32xf32>
    %164 = vector.broadcast %143 : vector<1x32xf32> to vector<10x32xf32>
    %165 = arith.addf %163, %164 : vector<10x32xf32>
    %c0_87 = arith.constant 0 : index
    %c0_88 = arith.constant 0 : index
    %c0_89 = arith.constant 0 : index
    %166 = vector.load %arg15[%c0_87, %c0_88, %c0_89] : memref<2x32x64xf32, #tpu.memory_space<vmem>>, vector<1x32x64xf32>
    %167 = vector.shape_cast %166 : vector<1x32x64xf32> to vector<32x64xf32>
    %168 = arith.truncf %165 : vector<10x32xf32> to vector<10x32xbf16>
    %169 = arith.truncf %167 : vector<32x64xf32> to vector<32x64xbf16>
    %cst_90 = arith.constant dense<0.000000e+00> : vector<10x64xf32>
    %170 = tpu.matmul %168, %169, %cst_90 {dimension_numbers = #tpu.dot_dimension_numbers<[1], [0], [0], [1], [0, 0, 1, 1], [], []>} : vector<10x32xbf16>, vector<32x64xbf16>, vector<10x64xf32> -> vector<10x64xf32>
    %c0_91 = arith.constant 0 : index
    %c0_92 = arith.constant 0 : index
    %c0_93 = arith.constant 0 : index
    %171 = vector.load %arg16[%c0_91, %c0_92, %c0_93] : memref<2x1x64xf32, #tpu.memory_space<vmem>>, vector<1x1x64xf32>
    %172 = vector.shape_cast %171 : vector<1x1x64xf32> to vector<1x64xf32>
    %173 = vector.broadcast %172 : vector<1x64xf32> to vector<10x64xf32>
    %174 = arith.addf %170, %173 : vector<10x64xf32>
    %175 = arith.mulf %174, %174 : vector<10x64xf32>
    %176 = arith.mulf %174, %175 : vector<10x64xf32>
    %cst_94 = arith.constant 4.471500e-02 : f32
    %177 = vector.broadcast %cst_94 : f32 to vector<10x64xf32>
    %178 = arith.mulf %177, %176 : vector<10x64xf32>
    %179 = arith.addf %174, %178 : vector<10x64xf32>
    %cst_95 = arith.constant 0.797884583 : f32
    %180 = vector.broadcast %cst_95 : f32 to vector<10x64xf32>
    %181 = arith.mulf %180, %179 : vector<10x64xf32>
    %182 = math.tanh %181 : vector<10x64xf32>
    %cst_96 = arith.constant 1.000000e+00 : f32
    %183 = vector.broadcast %cst_96 : f32 to vector<10x64xf32>
    %184 = arith.addf %183, %182 : vector<10x64xf32>
    %cst_97 = arith.constant 5.000000e-01 : f32
    %185 = vector.broadcast %cst_97 : f32 to vector<10x64xf32>
    %186 = arith.mulf %185, %184 : vector<10x64xf32>
    %187 = arith.mulf %174, %186 : vector<10x64xf32>
    %c0_98 = arith.constant 0 : index
    %c0_99 = arith.constant 0 : index
    %c0_100 = arith.constant 0 : index
    %188 = vector.load %arg17[%c0_98, %c0_99, %c0_100] : memref<2x64x32xf32, #tpu.memory_space<vmem>>, vector<1x64x32xf32>
    %189 = vector.shape_cast %188 : vector<1x64x32xf32> to vector<64x32xf32>
    %190 = arith.truncf %187 : vector<10x64xf32> to vector<10x64xbf16>
    %191 = arith.truncf %189 : vector<64x32xf32> to vector<64x32xbf16>
    %cst_101 = arith.constant dense<0.000000e+00> : vector<10x32xf32>
    %192 = tpu.matmul %190, %191, %cst_101 {dimension_numbers = #tpu.dot_dimension_numbers<[1], [0], [0], [1], [0, 0, 1, 1], [], []>} : vector<10x64xbf16>, vector<64x32xbf16>, vector<10x32xf32> -> vector<10x32xf32>
    %c0_102 = arith.constant 0 : index
    %c0_103 = arith.constant 0 : index
    %c0_104 = arith.constant 0 : index
    %193 = vector.load %arg18[%c0_102, %c0_103, %c0_104] : memref<2x1x32xf32, #tpu.memory_space<vmem>>, vector<1x1x32xf32>
    %194 = vector.shape_cast %193 : vector<1x1x32xf32> to vector<1x32xf32>
    %195 = vector.broadcast %194 : vector<1x32xf32> to vector<10x32xf32>
    %196 = arith.addf %192, %195 : vector<10x32xf32>
    %197 = arith.addf %165, %196 : vector<10x32xf32>
    %c0_105 = arith.constant 0 : index
    %c0_106 = arith.constant 0 : index
    %c0_107 = arith.constant 0 : index
    %198 = vector.load %arg19[%c0_105, %c0_106, %c0_107] : memref<2x1x32xf32, #tpu.memory_space<vmem>>, vector<1x1x32xf32>
    %199 = vector.shape_cast %198 : vector<1x1x32xf32> to vector<1x32xf32>
    %c0_108 = arith.constant 0 : index
    %c0_109 = arith.constant 0 : index
    %c0_110 = arith.constant 0 : index
    %200 = vector.load %arg20[%c0_108, %c0_109, %c0_110] : memref<2x1x32xf32, #tpu.memory_space<vmem>>, vector<1x1x32xf32>
    %201 = vector.shape_cast %200 : vector<1x1x32xf32> to vector<1x32xf32>
    %cst_111 = arith.constant dense<0.000000e+00> : vector<10xf32>
    %202 = vector.multi_reduction <add>, %197, %cst_111 [1] : vector<10x32xf32> to vector<10xf32>
    %203 = vector.shape_cast %202 : vector<10xf32> to vector<10x1xf32>
    %cst_112 = arith.constant 3.200000e+01 : f32
    %204 = vector.broadcast %cst_112 : f32 to vector<10x1xf32>
    %205 = arith.divf %203, %204 : vector<10x1xf32>
    %206 = vector.broadcast %205 : vector<10x1xf32> to vector<10x32xf32>
    %207 = arith.subf %197, %206 : vector<10x32xf32>
    %208 = arith.mulf %207, %207 : vector<10x32xf32>
    %cst_113 = arith.constant dense<0.000000e+00> : vector<10xf32>
    %209 = vector.multi_reduction <add>, %208, %cst_113 [1] : vector<10x32xf32> to vector<10xf32>
    %210 = vector.shape_cast %209 : vector<10xf32> to vector<10x1xf32>
    %cst_114 = arith.constant 3.200000e+01 : f32
    %211 = vector.broadcast %cst_114 : f32 to vector<10x1xf32>
    %212 = arith.divf %210, %211 : vector<10x1xf32>
    %213 = vector.broadcast %205 : vector<10x1xf32> to vector<10x32xf32>
    %214 = arith.subf %197, %213 : vector<10x32xf32>
    %cst_115 = arith.constant 9.99999974E-6 : f32
    %215 = vector.broadcast %cst_115 : f32 to vector<10x1xf32>
    %216 = arith.addf %212, %215 : vector<10x1xf32>
    %217 = math.rsqrt %216 : vector<10x1xf32>
    %218 = vector.broadcast %217 : vector<10x1xf32> to vector<10x32xf32>
    %219 = arith.mulf %214, %218 : vector<10x32xf32>
    %220 = vector.broadcast %199 : vector<1x32xf32> to vector<10x32xf32>
    %221 = arith.mulf %219, %220 : vector<10x32xf32>
    %222 = vector.broadcast %201 : vector<1x32xf32> to vector<10x32xf32>
    %223 = arith.addf %221, %222 : vector<10x32xf32>
    %cst_116 = arith.constant 0.000000e+00 : f32
    %224 = vector.broadcast %cst_116 : f32 to vector<10x32xf32>
    %c2 = arith.constant 2 : index
    %c0_117 = arith.constant 0 : index
    %c0_118 = arith.constant 0 : index
    %225 = vector.load %arg5[%c2, %c0_117, %c0_118] : memref<4x32x16xf32, #tpu.memory_space<vmem>>, vector<1x32x16xf32>
    %226 = vector.shape_cast %225 : vector<1x32x16xf32> to vector<32x16xf32>
    %227 = arith.truncf %223 : vector<10x32xf32> to vector<10x32xbf16>
    %228 = arith.truncf %226 : vector<32x16xf32> to vector<32x16xbf16>
    %cst_119 = arith.constant dense<0.000000e+00> : vector<10x16xf32>
    %229 = tpu.matmul %227, %228, %cst_119 {dimension_numbers = #tpu.dot_dimension_numbers<[1], [0], [0], [1], [0, 0, 1, 1], [], []>} : vector<10x32xbf16>, vector<32x16xbf16>, vector<10x16xf32> -> vector<10x16xf32>
    %c2_120 = arith.constant 2 : index
    %c0_121 = arith.constant 0 : index
    %c0_122 = arith.constant 0 : index
    %230 = vector.load %arg6[%c2_120, %c0_121, %c0_122] : memref<4x1x16xf32, #tpu.memory_space<vmem>>, vector<1x1x16xf32>
    %231 = vector.shape_cast %230 : vector<1x1x16xf32> to vector<1x16xf32>
    %232 = vector.broadcast %231 : vector<1x16xf32> to vector<10x16xf32>
    %233 = arith.addf %229, %232 : vector<10x16xf32>
    %c2_123 = arith.constant 2 : index
    %c0_124 = arith.constant 0 : index
    %c0_125 = arith.constant 0 : index
    %234 = vector.load %arg7[%c2_123, %c0_124, %c0_125] : memref<4x32x16xf32, #tpu.memory_space<vmem>>, vector<1x32x16xf32>
    %235 = vector.shape_cast %234 : vector<1x32x16xf32> to vector<32x16xf32>
    %236 = arith.truncf %223 : vector<10x32xf32> to vector<10x32xbf16>
    %237 = arith.truncf %235 : vector<32x16xf32> to vector<32x16xbf16>
    %cst_126 = arith.constant dense<0.000000e+00> : vector<10x16xf32>
    %238 = tpu.matmul %236, %237, %cst_126 {dimension_numbers = #tpu.dot_dimension_numbers<[1], [0], [0], [1], [0, 0, 1, 1], [], []>} : vector<10x32xbf16>, vector<32x16xbf16>, vector<10x16xf32> -> vector<10x16xf32>
    %c2_127 = arith.constant 2 : index
    %c0_128 = arith.constant 0 : index
    %c0_129 = arith.constant 0 : index
    %239 = vector.load %arg8[%c2_127, %c0_128, %c0_129] : memref<4x1x16xf32, #tpu.memory_space<vmem>>, vector<1x1x16xf32>
    %240 = vector.shape_cast %239 : vector<1x1x16xf32> to vector<1x16xf32>
    %241 = vector.broadcast %240 : vector<1x16xf32> to vector<10x16xf32>
    %242 = arith.addf %238, %241 : vector<10x16xf32>
    %c2_130 = arith.constant 2 : index
    %c0_131 = arith.constant 0 : index
    %c0_132 = arith.constant 0 : index
    %243 = vector.load %arg9[%c2_130, %c0_131, %c0_132] : memref<4x32x16xf32, #tpu.memory_space<vmem>>, vector<1x32x16xf32>
    %244 = vector.shape_cast %243 : vector<1x32x16xf32> to vector<32x16xf32>
    %245 = arith.truncf %223 : vector<10x32xf32> to vector<10x32xbf16>
    %246 = arith.truncf %244 : vector<32x16xf32> to vector<32x16xbf16>
    %cst_133 = arith.constant dense<0.000000e+00> : vector<10x16xf32>
    %247 = tpu.matmul %245, %246, %cst_133 {dimension_numbers = #tpu.dot_dimension_numbers<[1], [0], [0], [1], [0, 0, 1, 1], [], []>} : vector<10x32xbf16>, vector<32x16xbf16>, vector<10x16xf32> -> vector<10x16xf32>
    %c2_134 = arith.constant 2 : index
    %c0_135 = arith.constant 0 : index
    %c0_136 = arith.constant 0 : index
    %248 = vector.load %arg10[%c2_134, %c0_135, %c0_136] : memref<4x1x16xf32, #tpu.memory_space<vmem>>, vector<1x1x16xf32>
    %249 = vector.shape_cast %248 : vector<1x1x16xf32> to vector<1x16xf32>
    %250 = vector.broadcast %249 : vector<1x16xf32> to vector<10x16xf32>
    %251 = arith.addf %247, %250 : vector<10x16xf32>
    %252 = arith.truncf %233 : vector<10x16xf32> to vector<10x16xbf16>
    %253 = arith.truncf %242 : vector<10x16xf32> to vector<10x16xbf16>
    %cst_137 = arith.constant dense<0.000000e+00> : vector<10x10xf32>
    %254 = tpu.matmul %252, %253, %cst_137 {dimension_numbers = #tpu.dot_dimension_numbers<[1], [1], [0], [0], [0, 0, 1, 0], [], []>} : vector<10x16xbf16>, vector<10x16xbf16>, vector<10x10xf32> -> vector<10x10xf32>
    %cst_138 = arith.constant 2.500000e-01 : f32
    %255 = vector.broadcast %cst_138 : f32 to vector<10x10xf32>
    %256 = arith.mulf %254, %255 : vector<10x10xf32>
    %257 = vector.broadcast %27 : vector<1x10xf32> to vector<10x10xf32>
    %258 = arith.addf %256, %257 : vector<10x10xf32>
    %cst_139 = arith.constant dense<0xFF800000> : vector<10xf32>
    %259 = vector.multi_reduction <maximumf>, %258, %cst_139 [1] : vector<10x10xf32> to vector<10xf32>
    %260 = vector.shape_cast %259 : vector<10xf32> to vector<10x1xf32>
    %261 = vector.broadcast %260 : vector<10x1xf32> to vector<10x10xf32>
    %262 = arith.subf %258, %261 : vector<10x10xf32>
    %263 = math.exp %262 : vector<10x10xf32>
    %cst_140 = arith.constant dense<0.000000e+00> : vector<10xf32>
    %264 = vector.multi_reduction <add>, %263, %cst_140 [1] : vector<10x10xf32> to vector<10xf32>
    %265 = vector.shape_cast %264 : vector<10xf32> to vector<10x1xf32>
    %266 = tpu.reciprocal %265 {approx = true} : vector<10x1xf32> -> vector<10x1xf32>
    %267 = vector.broadcast %266 : vector<10x1xf32> to vector<10x10xf32>
    %268 = arith.mulf %263, %267 : vector<10x10xf32>
    %269 = arith.truncf %268 : vector<10x10xf32> to vector<10x10xbf16>
    %270 = arith.truncf %251 : vector<10x16xf32> to vector<10x16xbf16>
    %cst_141 = arith.constant dense<0.000000e+00> : vector<10x16xf32>
    %271 = tpu.matmul %269, %270, %cst_141 {dimension_numbers = #tpu.dot_dimension_numbers<[1], [0], [0], [1], [0, 0, 1, 1], [], []>} : vector<10x10xbf16>, vector<10x16xbf16>, vector<10x16xf32> -> vector<10x16xf32>
    %c2_142 = arith.constant 2 : index
    %c0_143 = arith.constant 0 : index
    %c0_144 = arith.constant 0 : index
    %272 = vector.load %arg11[%c2_142, %c0_143, %c0_144] : memref<4x16x32xf32, #tpu.memory_space<vmem>>, vector<1x16x32xf32>
    %273 = vector.shape_cast %272 : vector<1x16x32xf32> to vector<16x32xf32>
    %274 = arith.truncf %271 : vector<10x16xf32> to vector<10x16xbf16>
    %275 = arith.truncf %273 : vector<16x32xf32> to vector<16x32xbf16>
    %cst_145 = arith.constant dense<0.000000e+00> : vector<10x32xf32>
    %276 = tpu.matmul %274, %275, %cst_145 {dimension_numbers = #tpu.dot_dimension_numbers<[1], [0], [0], [1], [0, 0, 1, 1], [], []>} : vector<10x16xbf16>, vector<16x32xbf16>, vector<10x32xf32> -> vector<10x32xf32>
    %277 = arith.addf %224, %276 : vector<10x32xf32>
    %c3 = arith.constant 3 : index
    %c0_146 = arith.constant 0 : index
    %c0_147 = arith.constant 0 : index
    %278 = vector.load %arg5[%c3, %c0_146, %c0_147] : memref<4x32x16xf32, #tpu.memory_space<vmem>>, vector<1x32x16xf32>
    %279 = vector.shape_cast %278 : vector<1x32x16xf32> to vector<32x16xf32>
    %280 = arith.truncf %223 : vector<10x32xf32> to vector<10x32xbf16>
    %281 = arith.truncf %279 : vector<32x16xf32> to vector<32x16xbf16>
    %cst_148 = arith.constant dense<0.000000e+00> : vector<10x16xf32>
    %282 = tpu.matmul %280, %281, %cst_148 {dimension_numbers = #tpu.dot_dimension_numbers<[1], [0], [0], [1], [0, 0, 1, 1], [], []>} : vector<10x32xbf16>, vector<32x16xbf16>, vector<10x16xf32> -> vector<10x16xf32>
    %c3_149 = arith.constant 3 : index
    %c0_150 = arith.constant 0 : index
    %c0_151 = arith.constant 0 : index
    %283 = vector.load %arg6[%c3_149, %c0_150, %c0_151] : memref<4x1x16xf32, #tpu.memory_space<vmem>>, vector<1x1x16xf32>
    %284 = vector.shape_cast %283 : vector<1x1x16xf32> to vector<1x16xf32>
    %285 = vector.broadcast %284 : vector<1x16xf32> to vector<10x16xf32>
    %286 = arith.addf %282, %285 : vector<10x16xf32>
    %c3_152 = arith.constant 3 : index
    %c0_153 = arith.constant 0 : index
    %c0_154 = arith.constant 0 : index
    %287 = vector.load %arg7[%c3_152, %c0_153, %c0_154] : memref<4x32x16xf32, #tpu.memory_space<vmem>>, vector<1x32x16xf32>
    %288 = vector.shape_cast %287 : vector<1x32x16xf32> to vector<32x16xf32>
    %289 = arith.truncf %223 : vector<10x32xf32> to vector<10x32xbf16>
    %290 = arith.truncf %288 : vector<32x16xf32> to vector<32x16xbf16>
    %cst_155 = arith.constant dense<0.000000e+00> : vector<10x16xf32>
    %291 = tpu.matmul %289, %290, %cst_155 {dimension_numbers = #tpu.dot_dimension_numbers<[1], [0], [0], [1], [0, 0, 1, 1], [], []>} : vector<10x32xbf16>, vector<32x16xbf16>, vector<10x16xf32> -> vector<10x16xf32>
    %c3_156 = arith.constant 3 : index
    %c0_157 = arith.constant 0 : index
    %c0_158 = arith.constant 0 : index
    %292 = vector.load %arg8[%c3_156, %c0_157, %c0_158] : memref<4x1x16xf32, #tpu.memory_space<vmem>>, vector<1x1x16xf32>
    %293 = vector.shape_cast %292 : vector<1x1x16xf32> to vector<1x16xf32>
    %294 = vector.broadcast %293 : vector<1x16xf32> to vector<10x16xf32>
    %295 = arith.addf %291, %294 : vector<10x16xf32>
    %c3_159 = arith.constant 3 : index
    %c0_160 = arith.constant 0 : index
    %c0_161 = arith.constant 0 : index
    %296 = vector.load %arg9[%c3_159, %c0_160, %c0_161] : memref<4x32x16xf32, #tpu.memory_space<vmem>>, vector<1x32x16xf32>
    %297 = vector.shape_cast %296 : vector<1x32x16xf32> to vector<32x16xf32>
    %298 = arith.truncf %223 : vector<10x32xf32> to vector<10x32xbf16>
    %299 = arith.truncf %297 : vector<32x16xf32> to vector<32x16xbf16>
    %cst_162 = arith.constant dense<0.000000e+00> : vector<10x16xf32>
    %300 = tpu.matmul %298, %299, %cst_162 {dimension_numbers = #tpu.dot_dimension_numbers<[1], [0], [0], [1], [0, 0, 1, 1], [], []>} : vector<10x32xbf16>, vector<32x16xbf16>, vector<10x16xf32> -> vector<10x16xf32>
    %c3_163 = arith.constant 3 : index
    %c0_164 = arith.constant 0 : index
    %c0_165 = arith.constant 0 : index
    %301 = vector.load %arg10[%c3_163, %c0_164, %c0_165] : memref<4x1x16xf32, #tpu.memory_space<vmem>>, vector<1x1x16xf32>
    %302 = vector.shape_cast %301 : vector<1x1x16xf32> to vector<1x16xf32>
    %303 = vector.broadcast %302 : vector<1x16xf32> to vector<10x16xf32>
    %304 = arith.addf %300, %303 : vector<10x16xf32>
    %305 = arith.truncf %286 : vector<10x16xf32> to vector<10x16xbf16>
    %306 = arith.truncf %295 : vector<10x16xf32> to vector<10x16xbf16>
    %cst_166 = arith.constant dense<0.000000e+00> : vector<10x10xf32>
    %307 = tpu.matmul %305, %306, %cst_166 {dimension_numbers = #tpu.dot_dimension_numbers<[1], [1], [0], [0], [0, 0, 1, 0], [], []>} : vector<10x16xbf16>, vector<10x16xbf16>, vector<10x10xf32> -> vector<10x10xf32>
    %cst_167 = arith.constant 2.500000e-01 : f32
    %308 = vector.broadcast %cst_167 : f32 to vector<10x10xf32>
    %309 = arith.mulf %307, %308 : vector<10x10xf32>
    %310 = vector.broadcast %27 : vector<1x10xf32> to vector<10x10xf32>
    %311 = arith.addf %309, %310 : vector<10x10xf32>
    %cst_168 = arith.constant dense<0xFF800000> : vector<10xf32>
    %312 = vector.multi_reduction <maximumf>, %311, %cst_168 [1] : vector<10x10xf32> to vector<10xf32>
    %313 = vector.shape_cast %312 : vector<10xf32> to vector<10x1xf32>
    %314 = vector.broadcast %313 : vector<10x1xf32> to vector<10x10xf32>
    %315 = arith.subf %311, %314 : vector<10x10xf32>
    %316 = math.exp %315 : vector<10x10xf32>
    %cst_169 = arith.constant dense<0.000000e+00> : vector<10xf32>
    %317 = vector.multi_reduction <add>, %316, %cst_169 [1] : vector<10x10xf32> to vector<10xf32>
    %318 = vector.shape_cast %317 : vector<10xf32> to vector<10x1xf32>
    %319 = tpu.reciprocal %318 {approx = true} : vector<10x1xf32> -> vector<10x1xf32>
    %320 = vector.broadcast %319 : vector<10x1xf32> to vector<10x10xf32>
    %321 = arith.mulf %316, %320 : vector<10x10xf32>
    %322 = arith.truncf %321 : vector<10x10xf32> to vector<10x10xbf16>
    %323 = arith.truncf %304 : vector<10x16xf32> to vector<10x16xbf16>
    %cst_170 = arith.constant dense<0.000000e+00> : vector<10x16xf32>
    %324 = tpu.matmul %322, %323, %cst_170 {dimension_numbers = #tpu.dot_dimension_numbers<[1], [0], [0], [1], [0, 0, 1, 1], [], []>} : vector<10x10xbf16>, vector<10x16xbf16>, vector<10x16xf32> -> vector<10x16xf32>
    %c3_171 = arith.constant 3 : index
    %c0_172 = arith.constant 0 : index
    %c0_173 = arith.constant 0 : index
    %325 = vector.load %arg11[%c3_171, %c0_172, %c0_173] : memref<4x16x32xf32, #tpu.memory_space<vmem>>, vector<1x16x32xf32>
    %326 = vector.shape_cast %325 : vector<1x16x32xf32> to vector<16x32xf32>
    %327 = arith.truncf %324 : vector<10x16xf32> to vector<10x16xbf16>
    %328 = arith.truncf %326 : vector<16x32xf32> to vector<16x32xbf16>
    %cst_174 = arith.constant dense<0.000000e+00> : vector<10x32xf32>
    %329 = tpu.matmul %327, %328, %cst_174 {dimension_numbers = #tpu.dot_dimension_numbers<[1], [0], [0], [1], [0, 0, 1, 1], [], []>} : vector<10x16xbf16>, vector<16x32xbf16>, vector<10x32xf32> -> vector<10x32xf32>
    %330 = arith.addf %277, %329 : vector<10x32xf32>
    %c1_175 = arith.constant 1 : index
    %c0_176 = arith.constant 0 : index
    %c0_177 = arith.constant 0 : index
    %331 = vector.load %arg12[%c1_175, %c0_176, %c0_177] : memref<2x1x32xf32, #tpu.memory_space<vmem>>, vector<1x1x32xf32>
    %332 = vector.shape_cast %331 : vector<1x1x32xf32> to vector<1x32xf32>
    %333 = vector.broadcast %332 : vector<1x32xf32> to vector<10x32xf32>
    %334 = arith.addf %330, %333 : vector<10x32xf32>
    %335 = arith.addf %223, %334 : vector<10x32xf32>
    %c1_178 = arith.constant 1 : index
    %c0_179 = arith.constant 0 : index
    %c0_180 = arith.constant 0 : index
    %336 = vector.load %arg13[%c1_178, %c0_179, %c0_180] : memref<2x1x32xf32, #tpu.memory_space<vmem>>, vector<1x1x32xf32>
    %337 = vector.shape_cast %336 : vector<1x1x32xf32> to vector<1x32xf32>
    %c1_181 = arith.constant 1 : index
    %c0_182 = arith.constant 0 : index
    %c0_183 = arith.constant 0 : index
    %338 = vector.load %arg14[%c1_181, %c0_182, %c0_183] : memref<2x1x32xf32, #tpu.memory_space<vmem>>, vector<1x1x32xf32>
    %339 = vector.shape_cast %338 : vector<1x1x32xf32> to vector<1x32xf32>
    %cst_184 = arith.constant dense<0.000000e+00> : vector<10xf32>
    %340 = vector.multi_reduction <add>, %335, %cst_184 [1] : vector<10x32xf32> to vector<10xf32>
    %341 = vector.shape_cast %340 : vector<10xf32> to vector<10x1xf32>
    %cst_185 = arith.constant 3.200000e+01 : f32
    %342 = vector.broadcast %cst_185 : f32 to vector<10x1xf32>
    %343 = arith.divf %341, %342 : vector<10x1xf32>
    %344 = vector.broadcast %343 : vector<10x1xf32> to vector<10x32xf32>
    %345 = arith.subf %335, %344 : vector<10x32xf32>
    %346 = arith.mulf %345, %345 : vector<10x32xf32>
    %cst_186 = arith.constant dense<0.000000e+00> : vector<10xf32>
    %347 = vector.multi_reduction <add>, %346, %cst_186 [1] : vector<10x32xf32> to vector<10xf32>
    %348 = vector.shape_cast %347 : vector<10xf32> to vector<10x1xf32>
    %cst_187 = arith.constant 3.200000e+01 : f32
    %349 = vector.broadcast %cst_187 : f32 to vector<10x1xf32>
    %350 = arith.divf %348, %349 : vector<10x1xf32>
    %351 = vector.broadcast %343 : vector<10x1xf32> to vector<10x32xf32>
    %352 = arith.subf %335, %351 : vector<10x32xf32>
    %cst_188 = arith.constant 9.99999974E-6 : f32
    %353 = vector.broadcast %cst_188 : f32 to vector<10x1xf32>
    %354 = arith.addf %350, %353 : vector<10x1xf32>
    %355 = math.rsqrt %354 : vector<10x1xf32>
    %356 = vector.broadcast %355 : vector<10x1xf32> to vector<10x32xf32>
    %357 = arith.mulf %352, %356 : vector<10x32xf32>
    %358 = vector.broadcast %337 : vector<1x32xf32> to vector<10x32xf32>
    %359 = arith.mulf %357, %358 : vector<10x32xf32>
    %360 = vector.broadcast %339 : vector<1x32xf32> to vector<10x32xf32>
    %361 = arith.addf %359, %360 : vector<10x32xf32>
    %c1_189 = arith.constant 1 : index
    %c0_190 = arith.constant 0 : index
    %c0_191 = arith.constant 0 : index
    %362 = vector.load %arg15[%c1_189, %c0_190, %c0_191] : memref<2x32x64xf32, #tpu.memory_space<vmem>>, vector<1x32x64xf32>
    %363 = vector.shape_cast %362 : vector<1x32x64xf32> to vector<32x64xf32>
    %364 = arith.truncf %361 : vector<10x32xf32> to vector<10x32xbf16>
    %365 = arith.truncf %363 : vector<32x64xf32> to vector<32x64xbf16>
    %cst_192 = arith.constant dense<0.000000e+00> : vector<10x64xf32>
    %366 = tpu.matmul %364, %365, %cst_192 {dimension_numbers = #tpu.dot_dimension_numbers<[1], [0], [0], [1], [0, 0, 1, 1], [], []>} : vector<10x32xbf16>, vector<32x64xbf16>, vector<10x64xf32> -> vector<10x64xf32>
    %c1_193 = arith.constant 1 : index
    %c0_194 = arith.constant 0 : index
    %c0_195 = arith.constant 0 : index
    %367 = vector.load %arg16[%c1_193, %c0_194, %c0_195] : memref<2x1x64xf32, #tpu.memory_space<vmem>>, vector<1x1x64xf32>
    %368 = vector.shape_cast %367 : vector<1x1x64xf32> to vector<1x64xf32>
    %369 = vector.broadcast %368 : vector<1x64xf32> to vector<10x64xf32>
    %370 = arith.addf %366, %369 : vector<10x64xf32>
    %371 = arith.mulf %370, %370 : vector<10x64xf32>
    %372 = arith.mulf %370, %371 : vector<10x64xf32>
    %cst_196 = arith.constant 4.471500e-02 : f32
    %373 = vector.broadcast %cst_196 : f32 to vector<10x64xf32>
    %374 = arith.mulf %373, %372 : vector<10x64xf32>
    %375 = arith.addf %370, %374 : vector<10x64xf32>
    %cst_197 = arith.constant 0.797884583 : f32
    %376 = vector.broadcast %cst_197 : f32 to vector<10x64xf32>
    %377 = arith.mulf %376, %375 : vector<10x64xf32>
    %378 = math.tanh %377 : vector<10x64xf32>
    %cst_198 = arith.constant 1.000000e+00 : f32
    %379 = vector.broadcast %cst_198 : f32 to vector<10x64xf32>
    %380 = arith.addf %379, %378 : vector<10x64xf32>
    %cst_199 = arith.constant 5.000000e-01 : f32
    %381 = vector.broadcast %cst_199 : f32 to vector<10x64xf32>
    %382 = arith.mulf %381, %380 : vector<10x64xf32>
    %383 = arith.mulf %370, %382 : vector<10x64xf32>
    %c1_200 = arith.constant 1 : index
    %c0_201 = arith.constant 0 : index
    %c0_202 = arith.constant 0 : index
    %384 = vector.load %arg17[%c1_200, %c0_201, %c0_202] : memref<2x64x32xf32, #tpu.memory_space<vmem>>, vector<1x64x32xf32>
    %385 = vector.shape_cast %384 : vector<1x64x32xf32> to vector<64x32xf32>
    %386 = arith.truncf %383 : vector<10x64xf32> to vector<10x64xbf16>
    %387 = arith.truncf %385 : vector<64x32xf32> to vector<64x32xbf16>
    %cst_203 = arith.constant dense<0.000000e+00> : vector<10x32xf32>
    %388 = tpu.matmul %386, %387, %cst_203 {dimension_numbers = #tpu.dot_dimension_numbers<[1], [0], [0], [1], [0, 0, 1, 1], [], []>} : vector<10x64xbf16>, vector<64x32xbf16>, vector<10x32xf32> -> vector<10x32xf32>
    %c1_204 = arith.constant 1 : index
    %c0_205 = arith.constant 0 : index
    %c0_206 = arith.constant 0 : index
    %389 = vector.load %arg18[%c1_204, %c0_205, %c0_206] : memref<2x1x32xf32, #tpu.memory_space<vmem>>, vector<1x1x32xf32>
    %390 = vector.shape_cast %389 : vector<1x1x32xf32> to vector<1x32xf32>
    %391 = vector.broadcast %390 : vector<1x32xf32> to vector<10x32xf32>
    %392 = arith.addf %388, %391 : vector<10x32xf32>
    %393 = arith.addf %361, %392 : vector<10x32xf32>
    %c1_207 = arith.constant 1 : index
    %c0_208 = arith.constant 0 : index
    %c0_209 = arith.constant 0 : index
    %394 = vector.load %arg19[%c1_207, %c0_208, %c0_209] : memref<2x1x32xf32, #tpu.memory_space<vmem>>, vector<1x1x32xf32>
    %395 = vector.shape_cast %394 : vector<1x1x32xf32> to vector<1x32xf32>
    %c1_210 = arith.constant 1 : index
    %c0_211 = arith.constant 0 : index
    %c0_212 = arith.constant 0 : index
    %396 = vector.load %arg20[%c1_210, %c0_211, %c0_212] : memref<2x1x32xf32, #tpu.memory_space<vmem>>, vector<1x1x32xf32>
    %397 = vector.shape_cast %396 : vector<1x1x32xf32> to vector<1x32xf32>
    %cst_213 = arith.constant dense<0.000000e+00> : vector<10xf32>
    %398 = vector.multi_reduction <add>, %393, %cst_213 [1] : vector<10x32xf32> to vector<10xf32>
    %399 = vector.shape_cast %398 : vector<10xf32> to vector<10x1xf32>
    %cst_214 = arith.constant 3.200000e+01 : f32
    %400 = vector.broadcast %cst_214 : f32 to vector<10x1xf32>
    %401 = arith.divf %399, %400 : vector<10x1xf32>
    %402 = vector.broadcast %401 : vector<10x1xf32> to vector<10x32xf32>
    %403 = arith.subf %393, %402 : vector<10x32xf32>
    %404 = arith.mulf %403, %403 : vector<10x32xf32>
    %cst_215 = arith.constant dense<0.000000e+00> : vector<10xf32>
    %405 = vector.multi_reduction <add>, %404, %cst_215 [1] : vector<10x32xf32> to vector<10xf32>
    %406 = vector.shape_cast %405 : vector<10xf32> to vector<10x1xf32>
    %cst_216 = arith.constant 3.200000e+01 : f32
    %407 = vector.broadcast %cst_216 : f32 to vector<10x1xf32>
    %408 = arith.divf %406, %407 : vector<10x1xf32>
    %409 = vector.broadcast %401 : vector<10x1xf32> to vector<10x32xf32>
    %410 = arith.subf %393, %409 : vector<10x32xf32>
    %cst_217 = arith.constant 9.99999974E-6 : f32
    %411 = vector.broadcast %cst_217 : f32 to vector<10x1xf32>
    %412 = arith.addf %408, %411 : vector<10x1xf32>
    %413 = math.rsqrt %412 : vector<10x1xf32>
    %414 = vector.broadcast %413 : vector<10x1xf32> to vector<10x32xf32>
    %415 = arith.mulf %410, %414 : vector<10x32xf32>
    %416 = vector.broadcast %395 : vector<1x32xf32> to vector<10x32xf32>
    %417 = arith.mulf %415, %416 : vector<10x32xf32>
    %418 = vector.broadcast %397 : vector<1x32xf32> to vector<10x32xf32>
    %419 = arith.addf %417, %418 : vector<10x32xf32>
    %c0_218 = arith.constant 0 : index
    %c0_219 = arith.constant 0 : index
    %c0_220 = arith.constant 0 : index
    %420 = vector.load %arg23[%c0_218, %c0_219, %c0_220] : memref<1x10x32xf32, #tpu.memory_space<vmem>>, vector<1x10x32xf32>
    %421 = vector.shape_cast %420 : vector<1x10x32xf32> to vector<10x32xf32>
    %422 = vector.shape_cast %419 : vector<10x32xf32> to vector<1x10x32xf32>
    tpu.vector_store %arg23[%c0_218, %c0_219, %c0_220], %422 {strides = array<i32>} : memref<1x10x32xf32, #tpu.memory_space<vmem>>, vector<1x10x32xf32>,
    %423 = vector.extract_strided_slice %419 {offsets = [0, 0], sizes = [1, 32], strides = [1, 1]} : vector<10x32xf32> to vector<1x32xf32>
    %c0_221 = arith.constant 0 : index
    %c0_222 = arith.constant 0 : index
    %424 = vector.load %arg21[%c0_221, %c0_222] : memref<32x32xf32, #tpu.memory_space<vmem>>, vector<32x32xf32>
    %425 = arith.truncf %423 : vector<1x32xf32> to vector<1x32xbf16>
    %426 = arith.truncf %424 : vector<32x32xf32> to vector<32x32xbf16>
    %cst_223 = arith.constant dense<0.000000e+00> : vector<1x32xf32>
    %427 = tpu.matmul %425, %426, %cst_223 {dimension_numbers = #tpu.dot_dimension_numbers<[1], [0], [0], [1], [0, 0, 1, 1], [], []>} : vector<1x32xbf16>, vector<32x32xbf16>, vector<1x32xf32> -> vector<1x32xf32>
    %c0_224 = arith.constant 0 : index
    %c0_225 = arith.constant 0 : index
    %428 = vector.load %arg22[%c0_224, %c0_225] : memref<1x32xf32, #tpu.memory_space<vmem>>, vector<1x32xf32>
    %429 = arith.addf %427, %428 : vector<1x32xf32>
    %430 = math.tanh %429 : vector<1x32xf32>
    %c0_226 = arith.constant 0 : index
    %c0_227 = arith.constant 0 : index
    %c0_228 = arith.constant 0 : index
    %431 = vector.load %arg24[%c0_226, %c0_227, %c0_228] : memref<1x1x32xf32, #tpu.memory_space<vmem>>, vector<1x1x32xf32>
    %432 = vector.shape_cast %431 : vector<1x1x32xf32> to vector<1x32xf32>
    %433 = vector.shape_cast %430 : vector<1x32xf32> to vector<1x1x32xf32>
    tpu.vector_store %arg24[%c0_226, %c0_227, %c0_228], %433 {strides = array<i32>} : memref<1x1x32xf32, #tpu.memory_space<vmem>>, vector<1x1x32xf32>,
    return
  }
  func.func @transform_0(%arg0: i32) -> (i32, i32, i32) {
    %c0_i32 = arith.constant 0 : i32
    %c0_i32_0 = arith.constant 0 : i32
    %c0_i32_1 = arith.constant 0 : i32
    return %arg0, %c0_i32, %c0_i32_0 : i32, i32, i32
  }
  func.func @transform_1(%arg0: i32) -> (i32, i32, i32) {
    %c0_i32 = arith.constant 0 : i32
    %c0_i32_0 = arith.constant 0 : i32
    %c0_i32_1 = arith.constant 0 : i32
    return %arg0, %c0_i32, %c0_i32_0 : i32, i32, i32
  }
  func.func @transform_2(%arg0: i32) -> (i32, i32) {
    %c0_i32 = arith.constant 0 : i32
    %c0_i32_0 = arith.constant 0 : i32
    %c0_i32_1 = arith.constant 0 : i32
    return %c0_i32, %c0_i32_0 : i32, i32
  }
  func.func @transform_3(%arg0: i32) -> (i32, i32) {
    %c0_i32 = arith.constant 0 : i32
    %c0_i32_0 = arith.constant 0 : i32
    %c0_i32_1 = arith.constant 0 : i32
    return %c0_i32, %c0_i32_0 : i32, i32
  }
  func.func @transform_4(%arg0: i32) -> (i32, i32, i32) {
    %c0_i32 = arith.constant 0 : i32
    %c0_i32_0 = arith.constant 0 : i32
    %c0_i32_1 = arith.constant 0 : i32
    %c0_i32_2 = arith.constant 0 : i32
    return %c0_i32, %c0_i32_0, %c0_i32_1 : i32, i32, i32
  }
  func.func @transform_5(%arg0: i32) -> (i32, i32, i32) {
    %c0_i32 = arith.constant 0 : i32
    %c0_i32_0 = arith.constant 0 : i32
    %c0_i32_1 = arith.constant 0 : i32
    %c0_i32_2 = arith.constant 0 : i32
    return %c0_i32, %c0_i32_0, %c0_i32_1 : i32, i32, i32
  }
  func.func @transform_6(%arg0: i32) -> (i32, i32, i32) {
    %c0_i32 = arith.constant 0 : i32
    %c0_i32_0 = arith.constant 0 : i32
    %c0_i32_1 = arith.constant 0 : i32
    %c0_i32_2 = arith.constant 0 : i32
    return %c0_i32, %c0_i32_0, %c0_i32_1 : i32, i32, i32
  }
  func.func @transform_7(%arg0: i32) -> (i32, i32, i32) {
    %c0_i32 = arith.constant 0 : i32
    %c0_i32_0 = arith.constant 0 : i32
    %c0_i32_1 = arith.constant 0 : i32
    %c0_i32_2 = arith.constant 0 : i32
    return %c0_i32, %c0_i32_0, %c0_i32_1 : i32, i32, i32
  }
  func.func @transform_8(%arg0: i32) -> (i32, i32, i32) {
    %c0_i32 = arith.constant 0 : i32
    %c0_i32_0 = arith.constant 0 : i32
    %c0_i32_1 = arith.constant 0 : i32
    %c0_i32_2 = arith.constant 0 : i32
    return %c0_i32, %c0_i32_0, %c0_i32_1 : i32, i32, i32
  }
  func.func @transform_9(%arg0: i32) -> (i32, i32, i32) {
    %c0_i32 = arith.constant 0 : i32
    %c0_i32_0 = arith.constant 0 : i32
    %c0_i32_1 = arith.constant 0 : i32
    %c0_i32_2 = arith.constant 0 : i32
    return %c0_i32, %c0_i32_0, %c0_i32_1 : i32, i32, i32
  }
  func.func @transform_10(%arg0: i32) -> (i32, i32, i32) {
    %c0_i32 = arith.constant 0 : i32
    %c0_i32_0 = arith.constant 0 : i32
    %c0_i32_1 = arith.constant 0 : i32
    %c0_i32_2 = arith.constant 0 : i32
    return %c0_i32, %c0_i32_0, %c0_i32_1 : i32, i32, i32
  }
  func.func @transform_11(%arg0: i32) -> (i32, i32, i32) {
    %c0_i32 = arith.constant 0 : i32
    %c0_i32_0 = arith.constant 0 : i32
    %c0_i32_1 = arith.constant 0 : i32
    %c0_i32_2 = arith.constant 0 : i32
    return %c0_i32, %c0_i32_0, %c0_i32_1 : i32, i32, i32
  }
  func.func @transform_12(%arg0: i32) -> (i32, i32, i32) {
    %c0_i32 = arith.constant 0 : i32
    %c0_i32_0 = arith.constant 0 : i32
    %c0_i32_1 = arith.constant 0 : i32
    %c0_i32_2 = arith.constant 0 : i32
    return %c0_i32, %c0_i32_0, %c0_i32_1 : i32, i32, i32
  }
  func.func @transform_13(%arg0: i32) -> (i32, i32, i32) {
    %c0_i32 = arith.constant 0 : i32
    %c0_i32_0 = arith.constant 0 : i32
    %c0_i32_1 = arith.constant 0 : i32
    %c0_i32_2 = arith.constant 0 : i32
    return %c0_i32, %c0_i32_0, %c0_i32_1 : i32, i32, i32
  }
  func.func @transform_14(%arg0: i32) -> (i32, i32, i32) {
    %c0_i32 = arith.constant 0 : i32
    %c0_i32_0 = arith.constant 0 : i32
    %c0_i32_1 = arith.constant 0 : i32
    %c0_i32_2 = arith.constant 0 : i32
    return %c0_i32, %c0_i32_0, %c0_i32_1 : i32, i32, i32
  }
  func.func @transform_15(%arg0: i32) -> (i32, i32, i32) {
    %c0_i32 = arith.constant 0 : i32
    %c0_i32_0 = arith.constant 0 : i32
    %c0_i32_1 = arith.constant 0 : i32
    %c0_i32_2 = arith.constant 0 : i32
    return %c0_i32, %c0_i32_0, %c0_i32_1 : i32, i32, i32
  }
  func.func @transform_16(%arg0: i32) -> (i32, i32, i32) {
    %c0_i32 = arith.constant 0 : i32
    %c0_i32_0 = arith.constant 0 : i32
    %c0_i32_1 = arith.constant 0 : i32
    %c0_i32_2 = arith.constant 0 : i32
    return %c0_i32, %c0_i32_0, %c0_i32_1 : i32, i32, i32
  }
  func.func @transform_17(%arg0: i32) -> (i32, i32, i32) {
    %c0_i32 = arith.constant 0 : i32
    %c0_i32_0 = arith.constant 0 : i32
    %c0_i32_1 = arith.constant 0 : i32
    %c0_i32_2 = arith.constant 0 : i32
    return %c0_i32, %c0_i32_0, %c0_i32_1 : i32, i32, i32
  }
  func.func @transform_18(%arg0: i32) -> (i32, i32, i32) {
    %c0_i32 = arith.constant 0 : i32
    %c0_i32_0 = arith.constant 0 : i32
    %c0_i32_1 = arith.constant 0 : i32
    %c0_i32_2 = arith.constant 0 : i32
    return %c0_i32, %c0_i32_0, %c0_i32_1 : i32, i32, i32
  }
  func.func @transform_19(%arg0: i32) -> (i32, i32, i32) {
    %c0_i32 = arith.constant 0 : i32
    %c0_i32_0 = arith.constant 0 : i32
    %c0_i32_1 = arith.constant 0 : i32
    %c0_i32_2 = arith.constant 0 : i32
    return %c0_i32, %c0_i32_0, %c0_i32_1 : i32, i32, i32
  }
  func.func @transform_20(%arg0: i32) -> (i32, i32) {
    %c0_i32 = arith.constant 0 : i32
    %c0_i32_0 = arith.constant 0 : i32
    %c0_i32_1 = arith.constant 0 : i32
    return %c0_i32, %c0_i32_0 : i32, i32
  }
  func.func @transform_21(%arg0: i32) -> (i32, i32) {
    %c0_i32 = arith.constant 0 : i32
    %c0_i32_0 = arith.constant 0 : i32
    %c0_i32_1 = arith.constant 0 : i32
    return %c0_i32, %c0_i32_0 : i32, i32
  }
  func.func @transform_22(%arg0: i32) -> (i32, i32, i32) {
    %c0_i32 = arith.constant 0 : i32
    %c0_i32_0 = arith.constant 0 : i32
    %c0_i32_1 = arith.constant 0 : i32
    return %arg0, %c0_i32, %c0_i32_0 : i32, i32, i32
  }
  func.func @transform_23(%arg0: i32) -> (i32, i32, i32) {
    %c0_i32 = arith.constant 0 : i32
    %c0_i32_0 = arith.constant 0 : i32
    %c0_i32_1 = arith.constant 0 : i32
    return %arg0, %c0_i32, %c0_i32_0 : i32, i32, i32
  }
}

</mosaic_0001>

<llo_original>
// kernel: roberta_ent_forward.1
$region0: #{roberta_ent_forward.1}
  #allocation0 [shape = 'u32[]', space=smem, size = 0x4, offset = 0x4, fixed_abs, tag = 'smem constant byte address 0x4 - core index']
  #allocation1 [shape = 'u32[144,128]{1,0:T(1,128)}', space=vmem, size = 0x12000, scoped, tag = 'internal scratch']
  %s0 = inlined_call_operand.vmem [shape: f32[2,10,32], index: 0, kind: input, shape index: {}]
  %s1 = inlined_call_operand.vmem [shape: f32[2,1,10], index: 1, kind: input, shape index: {}]
  %s2 = inlined_call_operand.vmem [shape: f32[1,32], index: 2, kind: input, shape index: {}]
  %s3 = inlined_call_operand.vmem [shape: f32[1,32], index: 3, kind: input, shape index: {}]
  %s4 = inlined_call_operand.vmem [shape: f32[4,32,16], index: 4, kind: input, shape index: {}]
  %s5 = inlined_call_operand.vmem [shape: f32[4,1,16], index: 5, kind: input, shape index: {}]
  %s6 = inlined_call_operand.vmem [shape: f32[4,32,16], index: 6, kind: input, shape index: {}]
  %s7 = inlined_call_operand.vmem [shape: f32[4,1,16], index: 7, kind: input, shape index: {}]
  %s8 = inlined_call_operand.vmem [shape: f32[4,32,16], index: 8, kind: input, shape index: {}]
  %s9 = inlined_call_operand.vmem [shape: f32[4,1,16], index: 9, kind: input, shape index: {}]
  %s10 = inlined_call_operand.vmem [shape: f32[4,16,32], index: 10, kind: input, shape index: {}]
  %s11 = inlined_call_operand.vmem [shape: f32[2,1,32], index: 11, kind: input, shape index: {}]
  %s12 = inlined_call_operand.vmem [shape: f32[2,1,32], index: 12, kind: input, shape index: {}]
  %s13 = inlined_call_operand.vmem [shape: f32[2,1,32], index: 13, kind: input, shape index: {}]
  %s14 = inlined_call_operand.vmem [shape: f32[2,32,64], index: 14, kind: input, shape index: {}]
  %s15 = inlined_call_operand.vmem [shape: f32[2,1,64], index: 15, kind: input, shape index: {}]
  %s16 = inlined_call_operand.vmem [shape: f32[2,64,32], index: 16, kind: input, shape index: {}]
  %s17 = inlined_call_operand.vmem [shape: f32[2,1,32], index: 17, kind: input, shape index: {}]
  %s18 = inlined_call_operand.vmem [shape: f32[2,1,32], index: 18, kind: input, shape index: {}]
  %s19 = inlined_call_operand.vmem [shape: f32[2,1,32], index: 19, kind: input, shape index: {}]
  %s20 = inlined_call_operand.vmem [shape: f32[32,32], index: 20, kind: input, shape index: {}]
  %s21 = inlined_call_operand.vmem [shape: f32[1,32], index: 21, kind: input, shape index: {}]
  %s22 = inlined_call_operand.hbm [shape: f32[2,10,32], index: 22, kind: output, shape index: {0}]
  %s23 = inlined_call_operand.hbm [shape: f32[2,1,32], index: 23, kind: output, shape index: {1}]
  %24 = xla_tuple %s22, %s23
  %s25 = sld [smem:[#allocation0]]
  $region129: #{roberta_ent_forward.1} parent=0
    _
  %s27 = ssub.s32 1, %s25
  %s28 = scalar_select 0, %s27, %s25
  $region1: #{roberta_ent_forward.1} parent=0
    #allocation2 [shape = 'u8[16384]{0}', space=vmem, size = 0x4000, scoped, tag = 'output window, operand 0']
    #allocation3 [shape = 's32[2]{0}', space=sflag, size = 0x8, scoped, tag = 'scoped memory for roberta_ent_forward.1']
    #allocation4 [shape = 'u8[1024]{0}', space=vmem, size = 0x400, scoped, tag = 'output window, operand 1']
    #allocation5 [shape = 's32[2]{0}', space=sflag, size = 0x8, scoped, tag = 'scoped memory for roberta_ent_forward.1']
    %29 = vsyncpa [#allocation3], 0
    %s30 = scalar_lea.sflag [#allocation3], 1
    %31 = vsyncpa %s30, 0
    %32 = vsyncpa [#allocation5], 0
    %s33 = scalar_lea.sflag [#allocation5], 1
    %34 = vsyncpa %s33, 0
    loop: start=0, step=1, limit=4
    $region2: #{roberta_ent_forward.1} parent=1 // loop_pre_header
      _
    $region3: #{roberta_ent_forward.1} parent=1 // loop_header
      %s36 = sphi 0, %s40
      %p37 = scmp.ge.s32.totalorder %s36, 4
      %s46 = sphi 0, %s48
      %s49 = sphi 0, %s46
      %s50 = sphi 0, %s49
      %s66 = sphi 0, %s50
      %s72 = sphi 0, %s74
      %s75 = sphi 0, %s72
      %s76 = sphi 0, %s75
      %s92 = sphi 0, %s76
      %s96 = sphi 0, %s96
      %s98 = sphi 0, %s96
      %s99 = sphi 0, %s98
      %s113 = sphi 0, %s99
      %s117 = sphi 0, %s117
      %s119 = sphi 0, %s117
      %s120 = sphi 0, %s119
      %s134 = sphi 0, %s120
      %s138 = sphi 0, %s138
      %s140 = sphi 0, %s138
      %s141 = sphi 0, %s140
      %s155 = sphi 0, %s141
      %s159 = sphi 0, %s159
      %s161 = sphi 0, %s159
      %s162 = sphi 0, %s161
      %s176 = sphi 0, %s162
      %s180 = sphi 0, %s180
      %s182 = sphi 0, %s180
      %s183 = sphi 0, %s182
      %s197 = sphi 0, %s183
      %s201 = sphi 0, %s201
      %s203 = sphi 0, %s201
      %s204 = sphi 0, %s203
      %s218 = sphi 0, %s204
      %s222 = sphi 0, %s222
      %s224 = sphi 0, %s222
      %s225 = sphi 0, %s224
      %s239 = sphi 0, %s225
      %s243 = sphi 0, %s243
      %s245 = sphi 0, %s243
      %s246 = sphi 0, %s245
      %s260 = sphi 0, %s246
      %s264 = sphi 0, %s264
      %s266 = sphi 0, %s264
      %s267 = sphi 0, %s266
      %s281 = sphi 0, %s267
      %s285 = sphi 0, %s285
      %s287 = sphi 0, %s285
      %s288 = sphi 0, %s287
      %s302 = sphi 0, %s288
      %s306 = sphi 0, %s306
      %s308 = sphi 0, %s306
      %s309 = sphi 0, %s308
      %s323 = sphi 0, %s309
      %s327 = sphi 0, %s327
      %s329 = sphi 0, %s327
      %s330 = sphi 0, %s329
      %s344 = sphi 0, %s330
      %s348 = sphi 0, %s348
      %s350 = sphi 0, %s348
      %s351 = sphi 0, %s350
      %s365 = sphi 0, %s351
      %s369 = sphi 0, %s369
      %s371 = sphi 0, %s369
      %s372 = sphi 0, %s371
      %s386 = sphi 0, %s372
      %s390 = sphi 0, %s390
      %s392 = sphi 0, %s390
      %s393 = sphi 0, %s392
      %s407 = sphi 0, %s393
      %s411 = sphi 0, %s411
      %s413 = sphi 0, %s411
      %s414 = sphi 0, %s413
      %s428 = sphi 0, %s414
      %s432 = sphi 0, %s432
      %s434 = sphi 0, %s432
      %s435 = sphi 0, %s434
      %s449 = sphi 0, %s435
      %s453 = sphi 0, %s453
      %s455 = sphi 0, %s453
      %s456 = sphi 0, %s455
      %s470 = sphi 0, %s456
      %s474 = sphi 0, %s474
      %s476 = sphi 0, %s474
      %s477 = sphi 0, %s476
      %s491 = sphi 0, %s477
      %s495 = sphi 0, %s495
      %s497 = sphi 0, %s495
      %s498 = sphi 0, %s497
      %s512 = sphi 0, %s498
      %s518 = sphi 0, %s520
      %s521 = sphi 0, %s518
      %s522 = sphi 0, %s521
      %s538 = sphi 0, %s522
      %s544 = sphi 0, %s546
      %s547 = sphi 0, %s544
      %s548 = sphi 0, %s547
      %s564 = sphi 0, %s548
    $region4: #{roberta_ent_forward.1} parent=1 // loop_header_branch
      %39 = sbr.rel (%p37) target = $region8
    $region5: #{roberta_ent_forward.1} parent=1 // loop_body
      %s41 = ssub.s32 %s36, 1
      %s42 = ssub.s32 %s36, 2
      %s43 = sadd.s32 %s36, 1
      %s44 = ssub.s32 %s36, %s43
      %p45 = scmp.eq.s32.totalorder %s44, 0
      %s47 = sadd.s32 %s46, 1
      %s48 = scalar_select %p45, %s46, %s47
      %p51 = pneg %p45
      %p52 = scmp.eq.s32.totalorder %s36, 1
      %p53 = por %p51, %p52
      %p54 = scmp.ne.s32.totalorder %s46, %s49
      %p55 = scmp.eq.s32.totalorder %s36, 0
      %p56 = por %p54, %p55
      %p57 = scmp.ne.s32.totalorder %s46, %s49
      %p58 = scmp.eq.s32.totalorder %s41, 1
      %p59 = por %p57, %p58
      %p60 = scmp.ne.s32.totalorder %s49, %s50
      %p61 = scmp.eq.s32.totalorder %s41, 0
      %p62 = por %p60, %p61
      %p63 = scmp.ne.s32.totalorder %s49, %s50
      %p64 = scmp.eq.s32.totalorder %s42, 1
      %p65 = por %p63, %p64
      %p67 = scmp.ne.s32.totalorder %s50, %s66
      %p68 = scmp.eq.s32.totalorder %s42, 0
      %p69 = por %p67, %p68
      %s70 = ssub.s32 %s36, %s43
      %p71 = scmp.eq.s32.totalorder %s70, 0
      %s73 = sadd.s32 %s72, 1
      %s74 = scalar_select %p71, %s72, %s73
      %p77 = pneg %p71
      %p78 = scmp.eq.s32.totalorder %s36, 1
      %p79 = por %p77, %p78
      %p80 = scmp.ne.s32.totalorder %s72, %s75
      %p81 = scmp.eq.s32.totalorder %s36, 0
      %p82 = por %p80, %p81
      %p83 = scmp.ne.s32.totalorder %s72, %s75
      %p84 = scmp.eq.s32.totalorder %s41, 1
      %p85 = por %p83, %p84
      %p86 = scmp.ne.s32.totalorder %s75, %s76
      %p87 = scmp.eq.s32.totalorder %s41, 0
      %p88 = por %p86, %p87
      %p89 = scmp.ne.s32.totalorder %s75, %s76
      %p90 = scmp.eq.s32.totalorder %s42, 1
      %p91 = por %p89, %p90
      %p93 = scmp.ne.s32.totalorder %s76, %s92
      %p94 = scmp.eq.s32.totalorder %s42, 0
      %p95 = por %p93, %p94
      %s97 = sadd.s32 %s96, 1
      %p100 = scmp.eq.s32.totalorder %s36, 1
      %p101 = scmp.ne.s32.totalorder %s96, %s98
      %p102 = scmp.eq.s32.totalorder %s36, 0
      %p103 = por %p101, %p102
      %p104 = scmp.ne.s32.totalorder %s96, %s98
      %p105 = scmp.eq.s32.totalorder %s41, 1
      %p106 = por %p104, %p105
      %p107 = scmp.ne.s32.totalorder %s98, %s99
      %p108 = scmp.eq.s32.totalorder %s41, 0
      %p109 = por %p107, %p108
      %p110 = scmp.ne.s32.totalorder %s98, %s99
      %p111 = scmp.eq.s32.totalorder %s42, 1
      %p112 = por %p110, %p111
      %p114 = scmp.ne.s32.totalorder %s99, %s113
      %p115 = scmp.eq.s32.totalorder %s42, 0
      %p116 = por %p114, %p115
      %s118 = sadd.s32 %s117, 1
      %p121 = scmp.eq.s32.totalorder %s36, 1
      %p122 = scmp.ne.s32.totalorder %s117, %s119
      %p123 = scmp.eq.s32.totalorder %s36, 0
      %p124 = por %p122, %p123
      %p125 = scmp.ne.s32.totalorder %s117, %s119
      %p126 = scmp.eq.s32.totalorder %s41, 1
      %p127 = por %p125, %p126
      %p128 = scmp.ne.s32.totalorder %s119, %s120
      %p129 = scmp.eq.s32.totalorder %s41, 0
      %p130 = por %p128, %p129
      %p131 = scmp.ne.s32.totalorder %s119, %s120
      %p132 = scmp.eq.s32.totalorder %s42, 1
      %p133 = por %p131, %p132
      %p135 = scmp.ne.s32.totalorder %s120, %s134
      %p136 = scmp.eq.s32.totalorder %s42, 0
      %p137 = por %p135, %p136
      %s139 = sadd.s32 %s138, 1
      %p142 = scmp.eq.s32.totalorder %s36, 1
      %p143 = scmp.ne.s32.totalorder %s138, %s140
      %p144 = scmp.eq.s32.totalorder %s36, 0
      %p145 = por %p143, %p144
      %p146 = scmp.ne.s32.totalorder %s138, %s140
      %p147 = scmp.eq.s32.totalorder %s41, 1
      %p148 = por %p146, %p147
      %p149 = scmp.ne.s32.totalorder %s140, %s141
      %p150 = scmp.eq.s32.totalorder %s41, 0
      %p151 = por %p149, %p150
      %p152 = scmp.ne.s32.totalorder %s140, %s141
      %p153 = scmp.eq.s32.totalorder %s42, 1
      %p154 = por %p152, %p153
      %p156 = scmp.ne.s32.totalorder %s141, %s155
      %p157 = scmp.eq.s32.totalorder %s42, 0
      %p158 = por %p156, %p157
      %s160 = sadd.s32 %s159, 1
      %p163 = scmp.eq.s32.totalorder %s36, 1
      %p164 = scmp.ne.s32.totalorder %s159, %s161
      %p165 = scmp.eq.s32.totalorder %s36, 0
      %p166 = por %p164, %p165
      %p167 = scmp.ne.s32.totalorder %s159, %s161
      %p168 = scmp.eq.s32.totalorder %s41, 1
      %p169 = por %p167, %p168
      %p170 = scmp.ne.s32.totalorder %s161, %s162
      %p171 = scmp.eq.s32.totalorder %s41, 0
      %p172 = por %p170, %p171
      %p173 = scmp.ne.s32.totalorder %s161, %s162
      %p174 = scmp.eq.s32.totalorder %s42, 1
      %p175 = por %p173, %p174
      %p177 = scmp.ne.s32.totalorder %s162, %s176
      %p178 = scmp.eq.s32.totalorder %s42, 0
      %p179 = por %p177, %p178
      %s181 = sadd.s32 %s180, 1
      %p184 = scmp.eq.s32.totalorder %s36, 1
      %p185 = scmp.ne.s32.totalorder %s180, %s182
      %p186 = scmp.eq.s32.totalorder %s36, 0
      %p187 = por %p185, %p186
      %p188 = scmp.ne.s32.totalorder %s180, %s182
      %p189 = scmp.eq.s32.totalorder %s41, 1
      %p190 = por %p188, %p189
      %p191 = scmp.ne.s32.totalorder %s182, %s183
      %p192 = scmp.eq.s32.totalorder %s41, 0
      %p193 = por %p191, %p192
      %p194 = scmp.ne.s32.totalorder %s182, %s183
      %p195 = scmp.eq.s32.totalorder %s42, 1
      %p196 = por %p194, %p195
      %p198 = scmp.ne.s32.totalorder %s183, %s197
      %p199 = scmp.eq.s32.totalorder %s42, 0
      %p200 = por %p198, %p199
      %s202 = sadd.s32 %s201, 1
      %p205 = scmp.eq.s32.totalorder %s36, 1
      %p206 = scmp.ne.s32.totalorder %s201, %s203
      %p207 = scmp.eq.s32.totalorder %s36, 0
      %p208 = por %p206, %p207
      %p209 = scmp.ne.s32.totalorder %s201, %s203
      %p210 = scmp.eq.s32.totalorder %s41, 1
      %p211 = por %p209, %p210
      %p212 = scmp.ne.s32.totalorder %s203, %s204
      %p213 = scmp.eq.s32.totalorder %s41, 0
      %p214 = por %p212, %p213
      %p215 = scmp.ne.s32.totalorder %s203, %s204
      %p216 = scmp.eq.s32.totalorder %s42, 1
      %p217 = por %p215, %p216
      %p219 = scmp.ne.s32.totalorder %s204, %s218
      %p220 = scmp.eq.s32.totalorder %s42, 0
      %p221 = por %p219, %p220
      %s223 = sadd.s32 %s222, 1
      %p226 = scmp.eq.s32.totalorder %s36, 1
      %p227 = scmp.ne.s32.totalorder %s222, %s224
      %p228 = scmp.eq.s32.totalorder %s36, 0
      %p229 = por %p227, %p228
      %p230 = scmp.ne.s32.totalorder %s222, %s224
      %p231 = scmp.eq.s32.totalorder %s41, 1
      %p232 = por %p230, %p231
      %p233 = scmp.ne.s32.totalorder %s224, %s225
      %p234 = scmp.eq.s32.totalorder %s41, 0
      %p235 = por %p233, %p234
      %p236 = scmp.ne.s32.totalorder %s224, %s225
      %p237 = scmp.eq.s32.totalorder %s42, 1
      %p238 = por %p236, %p237
      %p240 = scmp.ne.s32.totalorder %s225, %s239
      %p241 = scmp.eq.s32.totalorder %s42, 0
      %p242 = por %p240, %p241
      %s244 = sadd.s32 %s243, 1
      %p247 = scmp.eq.s32.totalorder %s36, 1
      %p248 = scmp.ne.s32.totalorder %s243, %s245
      %p249 = scmp.eq.s32.totalorder %s36, 0
      %p250 = por %p248, %p249
      %p251 = scmp.ne.s32.totalorder %s243, %s245
      %p252 = scmp.eq.s32.totalorder %s41, 1
      %p253 = por %p251, %p252
      %p254 = scmp.ne.s32.totalorder %s245, %s246
      %p255 = scmp.eq.s32.totalorder %s41, 0
      %p256 = por %p254, %p255
      %p257 = scmp.ne.s32.totalorder %s245, %s246
      %p258 = scmp.eq.s32.totalorder %s42, 1
      %p259 = por %p257, %p258
      %p261 = scmp.ne.s32.totalorder %s246, %s260
      %p262 = scmp.eq.s32.totalorder %s42, 0
      %p263 = por %p261, %p262
      %s265 = sadd.s32 %s264, 1
      %p268 = scmp.eq.s32.totalorder %s36, 1
      %p269 = scmp.ne.s32.totalorder %s264, %s266
      %p270 = scmp.eq.s32.totalorder %s36, 0
      %p271 = por %p269, %p270
      %p272 = scmp.ne.s32.totalorder %s264, %s266
      %p273 = scmp.eq.s32.totalorder %s41, 1
      %p274 = por %p272, %p273
      %p275 = scmp.ne.s32.totalorder %s266, %s267
      %p276 = scmp.eq.s32.totalorder %s41, 0
      %p277 = por %p275, %p276
      %p278 = scmp.ne.s32.totalorder %s266, %s267
      %p279 = scmp.eq.s32.totalorder %s42, 1
      %p280 = por %p278, %p279
      %p282 = scmp.ne.s32.totalorder %s267, %s281
      %p283 = scmp.eq.s32.totalorder %s42, 0
      %p284 = por %p282, %p283
      %s286 = sadd.s32 %s285, 1
      %p289 = scmp.eq.s32.totalorder %s36, 1
      %p290 = scmp.ne.s32.totalorder %s285, %s287
      %p291 = scmp.eq.s32.totalorder %s36, 0
      %p292 = por %p290, %p291
      %p293 = scmp.ne.s32.totalorder %s285, %s287
      %p294 = scmp.eq.s32.totalorder %s41, 1
      %p295 = por %p293, %p294
      %p296 = scmp.ne.s32.totalorder %s287, %s288
      %p297 = scmp.eq.s32.totalorder %s41, 0
      %p298 = por %p296, %p297
      %p299 = scmp.ne.s32.totalorder %s287, %s288
      %p300 = scmp.eq.s32.totalorder %s42, 1
      %p301 = por %p299, %p300
      %p303 = scmp.ne.s32.totalorder %s288, %s302
      %p304 = scmp.eq.s32.totalorder %s42, 0
      %p305 = por %p303, %p304
      %s307 = sadd.s32 %s306, 1
      %p310 = scmp.eq.s32.totalorder %s36, 1
      %p311 = scmp.ne.s32.totalorder %s306, %s308
      %p312 = scmp.eq.s32.totalorder %s36, 0
      %p313 = por %p311, %p312
      %p314 = scmp.ne.s32.totalorder %s306, %s308
      %p315 = scmp.eq.s32.totalorder %s41, 1
      %p316 = por %p314, %p315
      %p317 = scmp.ne.s32.totalorder %s308, %s309
      %p318 = scmp.eq.s32.totalorder %s41, 0
      %p319 = por %p317, %p318
      %p320 = scmp.ne.s32.totalorder %s308, %s309
      %p321 = scmp.eq.s32.totalorder %s42, 1
      %p322 = por %p320, %p321
      %p324 = scmp.ne.s32.totalorder %s309, %s323
      %p325 = scmp.eq.s32.totalorder %s42, 0
      %p326 = por %p324, %p325
      %s328 = sadd.s32 %s327, 1
      %p331 = scmp.eq.s32.totalorder %s36, 1
      %p332 = scmp.ne.s32.totalorder %s327, %s329
      %p333 = scmp.eq.s32.totalorder %s36, 0
      %p334 = por %p332, %p333
      %p335 = scmp.ne.s32.totalorder %s327, %s329
      %p336 = scmp.eq.s32.totalorder %s41, 1
      %p337 = por %p335, %p336
      %p338 = scmp.ne.s32.totalorder %s329, %s330
      %p339 = scmp.eq.s32.totalorder %s41, 0
      %p340 = por %p338, %p339
      %p341 = scmp.ne.s32.totalorder %s329, %s330
      %p342 = scmp.eq.s32.totalorder %s42, 1
      %p343 = por %p341, %p342
      %p345 = scmp.ne.s32.totalorder %s330, %s344
      %p346 = scmp.eq.s32.totalorder %s42, 0
      %p347 = por %p345, %p346
      %s349 = sadd.s32 %s348, 1
      %p352 = scmp.eq.s32.totalorder %s36, 1
      %p353 = scmp.ne.s32.totalorder %s348, %s350
      %p354 = scmp.eq.s32.totalorder %s36, 0
      %p355 = por %p353, %p354
      %p356 = scmp.ne.s32.totalorder %s348, %s350
      %p357 = scmp.eq.s32.totalorder %s41, 1
      %p358 = por %p356, %p357
      %p359 = scmp.ne.s32.totalorder %s350, %s351
      %p360 = scmp.eq.s32.totalorder %s41, 0
      %p361 = por %p359, %p360
      %p362 = scmp.ne.s32.totalorder %s350, %s351
      %p363 = scmp.eq.s32.totalorder %s42, 1
      %p364 = por %p362, %p363
      %p366 = scmp.ne.s32.totalorder %s351, %s365
      %p367 = scmp.eq.s32.totalorder %s42, 0
      %p368 = por %p366, %p367
      %s370 = sadd.s32 %s369, 1
      %p373 = scmp.eq.s32.totalorder %s36, 1
      %p374 = scmp.ne.s32.totalorder %s369, %s371
      %p375 = scmp.eq.s32.totalorder %s36, 0
      %p376 = por %p374, %p375
      %p377 = scmp.ne.s32.totalorder %s369, %s371
      %p378 = scmp.eq.s32.totalorder %s41, 1
      %p379 = por %p377, %p378
      %p380 = scmp.ne.s32.totalorder %s371, %s372
      %p381 = scmp.eq.s32.totalorder %s41, 0
      %p382 = por %p380, %p381
      %p383 = scmp.ne.s32.totalorder %s371, %s372
      %p384 = scmp.eq.s32.totalorder %s42, 1
      %p385 = por %p383, %p384
      %p387 = scmp.ne.s32.totalorder %s372, %s386
      %p388 = scmp.eq.s32.totalorder %s42, 0
      %p389 = por %p387, %p388
      %s391 = sadd.s32 %s390, 1
      %p394 = scmp.eq.s32.totalorder %s36, 1
      %p395 = scmp.ne.s32.totalorder %s390, %s392
      %p396 = scmp.eq.s32.totalorder %s36, 0
      %p397 = por %p395, %p396
      %p398 = scmp.ne.s32.totalorder %s390, %s392
      %p399 = scmp.eq.s32.totalorder %s41, 1
      %p400 = por %p398, %p399
      %p401 = scmp.ne.s32.totalorder %s392, %s393
      %p402 = scmp.eq.s32.totalorder %s41, 0
      %p403 = por %p401, %p402
      %p404 = scmp.ne.s32.totalorder %s392, %s393
      %p405 = scmp.eq.s32.totalorder %s42, 1
      %p406 = por %p404, %p405
      %p408 = scmp.ne.s32.totalorder %s393, %s407
      %p409 = scmp.eq.s32.totalorder %s42, 0
      %p410 = por %p408, %p409
      %s412 = sadd.s32 %s411, 1
      %p415 = scmp.eq.s32.totalorder %s36, 1
      %p416 = scmp.ne.s32.totalorder %s411, %s413
      %p417 = scmp.eq.s32.totalorder %s36, 0
      %p418 = por %p416, %p417
      %p419 = scmp.ne.s32.totalorder %s411, %s413
      %p420 = scmp.eq.s32.totalorder %s41, 1
      %p421 = por %p419, %p420
      %p422 = scmp.ne.s32.totalorder %s413, %s414
      %p423 = scmp.eq.s32.totalorder %s41, 0
      %p424 = por %p422, %p423
      %p425 = scmp.ne.s32.totalorder %s413, %s414
      %p426 = scmp.eq.s32.totalorder %s42, 1
      %p427 = por %p425, %p426
      %p429 = scmp.ne.s32.totalorder %s414, %s428
      %p430 = scmp.eq.s32.totalorder %s42, 0
      %p431 = por %p429, %p430
      %s433 = sadd.s32 %s432, 1
      %p436 = scmp.eq.s32.totalorder %s36, 1
      %p437 = scmp.ne.s32.totalorder %s432, %s434
      %p438 = scmp.eq.s32.totalorder %s36, 0
      %p439 = por %p437, %p438
      %p440 = scmp.ne.s32.totalorder %s432, %s434
      %p441 = scmp.eq.s32.totalorder %s41, 1
      %p442 = por %p440, %p441
      %p443 = scmp.ne.s32.totalorder %s434, %s435
      %p444 = scmp.eq.s32.totalorder %s41, 0
      %p445 = por %p443, %p444
      %p446 = scmp.ne.s32.totalorder %s434, %s435
      %p447 = scmp.eq.s32.totalorder %s42, 1
      %p448 = por %p446, %p447
      %p450 = scmp.ne.s32.totalorder %s435, %s449
      %p451 = scmp.eq.s32.totalorder %s42, 0
      %p452 = por %p450, %p451
      %s454 = sadd.s32 %s453, 1
      %p457 = scmp.eq.s32.totalorder %s36, 1
      %p458 = scmp.ne.s32.totalorder %s453, %s455
      %p459 = scmp.eq.s32.totalorder %s36, 0
      %p460 = por %p458, %p459
      %p461 = scmp.ne.s32.totalorder %s453, %s455
      %p462 = scmp.eq.s32.totalorder %s41, 1
      %p463 = por %p461, %p462
      %p464 = scmp.ne.s32.totalorder %s455, %s456
      %p465 = scmp.eq.s32.totalorder %s41, 0
      %p466 = por %p464, %p465
      %p467 = scmp.ne.s32.totalorder %s455, %s456
      %p468 = scmp.eq.s32.totalorder %s42, 1
      %p469 = por %p467, %p468
      %p471 = scmp.ne.s32.totalorder %s456, %s470
      %p472 = scmp.eq.s32.totalorder %s42, 0
      %p473 = por %p471, %p472
      %s475 = sadd.s32 %s474, 1
      %p478 = scmp.eq.s32.totalorder %s36, 1
      %p479 = scmp.ne.s32.totalorder %s474, %s476
      %p480 = scmp.eq.s32.totalorder %s36, 0
      %p481 = por %p479, %p480
      %p482 = scmp.ne.s32.totalorder %s474, %s476
      %p483 = scmp.eq.s32.totalorder %s41, 1
      %p484 = por %p482, %p483
      %p485 = scmp.ne.s32.totalorder %s476, %s477
      %p486 = scmp.eq.s32.totalorder %s41, 0
      %p487 = por %p485, %p486
      %p488 = scmp.ne.s32.totalorder %s476, %s477
      %p489 = scmp.eq.s32.totalorder %s42, 1
      %p490 = por %p488, %p489
      %p492 = scmp.ne.s32.totalorder %s477, %s491
      %p493 = scmp.eq.s32.totalorder %s42, 0
      %p494 = por %p492, %p493
      %s496 = sadd.s32 %s495, 1
      %p499 = scmp.eq.s32.totalorder %s36, 1
      %p500 = scmp.ne.s32.totalorder %s495, %s497
      %p501 = scmp.eq.s32.totalorder %s36, 0
      %p502 = por %p500, %p501
      %p503 = scmp.ne.s32.totalorder %s495, %s497
      %p504 = scmp.eq.s32.totalorder %s41, 1
      %p505 = por %p503, %p504
      %p506 = scmp.ne.s32.totalorder %s497, %s498
      %p507 = scmp.eq.s32.totalorder %s41, 0
      %p508 = por %p506, %p507
      %p509 = scmp.ne.s32.totalorder %s497, %s498
      %p510 = scmp.eq.s32.totalorder %s42, 1
      %p511 = por %p509, %p510
      %p513 = scmp.ne.s32.totalorder %s498, %s512
      %p514 = scmp.eq.s32.totalorder %s42, 0
      %p515 = por %p513, %p514
      %s516 = ssub.s32 %s36, %s43
      %p517 = scmp.eq.s32.totalorder %s516, 0
      %s519 = sadd.s32 %s518, 1
      %s520 = scalar_select %p517, %s518, %s519
      %p523 = pneg %p517
      %p524 = scmp.eq.s32.totalorder %s36, 1
      %p525 = por %p523, %p524
      %p526 = scmp.ne.s32.totalorder %s518, %s521
      %p527 = scmp.eq.s32.totalorder %s36, 0
      %p528 = por %p526, %p527
      %p529 = scmp.ne.s32.totalorder %s518, %s521
      %p530 = scmp.eq.s32.totalorder %s41, 1
      %p531 = por %p529, %p530
      %p532 = scmp.ne.s32.totalorder %s521, %s522
      %p533 = scmp.eq.s32.totalorder %s41, 0
      %p534 = por %p532, %p533
      %p535 = scmp.ne.s32.totalorder %s521, %s522
      %p536 = scmp.eq.s32.totalorder %s42, 1
      %p537 = por %p535, %p536
      %p539 = scmp.ne.s32.totalorder %s522, %s538
      %p540 = scmp.eq.s32.totalorder %s42, 0
      %p541 = por %p539, %p540
      %s542 = ssub.s32 %s36, %s43
      %p543 = scmp.eq.s32.totalorder %s542, 0
      %s545 = sadd.s32 %s544, 1
      %s546 = scalar_select %p543, %s544, %s545
      %p549 = pneg %p543
      %p550 = scmp.eq.s32.totalorder %s36, 1
      %p551 = por %p549, %p550
      %p552 = scmp.ne.s32.totalorder %s544, %s547
      %p553 = scmp.eq.s32.totalorder %s36, 0
      %p554 = por %p552, %p553
      %p555 = scmp.ne.s32.totalorder %s544, %s547
      %p556 = scmp.eq.s32.totalorder %s41, 1
      %p557 = por %p555, %p556
      %p558 = scmp.ne.s32.totalorder %s547, %s548
      %p559 = scmp.eq.s32.totalorder %s41, 0
      %p560 = por %p558, %p559
      %p561 = scmp.ne.s32.totalorder %s547, %s548
      %p562 = scmp.eq.s32.totalorder %s42, 1
      %p563 = por %p561, %p562
      %p565 = scmp.ne.s32.totalorder %s548, %s564
      %p566 = scmp.eq.s32.totalorder %s42, 0
      %p567 = por %p565, %p566
      %p568 = scmp.le.s32.totalorder 1, %s36
      %p569 = scmp.lt.s32.totalorder %s36, 3
      %p570 = pnand %p568, %p569
      %p571 = pneg %p570
      // Predicated region
      $region9: #{roberta_ent_forward.1} parent=5 // pred_check
        _
      $region10: #{roberta_ent_forward.1} parent=5 // pred_check_branch
        %573 = sbr.rel (%p570) target = $region12
      $region11: #{roberta_ent_forward.1} parent=5 // pred_region
        %s574 = ssub.s32 %s36, 1
        // Predicated region
        $region13: #{roberta_ent_forward.1} parent=11 // pred_check
          %p575 = pneg %p109
        $region14: #{roberta_ent_forward.1} parent=11 // pred_check_branch
          %577 = sbr.rel (%p575) target = $region16
        $region15: #{roberta_ent_forward.1} parent=11 // pred_region
          _
        $region16: #{roberta_ent_forward.1} parent=11 // pred_fallthru
          _
        // Predicated region
        $region17: #{roberta_ent_forward.1} parent=11 // pred_check
          %p578 = pneg %p130
        $region18: #{roberta_ent_forward.1} parent=11 // pred_check_branch
          %580 = sbr.rel (%p578) target = $region20
        $region19: #{roberta_ent_forward.1} parent=11 // pred_region
          _
        $region20: #{roberta_ent_forward.1} parent=11 // pred_fallthru
          _
        // Predicated region
        $region21: #{roberta_ent_forward.1} parent=11 // pred_check
          %p581 = pneg %p151
        $region22: #{roberta_ent_forward.1} parent=11 // pred_check_branch
          %583 = sbr.rel (%p581) target = $region24
        $region23: #{roberta_ent_forward.1} parent=11 // pred_region
          _
        $region24: #{roberta_ent_forward.1} parent=11 // pred_fallthru
          _
        // Predicated region
        $region25: #{roberta_ent_forward.1} parent=11 // pred_check
          %p584 = pneg %p172
        $region26: #{roberta_ent_forward.1} parent=11 // pred_check_branch
          %586 = sbr.rel (%p584) target = $region28
        $region27: #{roberta_ent_forward.1} parent=11 // pred_region
          _
        $region28: #{roberta_ent_forward.1} parent=11 // pred_fallthru
          _
        // Predicated region
        $region29: #{roberta_ent_forward.1} parent=11 // pred_check
          %p587 = pneg %p193
        $region30: #{roberta_ent_forward.1} parent=11 // pred_check_branch
          %589 = sbr.rel (%p587) target = $region32
        $region31: #{roberta_ent_forward.1} parent=11 // pred_region
          _
        $region32: #{roberta_ent_forward.1} parent=11 // pred_fallthru
          _
        // Predicated region
        $region33: #{roberta_ent_forward.1} parent=11 // pred_check
          %p590 = pneg %p214
        $region34: #{roberta_ent_forward.1} parent=11 // pred_check_branch
          %592 = sbr.rel (%p590) target = $region36
        $region35: #{roberta_ent_forward.1} parent=11 // pred_region
          _
        $region36: #{roberta_ent_forward.1} parent=11 // pred_fallthru
          _
        // Predicated region
        $region37: #{roberta_ent_forward.1} parent=11 // pred_check
          %p593 = pneg %p235
        $region38: #{roberta_ent_forward.1} parent=11 // pred_check_branch
          %595 = sbr.rel (%p593) target = $region40
        $region39: #{roberta_ent_forward.1} parent=11 // pred_region
          _
        $region40: #{roberta_ent_forward.1} parent=11 // pred_fallthru
          _
        // Predicated region
        $region41: #{roberta_ent_forward.1} parent=11 // pred_check
          %p596 = pneg %p256
        $region42: #{roberta_ent_forward.1} parent=11 // pred_check_branch
          %598 = sbr.rel (%p596) target = $region44
        $region43: #{roberta_ent_forward.1} parent=11 // pred_region
          _
        $region44: #{roberta_ent_forward.1} parent=11 // pred_fallthru
          _
        // Predicated region
        $region45: #{roberta_ent_forward.1} parent=11 // pred_check
          %p599 = pneg %p277
        $region46: #{roberta_ent_forward.1} parent=11 // pred_check_branch
          %601 = sbr.rel (%p599) target = $region48
        $region47: #{roberta_ent_forward.1} parent=11 // pred_region
          _
        $region48: #{roberta_ent_forward.1} parent=11 // pred_fallthru
          _
        // Predicated region
        $region49: #{roberta_ent_forward.1} parent=11 // pred_check
          %p602 = pneg %p298
        $region50: #{roberta_ent_forward.1} parent=11 // pred_check_branch
          %604 = sbr.rel (%p602) target = $region52
        $region51: #{roberta_ent_forward.1} parent=11 // pred_region
          _
        $region52: #{roberta_ent_forward.1} parent=11 // pred_fallthru
          _
        // Predicated region
        $region53: #{roberta_ent_forward.1} parent=11 // pred_check
          %p605 = pneg %p319
        $region54: #{roberta_ent_forward.1} parent=11 // pred_check_branch
          %607 = sbr.rel (%p605) target = $region56
        $region55: #{roberta_ent_forward.1} parent=11 // pred_region
          _
        $region56: #{roberta_ent_forward.1} parent=11 // pred_fallthru
          _
        // Predicated region
        $region57: #{roberta_ent_forward.1} parent=11 // pred_check
          %p608 = pneg %p340
        $region58: #{roberta_ent_forward.1} parent=11 // pred_check_branch
          %610 = sbr.rel (%p608) target = $region60
        $region59: #{roberta_ent_forward.1} parent=11 // pred_region
          _
        $region60: #{roberta_ent_forward.1} parent=11 // pred_fallthru
          _
        // Predicated region
        $region61: #{roberta_ent_forward.1} parent=11 // pred_check
          %p611 = pneg %p361
        $region62: #{roberta_ent_forward.1} parent=11 // pred_check_branch
          %613 = sbr.rel (%p611) target = $region64
        $region63: #{roberta_ent_forward.1} parent=11 // pred_region
          _
        $region64: #{roberta_ent_forward.1} parent=11 // pred_fallthru
          _
        // Predicated region
        $region65: #{roberta_ent_forward.1} parent=11 // pred_check
          %p614 = pneg %p382
        $region66: #{roberta_ent_forward.1} parent=11 // pred_check_branch
          %616 = sbr.rel (%p614) target = $region68
        $region67: #{roberta_ent_forward.1} parent=11 // pred_region
          _
        $region68: #{roberta_ent_forward.1} parent=11 // pred_fallthru
          _
        // Predicated region
        $region69: #{roberta_ent_forward.1} parent=11 // pred_check
          %p617 = pneg %p403
        $region70: #{roberta_ent_forward.1} parent=11 // pred_check_branch
          %619 = sbr.rel (%p617) target = $region72
        $region71: #{roberta_ent_forward.1} parent=11 // pred_region
          _
        $region72: #{roberta_ent_forward.1} parent=11 // pred_fallthru
          _
        // Predicated region
        $region73: #{roberta_ent_forward.1} parent=11 // pred_check
          %p620 = pneg %p424
        $region74: #{roberta_ent_forward.1} parent=11 // pred_check_branch
          %622 = sbr.rel (%p620) target = $region76
        $region75: #{roberta_ent_forward.1} parent=11 // pred_region
          _
        $region76: #{roberta_ent_forward.1} parent=11 // pred_fallthru
          _
        // Predicated region
        $region77: #{roberta_ent_forward.1} parent=11 // pred_check
          %p623 = pneg %p445
        $region78: #{roberta_ent_forward.1} parent=11 // pred_check_branch
          %625 = sbr.rel (%p623) target = $region80
        $region79: #{roberta_ent_forward.1} parent=11 // pred_region
          _
        $region80: #{roberta_ent_forward.1} parent=11 // pred_fallthru
          _
        // Predicated region
        $region81: #{roberta_ent_forward.1} parent=11 // pred_check
          %p626 = pneg %p466
        $region82: #{roberta_ent_forward.1} parent=11 // pred_check_branch
          %628 = sbr.rel (%p626) target = $region84
        $region83: #{roberta_ent_forward.1} parent=11 // pred_region
          _
        $region84: #{roberta_ent_forward.1} parent=11 // pred_fallthru
          _
        // Predicated region
        $region85: #{roberta_ent_forward.1} parent=11 // pred_check
          %p629 = pneg %p487
        $region86: #{roberta_ent_forward.1} parent=11 // pred_check_branch
          %631 = sbr.rel (%p629) target = $region88
        $region87: #{roberta_ent_forward.1} parent=11 // pred_region
          _
        $region88: #{roberta_ent_forward.1} parent=11 // pred_fallthru
          _
        // Predicated region
        $region89: #{roberta_ent_forward.1} parent=11 // pred_check
          %p632 = pneg %p508
        $region90: #{roberta_ent_forward.1} parent=11 // pred_check_branch
          %634 = sbr.rel (%p632) target = $region92
        $region91: #{roberta_ent_forward.1} parent=11 // pred_region
          _
        $region92: #{roberta_ent_forward.1} parent=11 // pred_fallthru
          _
      $region12: #{roberta_ent_forward.1} parent=5 // pred_fallthru
        _
      %p635 = scmp.lt.s32.totalorder %s36, 2
      // Predicated region
      $region93: #{roberta_ent_forward.1} parent=5 // pred_check
        %p636 = pneg %p635
      $region94: #{roberta_ent_forward.1} parent=5 // pred_check_branch
        %638 = sbr.rel (%p636) target = $region96
      $region95: #{roberta_ent_forward.1} parent=5 // pred_region
        // Predicated region
        $region97: #{roberta_ent_forward.1} parent=95 // pred_check
          %p639 = pneg %p56
        $region98: #{roberta_ent_forward.1} parent=95 // pred_check_branch
          %641 = sbr.rel (%p639) target = $region100
        $region99: #{roberta_ent_forward.1} parent=95 // pred_region
          %p642 = scmp.lt.s32.totalorder %s36, 1
          %s643 = scalar_select %p642, %s36, 1
          %s644 = smul.addr %s643, 2
          %s645 = smul.addr %s644, 8
          %s646 = scalar_lea.vmem %s0, %s645
        $region100: #{roberta_ent_forward.1} parent=95 // pred_fallthru
          _
        // Predicated region
        $region101: #{roberta_ent_forward.1} parent=95 // pred_check
          %p647 = pneg %p82
        $region102: #{roberta_ent_forward.1} parent=95 // pred_check_branch
          %649 = sbr.rel (%p647) target = $region104
        $region103: #{roberta_ent_forward.1} parent=95 // pred_region
          %p650 = scmp.lt.s32.totalorder %s36, 1
          %s651 = scalar_select %p650, %s36, 1
          %s652 = scalar_lea.vmem %s1, %s651
        $region104: #{roberta_ent_forward.1} parent=95 // pred_fallthru
          _
      $region96: #{roberta_ent_forward.1} parent=5 // pred_fallthru
        _
      %p653 = scmp.le.s32.totalorder 1, %s36
      %p654 = scmp.lt.s32.totalorder %s36, 3
      %p655 = pnand %p653, %p654
      %p656 = pneg %p655
      // Predicated region
      $region105: #{roberta_ent_forward.1} parent=5 // pred_check
        _
      $region106: #{roberta_ent_forward.1} parent=5 // pred_check_branch
        %658 = sbr.rel (%p655) target = $region108
      $region107: #{roberta_ent_forward.1} parent=5 // pred_region
        %s659 = ssub.s32 %s36, 1
        %p660 = scmp.lt.s32.totalorder %s41, 1
        %s661 = scalar_select %p660, %s41, 1
        %s662 = smul.addr %s661, 2
        %s663 = smul.addr %s662, 8
        %s664 = scalar_lea.vmem %s0, %s663
        %p665 = pneg %p62
        %p666 = pneg %p59
        %p667 = scmp.lt.s32.totalorder %s41, 1
        %s668 = scalar_select %p667, %s41, 1
        %s669 = scalar_lea.vmem %s1, %s668
        %p670 = pneg %p88
        %p671 = pneg %p85
        %p672 = pneg %p109
        %p673 = pneg %p106
        %p674 = pneg %p130
        %p675 = pneg %p127
        %p676 = pneg %p151
        %p677 = pneg %p148
        %p678 = pneg %p172
        %p679 = pneg %p169
        %p680 = pneg %p193
        %p681 = pneg %p190
        %p682 = pneg %p214
        %p683 = pneg %p211
        %p684 = pneg %p235
        %p685 = pneg %p232
        %p686 = pneg %p256
        %p687 = pneg %p253
        %p688 = pneg %p277
        %p689 = pneg %p274
        %p690 = pneg %p298
        %p691 = pneg %p295
        %p692 = pneg %p319
        %p693 = pneg %p316
        %p694 = pneg %p340
        %p695 = pneg %p337
        %p696 = pneg %p361
        %p697 = pneg %p358
        %p698 = pneg %p382
        %p699 = pneg %p379
        %p700 = pneg %p403
        %p701 = pneg %p400
        %p702 = pneg %p424
        %p703 = pneg %p421
        %p704 = pneg %p445
        %p705 = pneg %p442
        %p706 = pneg %p466
        %p707 = pneg %p463
        %p708 = pneg %p487
        %p709 = pneg %p484
        %p710 = pneg %p508
        %p711 = pneg %p505
        %p712 = pneg %p534
        %p713 = pneg %p531
        %s714 = sand.u32 %s521, 1
        %s715 = scalar_lea.sflag [#allocation3], %s714
        %s716 = sand.u32 %s521, 1
        %s717 = smul.addr %s716, 16
        %s718 = scalar_lea.vmem [#allocation2], %s717
        %p719 = pneg %p560
        %p720 = pneg %p557
        %s721 = sand.u32 %s547, 1
        %s722 = scalar_lea.sflag [#allocation5], %s721
        %s723 = sand.u32 %s547, 1
        %s724 = scalar_lea.vmem [#allocation4], %s723
        %p725 = scmp.lt.s32.totalorder %s41, 1
        %s726 = scalar_select %p725, %s41, 1
        %s727 = smul.addr %s726, 2
        %s728 = smul.addr %s727, 8
        %s729 = scalar_lea.vmem %s0, %s728
        %p730 = scmp.lt.s32.totalorder %s41, 1
        %s731 = scalar_select %p730, %s41, 1
        %s732 = scalar_lea.vmem %s1, %s731
        %v734 = vld [vmem:[%s729] sm:$0xff]
        %v735 = vld [vmem:[%s729 + $0x8] sm:$0x3]
        %v736 = vld [vmem:[%s2] sm:$0x1]
        %v737 = vld [vmem:[%s3] sm:$0x1]
        %vm738 = vcmask 261120
        %v739 = vsel %vm738, %v734, 0.0
        %740 = vadd.xlane.f32.xlu0 %v739
        %v741 = vpop.xlane.xlu0 %740
        %vm742 = vcmask 254976
        %v743 = vsel %vm742, %v735, 0.0
        %744 = vadd.xlane.f32.xlu0 %v743
        %v745 = vpop.xlane.xlu0 %744
        %v746 = vrcp.pop 32.0
        %v747 = vmul.f32 %v741, %v746
        %v748 = vmul.f32 %v745, %v746
        %v749 = vsub.f32 %v734, %v747
        %v750 = vsub.f32 %v735, %v748
        %v751 = vmul.f32 %v749, %v749
        %v752 = vmul.f32 %v750, %v750
        %v753 = vsel %vm738, %v751, 0.0
        %754 = vadd.xlane.f32.xlu0 %v753
        %v755 = vpop.xlane.xlu0 %754
        %v756 = vsel %vm742, %v752, 0.0
        %757 = vadd.xlane.f32.xlu0 %v756
        %v758 = vpop.xlane.xlu0 %757
        %v759 = vmul.f32 %v755, %v746
        %v760 = vmul.f32 %v758, %v746
        %v761 = vadd.f32 %v759, 1e-05
        %v762 = vadd.f32 %v760, 1e-05
        %v763 = vrsqrt.pop %v761
        %v764 = vrsqrt.pop %v762
        %v765 = vmul.f32 %v749, %v763
        %v766 = vmul.f32 %v750, %v764
        %v768 = vlaneseq
        %v769 = vshrl.u32 %v768, 7
        %v770 = vsub.s32 0, %v769
        %v771 = vrot.slane %v736, %v770
        %v773 = vmul.f32 %v765, %v771
        %v774 = vmul.f32 %v766, %v771
        %v776 = vlaneseq
        %v777 = vshrl.u32 %v776, 7
        %v778 = vsub.s32 0, %v777
        %v779 = vrot.slane %v737, %v778
        %v781 = vadd.f32 %v773, %v779
        %v782 = vadd.f32 %v774, %v779
        %v783 = vld [vmem:[%s732] sm:$0x1]
        %v784 = vld [vmem:[%s4] sm:$0xff]
        %v785 = vld [vmem:[%s4 + $0x8] sm:$0xff]
        %v786 = vld [vmem:[%s4 + $0x10] sm:$0xff]
        %v787 = vld [vmem:[%s4 + $0x18] sm:$0xff]
        %v788 = vpack.c.bf16 %v782, %v781
        %v789 = vpack.c.bf16 %v785, %v784
        %v790 = vpack.c.bf16 %v787, %v786
        %v791 = vld [vmem:[%s5] sm:$0x1]
        %v793 = vlaneseq
        %v794 = vshrl.u32 %v793, 7
        %v795 = vsub.s32 0, %v794
        %v796 = vrot.slane %v791, %v795
        %v799 = vsel %vm738, %v788, 0
        %801 = vmatprep.subr.bf16.mxu0 0
        %802 = vmatpush1.bf16.msra.mxu0 %v789
        %803 = vmatprep.subr.bf16.mxu0 0
        %804 = vmatpush1.bf16.msra.mxu0 %v790
        %805 = vmatprep.subr.bf16.mxu0 0
        %806 = vmatpush1.bf16.msra.mxu0 0
        %807 = vmatprep.subr.bf16.mxu0 0
        %808 = vmatpush1.bf16.msra.mxu0 0
        %809 = vmatprep.subr.bf16.mxu0 0
        %810 = vmatpush1.bf16.msra.mxu0 0
        %811 = vmatprep.subr.bf16.mxu0 0
        %812 = vmatpush1.bf16.msra.mxu0 0
        %813 = vmatprep.subr.bf16.mxu0 0
        %814 = vmatpush1.bf16.msra.mxu0 0
        %815 = vmatprep.subr.bf16.mxu0 0
        %816 = vmatpush1.bf16.msra.mxu0 0
        %817 = vmatprep.subr.bf16.mxu0 0
        %818 = vmatpush1.bf16.msra.mxu0 0
        %819 = vmatprep.subr.bf16.mxu0 0
        %820 = vmatpush1.bf16.msra.mxu0 0
        %821 = vmatprep.subr.bf16.mxu0 0
        %822 = vmatpush1.bf16.msra.mxu0 0
        %823 = vmatprep.subr.bf16.mxu0 0
        %824 = vmatpush1.bf16.msra.mxu0 0
        %825 = vmatprep.subr.bf16.mxu0 0
        %826 = vmatpush1.bf16.msra.mxu0 0
        %827 = vmatprep.subr.bf16.mxu0 0
        %828 = vmatpush1.bf16.msra.mxu0 0
        %829 = vmatprep.subr.bf16.mxu0 0
        %830 = vmatpush1.bf16.msra.mxu0 0
        %831 = vmatprep.subr.bf16.mxu0 0
        %832 = vmatpush1.bf16.msra.mxu0 0
        %833 = vmatprep.mubr.bf16.mxu0 0
        %834 = vmatmul.mubr.bf16.gmra.mrb[0].mxu0 %v799
        %v835 = vpop.f32.mrb[0].mxu0
        %v836 = vadd.f32 %v796, %v835
        %v837 = vpop.f32.mrb[0].mxu0
        %v838 = vpop.f32.mrb[0].mxu0
        %v839 = vadd.f32 %v796, %v838
        %v840 = vpop.f32.mrb[0].mxu0
        %841 = vdwg.mxu0
        %v842 = vld [vmem:[%s6] sm:$0xff]
        %v843 = vld [vmem:[%s6 + $0x8] sm:$0xff]
        %v844 = vld [vmem:[%s6 + $0x10] sm:$0xff]
        %v845 = vld [vmem:[%s6 + $0x18] sm:$0xff]
        %v846 = vpack.c.bf16 %v843, %v842
        %v847 = vpack.c.bf16 %v845, %v844
        %v848 = vld [vmem:[%s7] sm:$0x1]
        %v850 = vlaneseq
        %v851 = vshrl.u32 %v850, 7
        %v852 = vsub.s32 0, %v851
        %v853 = vrot.slane %v848, %v852
        %855 = vmatprep.subr.bf16.mxu0 0
        %856 = vmatpush1.bf16.msra.mxu0 %v846
        %857 = vmatprep.subr.bf16.mxu0 0
        %858 = vmatpush1.bf16.msra.mxu0 %v847
        %859 = vmatprep.subr.bf16.mxu0 0
        %860 = vmatpush1.bf16.msra.mxu0 0
        %861 = vmatprep.subr.bf16.mxu0 0
        %862 = vmatpush1.bf16.msra.mxu0 0
        %863 = vmatprep.subr.bf16.mxu0 0
        %864 = vmatpush1.bf16.msra.mxu0 0
        %865 = vmatprep.subr.bf16.mxu0 0
        %866 = vmatpush1.bf16.msra.mxu0 0
        %867 = vmatprep.subr.bf16.mxu0 0
        %868 = vmatpush1.bf16.msra.mxu0 0
        %869 = vmatprep.subr.bf16.mxu0 0
        %870 = vmatpush1.bf16.msra.mxu0 0
        %871 = vmatprep.subr.bf16.mxu0 0
        %872 = vmatpush1.bf16.msra.mxu0 0
        %873 = vmatprep.subr.bf16.mxu0 0
        %874 = vmatpush1.bf16.msra.mxu0 0
        %875 = vmatprep.subr.bf16.mxu0 0
        %876 = vmatpush1.bf16.msra.mxu0 0
        %877 = vmatprep.subr.bf16.mxu0 0
        %878 = vmatpush1.bf16.msra.mxu0 0
        %879 = vmatprep.subr.bf16.mxu0 0
        %880 = vmatpush1.bf16.msra.mxu0 0
        %881 = vmatprep.subr.bf16.mxu0 0
        %882 = vmatpush1.bf16.msra.mxu0 0
        %883 = vmatprep.subr.bf16.mxu0 0
        %884 = vmatpush1.bf16.msra.mxu0 0
        %885 = vmatprep.subr.bf16.mxu0 0
        %886 = vmatpush1.bf16.msra.mxu0 0
        %887 = vmatprep.mubr.bf16.mxu0 0
        %888 = vmatmul.mubr.bf16.gmra.mrb[0].mxu0 %v799
        %v889 = vpop.f32.mrb[0].mxu0
        %v890 = vadd.f32 %v853, %v889
        %v891 = vpop.f32.mrb[0].mxu0
        %v892 = vpop.f32.mrb[0].mxu0
        %v893 = vadd.f32 %v853, %v892
        %v894 = vpop.f32.mrb[0].mxu0
        %895 = vdwg.mxu0
        %v896 = vld [vmem:[%s8] sm:$0xff]
        %v897 = vld [vmem:[%s8 + $0x8] sm:$0xff]
        %v898 = vld [vmem:[%s8 + $0x10] sm:$0xff]
        %v899 = vld [vmem:[%s8 + $0x18] sm:$0xff]
        %v900 = vpack.c.bf16 %v897, %v896
        %v901 = vpack.c.bf16 %v899, %v898
        %v902 = vld [vmem:[%s9] sm:$0x1]
        %v904 = vlaneseq
        %v905 = vshrl.u32 %v904, 7
        %v906 = vsub.s32 0, %v905
        %v907 = vrot.slane %v902, %v906
        %909 = vmatprep.subr.bf16.mxu0 0
        %910 = vmatpush1.bf16.msra.mxu0 %v900
        %911 = vmatprep.subr.bf16.mxu0 0
        %912 = vmatpush1.bf16.msra.mxu0 %v901
        %913 = vmatprep.subr.bf16.mxu0 0
        %914 = vmatpush1.bf16.msra.mxu0 0
        %915 = vmatprep.subr.bf16.mxu0 0
        %916 = vmatpush1.bf16.msra.mxu0 0
        %917 = vmatprep.subr.bf16.mxu0 0
        %918 = vmatpush1.bf16.msra.mxu0 0
        %919 = vmatprep.subr.bf16.mxu0 0
        %920 = vmatpush1.bf16.msra.mxu0 0
        %921 = vmatprep.subr.bf16.mxu0 0
        %922 = vmatpush1.bf16.msra.mxu0 0
        %923 = vmatprep.subr.bf16.mxu0 0
        %924 = vmatpush1.bf16.msra.mxu0 0
        %925 = vmatprep.subr.bf16.mxu0 0
        %926 = vmatpush1.bf16.msra.mxu0 0
        %927 = vmatprep.subr.bf16.mxu0 0
        %928 = vmatpush1.bf16.msra.mxu0 0
        %929 = vmatprep.subr.bf16.mxu0 0
        %930 = vmatpush1.bf16.msra.mxu0 0
        %931 = vmatprep.subr.bf16.mxu0 0
        %932 = vmatpush1.bf16.msra.mxu0 0
        %933 = vmatprep.subr.bf16.mxu0 0
        %934 = vmatpush1.bf16.msra.mxu0 0
        %935 = vmatprep.subr.bf16.mxu0 0
        %936 = vmatpush1.bf16.msra.mxu0 0
        %937 = vmatprep.subr.bf16.mxu0 0
        %938 = vmatpush1.bf16.msra.mxu0 0
        %939 = vmatprep.subr.bf16.mxu0 0
        %940 = vmatpush1.bf16.msra.mxu0 0
        %941 = vmatprep.mubr.bf16.mxu0 0
        %942 = vmatmul.mubr.bf16.gmra.mrb[0].mxu0 %v799
        %v943 = vpop.f32.mrb[0].mxu0
        %v944 = vadd.f32 %v907, %v943
        %v945 = vpop.f32.mrb[0].mxu0
        %v946 = vpop.f32.mrb[0].mxu0
        %v947 = vadd.f32 %v907, %v946
        %v948 = vpop.f32.mrb[0].mxu0
        %949 = vdwg.mxu0
        %v950 = vpack.c.bf16 %v839, %v836
        %v951 = vpack.c.bf16 %v893, %v890
        %vm952 = vcmask 130048
        %v954 = vsel %vm952, %v950, 0
        %v957 = vsel %vm952, %v951, 0
        %959 = vmatprep.subr.bf16.mxu0 0
        %960 = vmatpush1.bf16.xpose.msra.mxu0 %v957
        %961 = vmatprep.subr.bf16.mxu0 0
        %962 = vmatpush1.bf16.xpose.msra.mxu0 0
        %963 = vmatprep.subr.bf16.mxu0 0
        %964 = vmatpush1.bf16.xpose.msra.mxu0 0
        %965 = vmatprep.subr.bf16.mxu0 0
        %966 = vmatpush1.bf16.xpose.msra.mxu0 0
        %967 = vmatprep.subr.bf16.mxu0 0
        %968 = vmatpush1.bf16.xpose.msra.mxu0 0
        %969 = vmatprep.subr.bf16.mxu0 0
        %970 = vmatpush1.bf16.xpose.msra.mxu0 0
        %971 = vmatprep.subr.bf16.mxu0 0
        %972 = vmatpush1.bf16.xpose.msra.mxu0 0
        %973 = vmatprep.subr.bf16.mxu0 0
        %974 = vmatpush1.bf16.xpose.msra.mxu0 0
        %975 = vmatprep.subr.bf16.mxu0 0
        %976 = vmatpush1.bf16.xpose.msra.mxu0 0
        %977 = vmatprep.subr.bf16.mxu0 0
        %978 = vmatpush1.bf16.xpose.msra.mxu0 0
        %979 = vmatprep.subr.bf16.mxu0 0
        %980 = vmatpush1.bf16.xpose.msra.mxu0 0
        %981 = vmatprep.subr.bf16.mxu0 0
        %982 = vmatpush1.bf16.xpose.msra.mxu0 0
        %983 = vmatprep.subr.bf16.mxu0 0
        %984 = vmatpush1.bf16.xpose.msra.mxu0 0
        %985 = vmatprep.subr.bf16.mxu0 0
        %986 = vmatpush1.bf16.xpose.msra.mxu0 0
        %987 = vmatprep.subr.bf16.mxu0 0
        %988 = vmatpush1.bf16.xpose.msra.mxu0 0
        %989 = vmatprep.subr.bf16.mxu0 0
        %990 = vmatpush1.bf16.xpose.msra.mxu0 0
        %991 = vmatprep.mubr.bf16.mxu0 0
        %992 = vmatmul.mubr.bf16.gmra.mrb[0].mxu0 %v954
        %v993 = vpop.f32.mrb[0].mxu0
        %v994 = vadd.f32 0.0, %v993
        %v995 = vpop.f32.mrb[0].mxu0
        %v996 = vpop.f32.mrb[0].mxu0
        %v997 = vadd.f32 0.0, %v996
        %v998 = vpop.f32.mrb[0].mxu0
        %999 = vdwg.mxu0
        %v1000 = vmul.f32 %v994, 0.25
        %v1001 = vmul.f32 %v997, 0.25
        %v1003 = vlaneseq
        %v1004 = vshrl.u32 %v1003, 7
        %v1005 = vsub.s32 0, %v1004
        %v1006 = vrot.slane %v783, %v1005
        %v1008 = vadd.f32 %v1000, %v1006
        %v1009 = vadd.f32 %v1001, %v1006
        %vm1010 = vcmask 80896
        %v1011 = vsel %vm1010, %v1008, -inf
        %1012 = vmax.xlane.f32.xlu0 %v1011
        %v1013 = vpop.xlane.xlu0 %1012
        %vm1014 = vcmask 74752
        %v1015 = vsel %vm1014, %v1009, -inf
        %1016 = vmax.xlane.f32.xlu0 %v1015
        %v1017 = vpop.xlane.xlu0 %1016
        %v1018 = vsub.f32 %v1008, %v1013
        %v1019 = vsub.f32 %v1009, %v1017
        %v1020 = vmul.f32 %v1018, 1.442695
        %v1021 = vpow.pop %v1020
        %v1022 = vmul.f32 %v1019, 1.442695
        %v1023 = vpow.pop %v1022
        %v1024 = vsel %vm1010, %v1021, 0.0
        %1025 = vadd.xlane.f32.xlu0 %v1024
        %v1026 = vpop.xlane.xlu0 %1025
        %v1027 = vsel %vm1014, %v1023, 0.0
        %1028 = vadd.xlane.f32.xlu0 %v1027
        %v1029 = vpop.xlane.xlu0 %1028
        %v1030 = vrcp.pop %v1026
        %v1031 = vrcp.pop %v1029
        %v1032 = vmul.f32 %v1021, %v1030
        %v1033 = vmul.f32 %v1023, %v1031
        %v1034 = vpack.c.bf16 %v1033, %v1032
        %v1035 = vpack.c.bf16 %v947, %v944
        %v1037 = vsel %vm1010, %v1034, 0
        %vm1039 = vcmask 1044480
        %v1041 = vsel %vm1039, %v1035, 0
        %1043 = vmatprep.subr.bf16.mxu0 0
        %1044 = vmatpush1.bf16.msra.mxu0 %v1041
        %1045 = vmatprep.subr.bf16.mxu0 0
        %1046 = vmatpush1.bf16.msra.mxu0 0
        %1047 = vmatprep.subr.bf16.mxu0 0
        %1048 = vmatpush1.bf16.msra.mxu0 0
        %1049 = vmatprep.subr.bf16.mxu0 0
        %1050 = vmatpush1.bf16.msra.mxu0 0
        %1051 = vmatprep.subr.bf16.mxu0 0
        %1052 = vmatpush1.bf16.msra.mxu0 0
        %1053 = vmatprep.subr.bf16.mxu0 0
        %1054 = vmatpush1.bf16.msra.mxu0 0
        %1055 = vmatprep.subr.bf16.mxu0 0
        %1056 = vmatpush1.bf16.msra.mxu0 0
        %1057 = vmatprep.subr.bf16.mxu0 0
        %1058 = vmatpush1.bf16.msra.mxu0 0
        %1059 = vmatprep.subr.bf16.mxu0 0
        %1060 = vmatpush1.bf16.msra.mxu0 0
        %1061 = vmatprep.subr.bf16.mxu0 0
        %1062 = vmatpush1.bf16.msra.mxu0 0
        %1063 = vmatprep.subr.bf16.mxu0 0
        %1064 = vmatpush1.bf16.msra.mxu0 0
        %1065 = vmatprep.subr.bf16.mxu0 0
        %1066 = vmatpush1.bf16.msra.mxu0 0
        %1067 = vmatprep.subr.bf16.mxu0 0
        %1068 = vmatpush1.bf16.msra.mxu0 0
        %1069 = vmatprep.subr.bf16.mxu0 0
        %1070 = vmatpush1.bf16.msra.mxu0 0
        %1071 = vmatprep.subr.bf16.mxu0 0
        %1072 = vmatpush1.bf16.msra.mxu0 0
        %1073 = vmatprep.subr.bf16.mxu0 0
        %1074 = vmatpush1.bf16.msra.mxu0 0
        %1075 = vmatprep.mubr.bf16.mxu0 0
        %1076 = vmatmul.mubr.bf16.gmra.mrb[0].mxu0 %v1037
        %v1077 = vpop.f32.mrb[0].mxu0
        %v1078 = vadd.f32 0.0, %v1077
        %v1079 = vpop.f32.mrb[0].mxu0
        %v1080 = vpop.f32.mrb[0].mxu0
        %v1081 = vadd.f32 0.0, %v1080
        %v1082 = vpop.f32.mrb[0].mxu0
        %1083 = vdwg.mxu0
        %v1084 = vld [vmem:[%s10] sm:$0xff]
        %v1085 = vld [vmem:[%s10 + $0x8] sm:$0xff]
        %v1086 = vpack.c.bf16 %v1081, %v1078
        %v1087 = vpack.c.bf16 %v1085, %v1084
        %s1088 = scalar_lea.vmem %s4, 32
        %v1089 = vld [vmem:[%s1088] sm:$0xff]
        %v1090 = vld [vmem:[%s1088 + $0x8] sm:$0xff]
        %v1091 = vld [vmem:[%s1088 + $0x10] sm:$0xff]
        %v1092 = vld [vmem:[%s1088 + $0x18] sm:$0xff]
        %v1093 = vpack.c.bf16 %v1090, %v1089
        %v1094 = vpack.c.bf16 %v1092, %v1091
        %s1095 = scalar_lea.vmem %s5, 1
        %v1096 = vld [vmem:[%s1095] sm:$0x1]
        %v1098 = vlaneseq
        %v1099 = vshrl.u32 %v1098, 7
        %v1100 = vsub.s32 0, %v1099
        %v1101 = vrot.slane %v1096, %v1100
        %1103 = vmatprep.subr.bf16.mxu0 0
        %1104 = vmatpush1.bf16.msra.mxu0 %v1093
        %1105 = vmatprep.subr.bf16.mxu0 0
        %1106 = vmatpush1.bf16.msra.mxu0 %v1094
        %1107 = vmatprep.subr.bf16.mxu0 0
        %1108 = vmatpush1.bf16.msra.mxu0 0
        %1109 = vmatprep.subr.bf16.mxu0 0
        %1110 = vmatpush1.bf16.msra.mxu0 0
        %1111 = vmatprep.subr.bf16.mxu0 0
        %1112 = vmatpush1.bf16.msra.mxu0 0
        %1113 = vmatprep.subr.bf16.mxu0 0
        %1114 = vmatpush1.bf16.msra.mxu0 0
        %1115 = vmatprep.subr.bf16.mxu0 0
        %1116 = vmatpush1.bf16.msra.mxu0 0
        %1117 = vmatprep.subr.bf16.mxu0 0
        %1118 = vmatpush1.bf16.msra.mxu0 0
        %1119 = vmatprep.subr.bf16.mxu0 0
        %1120 = vmatpush1.bf16.msra.mxu0 0
        %1121 = vmatprep.subr.bf16.mxu0 0
        %1122 = vmatpush1.bf16.msra.mxu0 0
        %1123 = vmatprep.subr.bf16.mxu0 0
        %1124 = vmatpush1.bf16.msra.mxu0 0
        %1125 = vmatprep.subr.bf16.mxu0 0
        %1126 = vmatpush1.bf16.msra.mxu0 0
        %1127 = vmatprep.subr.bf16.mxu0 0
        %1128 = vmatpush1.bf16.msra.mxu0 0
        %1129 = vmatprep.subr.bf16.mxu0 0
        %1130 = vmatpush1.bf16.msra.mxu0 0
        %1131 = vmatprep.subr.bf16.mxu0 0
        %1132 = vmatpush1.bf16.msra.mxu0 0
        %1133 = vmatprep.subr.bf16.mxu0 0
        %1134 = vmatpush1.bf16.msra.mxu0 0
        %1135 = vmatprep.mubr.bf16.mxu0 0
        %1136 = vmatmul.mubr.bf16.gmra.mrb[0].mxu0 %v799
        %v1137 = vpop.f32.mrb[0].mxu0
        %v1138 = vadd.f32 %v1101, %v1137
        %v1139 = vpop.f32.mrb[0].mxu0
        %v1140 = vpop.f32.mrb[0].mxu0
        %v1141 = vadd.f32 %v1101, %v1140
        %v1142 = vpop.f32.mrb[0].mxu0
        %1143 = vdwg.mxu0
        %s1144 = scalar_lea.vmem %s6, 32
        %v1145 = vld [vmem:[%s1144] sm:$0xff]
        %v1146 = vld [vmem:[%s1144 + $0x8] sm:$0xff]
        %v1147 = vld [vmem:[%s1144 + $0x10] sm:$0xff]
        %v1148 = vld [vmem:[%s1144 + $0x18] sm:$0xff]
        %v1149 = vpack.c.bf16 %v1146, %v1145
        %v1150 = vpack.c.bf16 %v1148, %v1147
        %s1151 = scalar_lea.vmem %s7, 1
        %v1152 = vld [vmem:[%s1151] sm:$0x1]
        %v1154 = vlaneseq
        %v1155 = vshrl.u32 %v1154, 7
        %v1156 = vsub.s32 0, %v1155
        %v1157 = vrot.slane %v1152, %v1156
        %1159 = vmatprep.subr.bf16.mxu0 0
        %1160 = vmatpush1.bf16.msra.mxu0 %v1149
        %1161 = vmatprep.subr.bf16.mxu0 0
        %1162 = vmatpush1.bf16.msra.mxu0 %v1150
        %1163 = vmatprep.subr.bf16.mxu0 0
        %1164 = vmatpush1.bf16.msra.mxu0 0
        %1165 = vmatprep.subr.bf16.mxu0 0
        %1166 = vmatpush1.bf16.msra.mxu0 0
        %1167 = vmatprep.subr.bf16.mxu0 0
        %1168 = vmatpush1.bf16.msra.mxu0 0
        %1169 = vmatprep.subr.bf16.mxu0 0
        %1170 = vmatpush1.bf16.msra.mxu0 0
        %1171 = vmatprep.subr.bf16.mxu0 0
        %1172 = vmatpush1.bf16.msra.mxu0 0
        %1173 = vmatprep.subr.bf16.mxu0 0
        %1174 = vmatpush1.bf16.msra.mxu0 0
        %1175 = vmatprep.subr.bf16.mxu0 0
        %1176 = vmatpush1.bf16.msra.mxu0 0
        %1177 = vmatprep.subr.bf16.mxu0 0
        %1178 = vmatpush1.bf16.msra.mxu0 0
        %1179 = vmatprep.subr.bf16.mxu0 0
        %1180 = vmatpush1.bf16.msra.mxu0 0
        %1181 = vmatprep.subr.bf16.mxu0 0
        %1182 = vmatpush1.bf16.msra.mxu0 0
        %1183 = vmatprep.subr.bf16.mxu0 0
        %1184 = vmatpush1.bf16.msra.mxu0 0
        %1185 = vmatprep.subr.bf16.mxu0 0
        %1186 = vmatpush1.bf16.msra.mxu0 0
        %1187 = vmatprep.subr.bf16.mxu0 0
        %1188 = vmatpush1.bf16.msra.mxu0 0
        %1189 = vmatprep.subr.bf16.mxu0 0
        %1190 = vmatpush1.bf16.msra.mxu0 0
        %1191 = vmatprep.mubr.bf16.mxu0 0
        %1192 = vmatmul.mubr.bf16.gmra.mrb[0].mxu0 %v799
        %v1193 = vpop.f32.mrb[0].mxu0
        %v1194 = vadd.f32 %v1157, %v1193
        %v1195 = vpop.f32.mrb[0].mxu0
        %v1196 = vpop.f32.mrb[0].mxu0
        %v1197 = vadd.f32 %v1157, %v1196
        %v1198 = vpop.f32.mrb[0].mxu0
        %1199 = vdwg.mxu0
        %s1200 = scalar_lea.vmem %s8, 32
        %v1201 = vld [vmem:[%s1200] sm:$0xff]
        %v1202 = vld [vmem:[%s1200 + $0x8] sm:$0xff]
        %v1203 = vld [vmem:[%s1200 + $0x10] sm:$0xff]
        %v1204 = vld [vmem:[%s1200 + $0x18] sm:$0xff]
        %v1205 = vpack.c.bf16 %v1202, %v1201
        %v1206 = vpack.c.bf16 %v1204, %v1203
        %s1207 = scalar_lea.vmem %s9, 1
        %v1208 = vld [vmem:[%s1207] sm:$0x1]
        %v1210 = vlaneseq
        %v1211 = vshrl.u32 %v1210, 7
        %v1212 = vsub.s32 0, %v1211
        %v1213 = vrot.slane %v1208, %v1212
        %1215 = vmatprep.subr.bf16.mxu0 0
        %1216 = vmatpush1.bf16.msra.mxu0 %v1205
        %1217 = vmatprep.subr.bf16.mxu0 0
        %1218 = vmatpush1.bf16.msra.mxu0 %v1206
        %1219 = vmatprep.subr.bf16.mxu0 0
        %1220 = vmatpush1.bf16.msra.mxu0 0
        %1221 = vmatprep.subr.bf16.mxu0 0
        %1222 = vmatpush1.bf16.msra.mxu0 0
        %1223 = vmatprep.subr.bf16.mxu0 0
        %1224 = vmatpush1.bf16.msra.mxu0 0
        %1225 = vmatprep.subr.bf16.mxu0 0
        %1226 = vmatpush1.bf16.msra.mxu0 0
        %1227 = vmatprep.subr.bf16.mxu0 0
        %1228 = vmatpush1.bf16.msra.mxu0 0
        %1229 = vmatprep.subr.bf16.mxu0 0
        %1230 = vmatpush1.bf16.msra.mxu0 0
        %1231 = vmatprep.subr.bf16.mxu0 0
        %1232 = vmatpush1.bf16.msra.mxu0 0
        %1233 = vmatprep.subr.bf16.mxu0 0
        %1234 = vmatpush1.bf16.msra.mxu0 0
        %1235 = vmatprep.subr.bf16.mxu0 0
        %1236 = vmatpush1.bf16.msra.mxu0 0
        %1237 = vmatprep.subr.bf16.mxu0 0
        %1238 = vmatpush1.bf16.msra.mxu0 0
        %1239 = vmatprep.subr.bf16.mxu0 0
        %1240 = vmatpush1.bf16.msra.mxu0 0
        %1241 = vmatprep.subr.bf16.mxu0 0
        %1242 = vmatpush1.bf16.msra.mxu0 0
        %1243 = vmatprep.subr.bf16.mxu0 0
        %1244 = vmatpush1.bf16.msra.mxu0 0
        %1245 = vmatprep.subr.bf16.mxu0 0
        %1246 = vmatpush1.bf16.msra.mxu0 0
        %1247 = vmatprep.mubr.bf16.mxu0 0
        %1248 = vmatmul.mubr.bf16.gmra.mrb[0].mxu0 %v799
        %v1249 = vpop.f32.mrb[0].mxu0
        %v1250 = vadd.f32 %v1213, %v1249
        %v1251 = vpop.f32.mrb[0].mxu0
        %v1252 = vpop.f32.mrb[0].mxu0
        %v1253 = vadd.f32 %v1213, %v1252
        %v1254 = vpop.f32.mrb[0].mxu0
        %1255 = vdwg.mxu0
        %v1256 = vpack.c.bf16 %v1141, %v1138
        %v1257 = vpack.c.bf16 %v1197, %v1194
        %v1259 = vsel %vm952, %v1256, 0
        %v1262 = vsel %vm952, %v1257, 0
        %1264 = vmatprep.subr.bf16.mxu0 0
        %1265 = vmatpush1.bf16.xpose.msra.mxu0 %v1262
        %1266 = vmatprep.subr.bf16.mxu0 0
        %1267 = vmatpush1.bf16.xpose.msra.mxu0 0
        %1268 = vmatprep.subr.bf16.mxu0 0
        %1269 = vmatpush1.bf16.xpose.msra.mxu0 0
        %1270 = vmatprep.subr.bf16.mxu0 0
        %1271 = vmatpush1.bf16.xpose.msra.mxu0 0
        %1272 = vmatprep.subr.bf16.mxu0 0
        %1273 = vmatpush1.bf16.xpose.msra.mxu0 0
        %1274 = vmatprep.subr.bf16.mxu0 0
        %1275 = vmatpush1.bf16.xpose.msra.mxu0 0
        %1276 = vmatprep.subr.bf16.mxu0 0
        %1277 = vmatpush1.bf16.xpose.msra.mxu0 0
        %1278 = vmatprep.subr.bf16.mxu0 0
        %1279 = vmatpush1.bf16.xpose.msra.mxu0 0
        %1280 = vmatprep.subr.bf16.mxu0 0
        %1281 = vmatpush1.bf16.xpose.msra.mxu0 0
        %1282 = vmatprep.subr.bf16.mxu0 0
        %1283 = vmatpush1.bf16.xpose.msra.mxu0 0
        %1284 = vmatprep.subr.bf16.mxu0 0
        %1285 = vmatpush1.bf16.xpose.msra.mxu0 0
        %1286 = vmatprep.subr.bf16.mxu0 0
        %1287 = vmatpush1.bf16.xpose.msra.mxu0 0
        %1288 = vmatprep.subr.bf16.mxu0 0
        %1289 = vmatpush1.bf16.xpose.msra.mxu0 0
        %1290 = vmatprep.subr.bf16.mxu0 0
        %1291 = vmatpush1.bf16.xpose.msra.mxu0 0
        %1292 = vmatprep.subr.bf16.mxu0 0
        %1293 = vmatpush1.bf16.xpose.msra.mxu0 0
        %1294 = vmatprep.subr.bf16.mxu0 0
        %1295 = vmatpush1.bf16.xpose.msra.mxu0 0
        %1296 = vmatprep.mubr.bf16.mxu0 0
        %1297 = vmatmul.mubr.bf16.gmra.mrb[0].mxu0 %v1259
        %v1298 = vpop.f32.mrb[0].mxu0
        %v1299 = vadd.f32 0.0, %v1298
        %v1300 = vpop.f32.mrb[0].mxu0
        %v1301 = vpop.f32.mrb[0].mxu0
        %v1302 = vadd.f32 0.0, %v1301
        %v1303 = vpop.f32.mrb[0].mxu0
        %1304 = vdwg.mxu0
        %v1305 = vmul.f32 %v1299, 0.25
        %v1306 = vmul.f32 %v1302, 0.25
        %v1307 = vadd.f32 %v1305, %v1006
        %v1308 = vadd.f32 %v1306, %v1006
        %v1309 = vsel %vm1010, %v1307, -inf
        %1310 = vmax.xlane.f32.xlu0 %v1309
        %v1311 = vpop.xlane.xlu0 %1310
        %v1312 = vsel %vm1014, %v1308, -inf
        %1313 = vmax.xlane.f32.xlu0 %v1312
        %v1314 = vpop.xlane.xlu0 %1313
        %v1315 = vsub.f32 %v1307, %v1311
        %v1316 = vsub.f32 %v1308, %v1314
        %v1317 = vmul.f32 %v1315, 1.442695
        %v1318 = vpow.pop %v1317
        %v1319 = vmul.f32 %v1316, 1.442695
        %v1320 = vpow.pop %v1319
        %v1321 = vsel %vm1010, %v1318, 0.0
        %1322 = vadd.xlane.f32.xlu0 %v1321
        %v1323 = vpop.xlane.xlu0 %1322
        %v1324 = vsel %vm1014, %v1320, 0.0
        %1325 = vadd.xlane.f32.xlu0 %v1324
        %v1326 = vpop.xlane.xlu0 %1325
        %v1327 = vrcp.pop %v1323
        %v1328 = vrcp.pop %v1326
        %v1329 = vmul.f32 %v1318, %v1327
        %v1330 = vmul.f32 %v1320, %v1328
        %v1331 = vpack.c.bf16 %v1330, %v1329
        %v1332 = vpack.c.bf16 %v1253, %v1250
        %v1334 = vsel %vm1010, %v1331, 0
        %v1337 = vsel %vm1039, %v1332, 0
        %1339 = vmatprep.subr.bf16.mxu0 0
        %1340 = vmatpush1.bf16.msra.mxu0 %v1337
        %1341 = vmatprep.subr.bf16.mxu0 0
        %1342 = vmatpush1.bf16.msra.mxu0 0
        %1343 = vmatprep.subr.bf16.mxu0 0
        %1344 = vmatpush1.bf16.msra.mxu0 0
        %1345 = vmatprep.subr.bf16.mxu0 0
        %1346 = vmatpush1.bf16.msra.mxu0 0
        %1347 = vmatprep.subr.bf16.mxu0 0
        %1348 = vmatpush1.bf16.msra.mxu0 0
        %1349 = vmatprep.subr.bf16.mxu0 0
        %1350 = vmatpush1.bf16.msra.mxu0 0
        %1351 = vmatprep.subr.bf16.mxu0 0
        %1352 = vmatpush1.bf16.msra.mxu0 0
        %1353 = vmatprep.subr.bf16.mxu0 0
        %1354 = vmatpush1.bf16.msra.mxu0 0
        %1355 = vmatprep.subr.bf16.mxu0 0
        %1356 = vmatpush1.bf16.msra.mxu0 0
        %1357 = vmatprep.subr.bf16.mxu0 0
        %1358 = vmatpush1.bf16.msra.mxu0 0
        %1359 = vmatprep.subr.bf16.mxu0 0
        %1360 = vmatpush1.bf16.msra.mxu0 0
        %1361 = vmatprep.subr.bf16.mxu0 0
        %1362 = vmatpush1.bf16.msra.mxu0 0
        %1363 = vmatprep.subr.bf16.mxu0 0
        %1364 = vmatpush1.bf16.msra.mxu0 0
        %1365 = vmatprep.subr.bf16.mxu0 0
        %1366 = vmatpush1.bf16.msra.mxu0 0
        %1367 = vmatprep.subr.bf16.mxu0 0
        %1368 = vmatpush1.bf16.msra.mxu0 0
        %1369 = vmatprep.subr.bf16.mxu0 0
        %1370 = vmatpush1.bf16.msra.mxu0 0
        %1371 = vmatprep.mubr.bf16.mxu0 0
        %1372 = vmatmul.mubr.bf16.gmra.mrb[0].mxu0 %v1334
        %v1373 = vpop.f32.mrb[0].mxu0
        %v1374 = vadd.f32 0.0, %v1373
        %v1375 = vpop.f32.mrb[0].mxu0
        %v1376 = vpop.f32.mrb[0].mxu0
        %v1377 = vadd.f32 0.0, %v1376
        %v1378 = vpop.f32.mrb[0].mxu0
        %1379 = vdwg.mxu0
        %s1380 = scalar_lea.vmem %s10, 16
        %v1381 = vld [vmem:[%s1380] sm:$0xff]
        %v1382 = vld [vmem:[%s1380 + $0x8] sm:$0xff]
        %v1383 = vpack.c.bf16 %v1377, %v1374
        %v1384 = vpack.c.bf16 %v1382, %v1381
        %v1386 = vsel %vm952, %v1383, 0
        %1388 = vmatprep.subr.bf16.mxu0 0
        %1389 = vmatpush1.bf16.msra.mxu0 %v1384
        %1390 = vmatprep.subr.bf16.mxu0 0
        %1391 = vmatpush1.bf16.msra.mxu0 0
        %1392 = vmatprep.subr.bf16.mxu0 0
        %1393 = vmatpush1.bf16.msra.mxu0 0
        %1394 = vmatprep.subr.bf16.mxu0 0
        %1395 = vmatpush1.bf16.msra.mxu0 0
        %1396 = vmatprep.subr.bf16.mxu0 0
        %1397 = vmatpush1.bf16.msra.mxu0 0
        %1398 = vmatprep.subr.bf16.mxu0 0
        %1399 = vmatpush1.bf16.msra.mxu0 0
        %1400 = vmatprep.subr.bf16.mxu0 0
        %1401 = vmatpush1.bf16.msra.mxu0 0
        %1402 = vmatprep.subr.bf16.mxu0 0
        %1403 = vmatpush1.bf16.msra.mxu0 0
        %1404 = vmatprep.subr.bf16.mxu0 0
        %1405 = vmatpush1.bf16.msra.mxu0 0
        %1406 = vmatprep.subr.bf16.mxu0 0
        %1407 = vmatpush1.bf16.msra.mxu0 0
        %1408 = vmatprep.subr.bf16.mxu0 0
        %1409 = vmatpush1.bf16.msra.mxu0 0
        %1410 = vmatprep.subr.bf16.mxu0 0
        %1411 = vmatpush1.bf16.msra.mxu0 0
        %1412 = vmatprep.subr.bf16.mxu0 0
        %1413 = vmatpush1.bf16.msra.mxu0 0
        %1414 = vmatprep.subr.bf16.mxu0 0
        %1415 = vmatpush1.bf16.msra.mxu0 0
        %1416 = vmatprep.subr.bf16.mxu0 0
        %1417 = vmatpush1.bf16.msra.mxu0 0
        %1418 = vmatprep.subr.bf16.mxu0 0
        %1419 = vmatpush1.bf16.msra.mxu0 0
        %1420 = vmatprep.mubr.bf16.mxu0 0
        %1421 = vmatmul.mubr.bf16.gmra.mrb[0].mxu0 %v1386
        %v1422 = vpop.f32.mrb[0].mxu0
        %v1423 = vadd.f32 0.0, %v1422
        %v1424 = vpop.f32.mrb[0].mxu0
        %v1425 = vpop.f32.mrb[0].mxu0
        %v1426 = vadd.f32 0.0, %v1425
        %v1427 = vpop.f32.mrb[0].mxu0
        %1428 = vdwg.mxu0
        %v1430 = vsel %vm952, %v1086, 0
        %1432 = vmatprep.subr.bf16.mxu0 0
        %1433 = vmatpush1.bf16.msra.mxu0 %v1087
        %1434 = vmatprep.subr.bf16.mxu0 0
        %1435 = vmatpush1.bf16.msra.mxu0 0
        %1436 = vmatprep.subr.bf16.mxu0 0
        %1437 = vmatpush1.bf16.msra.mxu0 0
        %1438 = vmatprep.subr.bf16.mxu0 0
        %1439 = vmatpush1.bf16.msra.mxu0 0
        %1440 = vmatprep.subr.bf16.mxu0 0
        %1441 = vmatpush1.bf16.msra.mxu0 0
        %1442 = vmatprep.subr.bf16.mxu0 0
        %1443 = vmatpush1.bf16.msra.mxu0 0
        %1444 = vmatprep.subr.bf16.mxu0 0
        %1445 = vmatpush1.bf16.msra.mxu0 0
        %1446 = vmatprep.subr.bf16.mxu0 0
        %1447 = vmatpush1.bf16.msra.mxu0 0
        %1448 = vmatprep.subr.bf16.mxu0 0
        %1449 = vmatpush1.bf16.msra.mxu0 0
        %1450 = vmatprep.subr.bf16.mxu0 0
        %1451 = vmatpush1.bf16.msra.mxu0 0
        %1452 = vmatprep.subr.bf16.mxu0 0
        %1453 = vmatpush1.bf16.msra.mxu0 0
        %1454 = vmatprep.subr.bf16.mxu0 0
        %1455 = vmatpush1.bf16.msra.mxu0 0
        %1456 = vmatprep.subr.bf16.mxu0 0
        %1457 = vmatpush1.bf16.msra.mxu0 0
        %1458 = vmatprep.subr.bf16.mxu0 0
        %1459 = vmatpush1.bf16.msra.mxu0 0
        %1460 = vmatprep.subr.bf16.mxu0 0
        %1461 = vmatpush1.bf16.msra.mxu0 0
        %1462 = vmatprep.subr.bf16.mxu0 0
        %1463 = vmatpush1.bf16.msra.mxu0 0
        %1464 = vmatprep.mubr.bf16.mxu0 0
        %1465 = vmatmul.mubr.bf16.gmra.mrb[0].mxu0 %v1430
        %v1466 = vpop.f32.mrb[0].mxu0
        %v1467 = vadd.f32 %v1423, %v1466
        %v1468 = vpop.f32.mrb[0].mxu0
        %v1469 = vpop.f32.mrb[0].mxu0
        %v1470 = vadd.f32 %v1426, %v1469
        %v1471 = vpop.f32.mrb[0].mxu0
        %1472 = vdwg.mxu0
        %v1473 = vld [vmem:[%s11] sm:$0x1]
        %v1475 = vlaneseq
        %v1476 = vshrl.u32 %v1475, 7
        %v1477 = vsub.s32 0, %v1476
        %v1478 = vrot.slane %v1473, %v1477
        %v1480 = vadd.f32 %v1467, %v1478
        %v1481 = vadd.f32 %v1470, %v1478
        %v1482 = vadd.f32 %v781, %v1480
        %v1483 = vadd.f32 %v782, %v1481
        %v1484 = vld [vmem:[%s12] sm:$0x1]
        %v1485 = vld [vmem:[%s13] sm:$0x1]
        %v1486 = vsel %vm738, %v1482, 0.0
        %1487 = vadd.xlane.f32.xlu0 %v1486
        %v1488 = vpop.xlane.xlu0 %1487
        %v1489 = vsel %vm742, %v1483, 0.0
        %1490 = vadd.xlane.f32.xlu0 %v1489
        %v1491 = vpop.xlane.xlu0 %1490
        %v1492 = vmul.f32 %v1488, %v746
        %v1493 = vmul.f32 %v1491, %v746
        %v1494 = vsub.f32 %v1482, %v1492
        %v1495 = vsub.f32 %v1483, %v1493
        %v1496 = vmul.f32 %v1494, %v1494
        %v1497 = vmul.f32 %v1495, %v1495
        %v1498 = vsel %vm738, %v1496, 0.0
        %1499 = vadd.xlane.f32.xlu0 %v1498
        %v1500 = vpop.xlane.xlu0 %1499
        %v1501 = vsel %vm742, %v1497, 0.0
        %1502 = vadd.xlane.f32.xlu0 %v1501
        %v1503 = vpop.xlane.xlu0 %1502
        %v1504 = vmul.f32 %v1500, %v746
        %v1505 = vmul.f32 %v1503, %v746
        %v1506 = vadd.f32 %v1504, 1e-05
        %v1507 = vadd.f32 %v1505, 1e-05
        %v1508 = vrsqrt.pop %v1506
        %v1509 = vrsqrt.pop %v1507
        %v1510 = vmul.f32 %v1494, %v1508
        %v1511 = vmul.f32 %v1495, %v1509
        %v1513 = vlaneseq
        %v1514 = vshrl.u32 %v1513, 7
        %v1515 = vsub.s32 0, %v1514
        %v1516 = vrot.slane %v1484, %v1515
        %v1518 = vmul.f32 %v1510, %v1516
        %v1519 = vmul.f32 %v1511, %v1516
        %v1521 = vlaneseq
        %v1522 = vshrl.u32 %v1521, 7
        %v1523 = vsub.s32 0, %v1522
        %v1524 = vrot.slane %v1485, %v1523
        %v1526 = vadd.f32 %v1518, %v1524
        %v1527 = vadd.f32 %v1519, %v1524
        %v1528 = vld [vmem:[%s14] sm:$0xff]
        %v1529 = vld [vmem:[%s14 + $0x8] sm:$0xff]
        %v1530 = vld [vmem:[%s14 + $0x10] sm:$0xff]
        %v1531 = vld [vmem:[%s14 + $0x18] sm:$0xff]
        %v1532 = vpack.c.bf16 %v1527, %v1526
        %v1533 = vpack.c.bf16 %v1529, %v1528
        %v1534 = vpack.c.bf16 %v1531, %v1530
        %v1535 = vld [vmem:[%s15] sm:$0x1]
        %v1537 = vlaneseq
        %v1538 = vshrl.u32 %v1537, 7
        %v1539 = vsub.s32 0, %v1538
        %v1540 = vrot.slane %v1535, %v1539
        %v1543 = vsel %vm738, %v1532, 0
        %1545 = vmatprep.subr.bf16.mxu0 0
        %1546 = vmatpush1.bf16.msra.mxu0 %v1533
        %1547 = vmatprep.subr.bf16.mxu0 0
        %1548 = vmatpush1.bf16.msra.mxu0 %v1534
        %1549 = vmatprep.subr.bf16.mxu0 0
        %1550 = vmatpush1.bf16.msra.mxu0 0
        %1551 = vmatprep.subr.bf16.mxu0 0
        %1552 = vmatpush1.bf16.msra.mxu0 0
        %1553 = vmatprep.subr.bf16.mxu0 0
        %1554 = vmatpush1.bf16.msra.mxu0 0
        %1555 = vmatprep.subr.bf16.mxu0 0
        %1556 = vmatpush1.bf16.msra.mxu0 0
        %1557 = vmatprep.subr.bf16.mxu0 0
        %1558 = vmatpush1.bf16.msra.mxu0 0
        %1559 = vmatprep.subr.bf16.mxu0 0
        %1560 = vmatpush1.bf16.msra.mxu0 0
        %1561 = vmatprep.subr.bf16.mxu0 0
        %1562 = vmatpush1.bf16.msra.mxu0 0
        %1563 = vmatprep.subr.bf16.mxu0 0
        %1564 = vmatpush1.bf16.msra.mxu0 0
        %1565 = vmatprep.subr.bf16.mxu0 0
        %1566 = vmatpush1.bf16.msra.mxu0 0
        %1567 = vmatprep.subr.bf16.mxu0 0
        %1568 = vmatpush1.bf16.msra.mxu0 0
        %1569 = vmatprep.subr.bf16.mxu0 0
        %1570 = vmatpush1.bf16.msra.mxu0 0
        %1571 = vmatprep.subr.bf16.mxu0 0
        %1572 = vmatpush1.bf16.msra.mxu0 0
        %1573 = vmatprep.subr.bf16.mxu0 0
        %1574 = vmatpush1.bf16.msra.mxu0 0
        %1575 = vmatprep.subr.bf16.mxu0 0
        %1576 = vmatpush1.bf16.msra.mxu0 0
        %1577 = vmatprep.mubr.bf16.mxu0 0
        %1578 = vmatmul.mubr.bf16.gmra.mrb[0].mxu0 %v1543
        %v1579 = vpop.f32.mrb[0].mxu0
        %v1580 = vadd.f32 %v1540, %v1579
        %v1581 = vpop.f32.mrb[0].mxu0
        %v1582 = vpop.f32.mrb[0].mxu0
        %v1583 = vadd.f32 %v1540, %v1582
        %v1584 = vpop.f32.mrb[0].mxu0
        %1585 = vdwg.mxu0
        %v1586 = vmul.f32 %v1580, %v1580
        %v1587 = vmul.f32 %v1583, %v1583
        %v1588 = vmul.f32 %v1580, %v1586
        %v1589 = vmul.f32 %v1583, %v1587
        %v1590 = vmul.f32 %v1588, 0.044715
        %v1591 = vmul.f32 %v1589, 0.044715
        %v1592 = vadd.f32 %v1580, %v1590
        %v1593 = vadd.f32 %v1583, %v1591
        %v1594 = vmul.f32 %v1592, 0.7978846
        %v1595 = vmul.f32 %v1593, 0.7978846
        %v1596 = vtanh.pop %v1594
        %v1597 = vtanh.pop %v1595
        %v1598 = vadd.f32 %v1596, 1.0
        %v1599 = vadd.f32 %v1597, 1.0
        %v1600 = vmul.f32 %v1598, 0.5
        %v1601 = vmul.f32 %v1599, 0.5
        %v1602 = vmul.f32 %v1580, %v1600
        %v1603 = vmul.f32 %v1583, %v1601
        %v1604 = vld [vmem:[%s16] sm:$0xff]
        %v1605 = vld [vmem:[%s16 + $0x8] sm:$0xff]
        %v1606 = vld [vmem:[%s16 + $0x10] sm:$0xff]
        %v1607 = vld [vmem:[%s16 + $0x18] sm:$0xff]
        %v1608 = vld [vmem:[%s16 + $0x20] sm:$0xff]
        %v1609 = vld [vmem:[%s16 + $0x28] sm:$0xff]
        %v1610 = vld [vmem:[%s16 + $0x30] sm:$0xff]
        %v1611 = vld [vmem:[%s16 + $0x38] sm:$0xff]
        %v1612 = vpack.c.bf16 %v1603, %v1602
        %v1613 = vpack.c.bf16 %v1605, %v1604
        %v1614 = vpack.c.bf16 %v1607, %v1606
        %v1615 = vpack.c.bf16 %v1609, %v1608
        %v1616 = vpack.c.bf16 %v1611, %v1610
        %v1617 = vld [vmem:[%s17] sm:$0x1]
        %v1619 = vlaneseq
        %v1620 = vshrl.u32 %v1619, 7
        %v1621 = vsub.s32 0, %v1620
        %v1622 = vrot.slane %v1617, %v1621
        %vm1624 = vcmask 523264
        %v1626 = vsel %vm1624, %v1612, 0
        %1628 = vmatprep.subr.bf16.mxu0 0
        %1629 = vmatpush1.bf16.msra.mxu0 %v1613
        %1630 = vmatprep.subr.bf16.mxu0 0
        %1631 = vmatpush1.bf16.msra.mxu0 %v1614
        %1632 = vmatprep.subr.bf16.mxu0 0
        %1633 = vmatpush1.bf16.msra.mxu0 %v1615
        %1634 = vmatprep.subr.bf16.mxu0 0
        %1635 = vmatpush1.bf16.msra.mxu0 %v1616
        %1636 = vmatprep.subr.bf16.mxu0 0
        %1637 = vmatpush1.bf16.msra.mxu0 0
        %1638 = vmatprep.subr.bf16.mxu0 0
        %1639 = vmatpush1.bf16.msra.mxu0 0
        %1640 = vmatprep.subr.bf16.mxu0 0
        %1641 = vmatpush1.bf16.msra.mxu0 0
        %1642 = vmatprep.subr.bf16.mxu0 0
        %1643 = vmatpush1.bf16.msra.mxu0 0
        %1644 = vmatprep.subr.bf16.mxu0 0
        %1645 = vmatpush1.bf16.msra.mxu0 0
        %1646 = vmatprep.subr.bf16.mxu0 0
        %1647 = vmatpush1.bf16.msra.mxu0 0
        %1648 = vmatprep.subr.bf16.mxu0 0
        %1649 = vmatpush1.bf16.msra.mxu0 0
        %1650 = vmatprep.subr.bf16.mxu0 0
        %1651 = vmatpush1.bf16.msra.mxu0 0
        %1652 = vmatprep.subr.bf16.mxu0 0
        %1653 = vmatpush1.bf16.msra.mxu0 0
        %1654 = vmatprep.subr.bf16.mxu0 0
        %1655 = vmatpush1.bf16.msra.mxu0 0
        %1656 = vmatprep.subr.bf16.mxu0 0
        %1657 = vmatpush1.bf16.msra.mxu0 0
        %1658 = vmatprep.subr.bf16.mxu0 0
        %1659 = vmatpush1.bf16.msra.mxu0 0
        %1660 = vmatprep.mubr.bf16.mxu0 0
        %1661 = vmatmul.mubr.bf16.gmra.mrb[0].mxu0 %v1626
        %v1662 = vpop.f32.mrb[0].mxu0
        %v1663 = vadd.f32 %v1622, %v1662
        %v1664 = vpop.f32.mrb[0].mxu0
        %v1665 = vpop.f32.mrb[0].mxu0
        %v1666 = vadd.f32 %v1622, %v1665
        %v1667 = vpop.f32.mrb[0].mxu0
        %1668 = vdwg.mxu0
        %v1669 = vadd.f32 %v1526, %v1663
        %v1670 = vadd.f32 %v1527, %v1666
        %v1671 = vld [vmem:[%s18] sm:$0x1]
        %v1672 = vld [vmem:[%s19] sm:$0x1]
        %v1673 = vsel %vm738, %v1669, 0.0
        %1674 = vadd.xlane.f32.xlu0 %v1673
        %v1675 = vpop.xlane.xlu0 %1674
        %v1676 = vsel %vm742, %v1670, 0.0
        %1677 = vadd.xlane.f32.xlu0 %v1676
        %v1678 = vpop.xlane.xlu0 %1677
        %v1679 = vmul.f32 %v1675, %v746
        %v1680 = vmul.f32 %v1678, %v746
        %v1681 = vsub.f32 %v1669, %v1679
        %v1682 = vsub.f32 %v1670, %v1680
        %v1683 = vmul.f32 %v1681, %v1681
        %v1684 = vmul.f32 %v1682, %v1682
        %v1685 = vsel %vm738, %v1683, 0.0
        %1686 = vadd.xlane.f32.xlu0 %v1685
        %v1687 = vpop.xlane.xlu0 %1686
        %v1688 = vsel %vm742, %v1684, 0.0
        %1689 = vadd.xlane.f32.xlu0 %v1688
        %v1690 = vpop.xlane.xlu0 %1689
        %v1691 = vmul.f32 %v1687, %v746
        %v1692 = vmul.f32 %v1690, %v746
        %v1693 = vadd.f32 %v1691, 1e-05
        %v1694 = vadd.f32 %v1692, 1e-05
        %v1695 = vrsqrt.pop %v1693
        %v1696 = vrsqrt.pop %v1694
        %v1697 = vmul.f32 %v1681, %v1695
        %v1698 = vmul.f32 %v1682, %v1696
        %v1700 = vlaneseq
        %v1701 = vshrl.u32 %v1700, 7
        %v1702 = vsub.s32 0, %v1701
        %v1703 = vrot.slane %v1671, %v1702
        %v1705 = vmul.f32 %v1697, %v1703
        %v1706 = vmul.f32 %v1698, %v1703
        %v1708 = vlaneseq
        %v1709 = vshrl.u32 %v1708, 7
        %v1710 = vsub.s32 0, %v1709
        %v1711 = vrot.slane %v1672, %v1710
        %v1713 = vadd.f32 %v1705, %v1711
        %v1714 = vadd.f32 %v1706, %v1711
        %s1715 = scalar_lea.vmem %s4, 64
        %v1716 = vld [vmem:[%s1715] sm:$0xff]
        %v1717 = vld [vmem:[%s1715 + $0x8] sm:$0xff]
        %v1718 = vld [vmem:[%s1715 + $0x10] sm:$0xff]
        %v1719 = vld [vmem:[%s1715 + $0x18] sm:$0xff]
        %v1720 = vpack.c.bf16 %v1714, %v1713
        %v1721 = vpack.c.bf16 %v1717, %v1716
        %v1722 = vpack.c.bf16 %v1719, %v1718
        %s1723 = scalar_lea.vmem %s5, 2
        %v1724 = vld [vmem:[%s1723] sm:$0x1]
        %v1726 = vlaneseq
        %v1727 = vshrl.u32 %v1726, 7
        %v1728 = vsub.s32 0, %v1727
        %v1729 = vrot.slane %v1724, %v1728
        %v1732 = vsel %vm738, %v1720, 0
        %1734 = vmatprep.subr.bf16.mxu0 0
        %1735 = vmatpush1.bf16.msra.mxu0 %v1721
        %1736 = vmatprep.subr.bf16.mxu0 0
        %1737 = vmatpush1.bf16.msra.mxu0 %v1722
        %1738 = vmatprep.subr.bf16.mxu0 0
        %1739 = vmatpush1.bf16.msra.mxu0 0
        %1740 = vmatprep.subr.bf16.mxu0 0
        %1741 = vmatpush1.bf16.msra.mxu0 0
        %1742 = vmatprep.subr.bf16.mxu0 0
        %1743 = vmatpush1.bf16.msra.mxu0 0
        %1744 = vmatprep.subr.bf16.mxu0 0
        %1745 = vmatpush1.bf16.msra.mxu0 0
        %1746 = vmatprep.subr.bf16.mxu0 0
        %1747 = vmatpush1.bf16.msra.mxu0 0
        %1748 = vmatprep.subr.bf16.mxu0 0
        %1749 = vmatpush1.bf16.msra.mxu0 0
        %1750 = vmatprep.subr.bf16.mxu0 0
        %1751 = vmatpush1.bf16.msra.mxu0 0
        %1752 = vmatprep.subr.bf16.mxu0 0
        %1753 = vmatpush1.bf16.msra.mxu0 0
        %1754 = vmatprep.subr.bf16.mxu0 0
        %1755 = vmatpush1.bf16.msra.mxu0 0
        %1756 = vmatprep.subr.bf16.mxu0 0
        %1757 = vmatpush1.bf16.msra.mxu0 0
        %1758 = vmatprep.subr.bf16.mxu0 0
        %1759 = vmatpush1.bf16.msra.mxu0 0
        %1760 = vmatprep.subr.bf16.mxu0 0
        %1761 = vmatpush1.bf16.msra.mxu0 0
        %1762 = vmatprep.subr.bf16.mxu0 0
        %1763 = vmatpush1.bf16.msra.mxu0 0
        %1764 = vmatprep.subr.bf16.mxu0 0
        %1765 = vmatpush1.bf16.msra.mxu0 0
        %1766 = vmatprep.mubr.bf16.mxu0 0
        %1767 = vmatmul.mubr.bf16.gmra.mrb[0].mxu0 %v1732
        %v1768 = vpop.f32.mrb[0].mxu0
        %v1769 = vadd.f32 %v1729, %v1768
        %v1770 = vpop.f32.mrb[0].mxu0
        %v1771 = vpop.f32.mrb[0].mxu0
        %v1772 = vadd.f32 %v1729, %v1771
        %v1773 = vpop.f32.mrb[0].mxu0
        %1774 = vdwg.mxu0
        %s1775 = scalar_lea.vmem %s6, 64
        %v1776 = vld [vmem:[%s1775] sm:$0xff]
        %v1777 = vld [vmem:[%s1775 + $0x8] sm:$0xff]
        %v1778 = vld [vmem:[%s1775 + $0x10] sm:$0xff]
        %v1779 = vld [vmem:[%s1775 + $0x18] sm:$0xff]
        %v1780 = vpack.c.bf16 %v1777, %v1776
        %v1781 = vpack.c.bf16 %v1779, %v1778
        %s1782 = scalar_lea.vmem %s7, 2
        %v1783 = vld [vmem:[%s1782] sm:$0x1]
        %v1785 = vlaneseq
        %v1786 = vshrl.u32 %v1785, 7
        %v1787 = vsub.s32 0, %v1786
        %v1788 = vrot.slane %v1783, %v1787
        %1790 = vmatprep.subr.bf16.mxu0 0
        %1791 = vmatpush1.bf16.msra.mxu0 %v1780
        %1792 = vmatprep.subr.bf16.mxu0 0
        %1793 = vmatpush1.bf16.msra.mxu0 %v1781
        %1794 = vmatprep.subr.bf16.mxu0 0
        %1795 = vmatpush1.bf16.msra.mxu0 0
        %1796 = vmatprep.subr.bf16.mxu0 0
        %1797 = vmatpush1.bf16.msra.mxu0 0
        %1798 = vmatprep.subr.bf16.mxu0 0
        %1799 = vmatpush1.bf16.msra.mxu0 0
        %1800 = vmatprep.subr.bf16.mxu0 0
        %1801 = vmatpush1.bf16.msra.mxu0 0
        %1802 = vmatprep.subr.bf16.mxu0 0
        %1803 = vmatpush1.bf16.msra.mxu0 0
        %1804 = vmatprep.subr.bf16.mxu0 0
        %1805 = vmatpush1.bf16.msra.mxu0 0
        %1806 = vmatprep.subr.bf16.mxu0 0
        %1807 = vmatpush1.bf16.msra.mxu0 0
        %1808 = vmatprep.subr.bf16.mxu0 0
        %1809 = vmatpush1.bf16.msra.mxu0 0
        %1810 = vmatprep.subr.bf16.mxu0 0
        %1811 = vmatpush1.bf16.msra.mxu0 0
        %1812 = vmatprep.subr.bf16.mxu0 0
        %1813 = vmatpush1.bf16.msra.mxu0 0
        %1814 = vmatprep.subr.bf16.mxu0 0
        %1815 = vmatpush1.bf16.msra.mxu0 0
        %1816 = vmatprep.subr.bf16.mxu0 0
        %1817 = vmatpush1.bf16.msra.mxu0 0
        %1818 = vmatprep.subr.bf16.mxu0 0
        %1819 = vmatpush1.bf16.msra.mxu0 0
        %1820 = vmatprep.subr.bf16.mxu0 0
        %1821 = vmatpush1.bf16.msra.mxu0 0
        %1822 = vmatprep.mubr.bf16.mxu0 0
        %1823 = vmatmul.mubr.bf16.gmra.mrb[0].mxu0 %v1732
        %v1824 = vpop.f32.mrb[0].mxu0
        %v1825 = vadd.f32 %v1788, %v1824
        %v1826 = vpop.f32.mrb[0].mxu0
        %v1827 = vpop.f32.mrb[0].mxu0
        %v1828 = vadd.f32 %v1788, %v1827
        %v1829 = vpop.f32.mrb[0].mxu0
        %1830 = vdwg.mxu0
        %s1831 = scalar_lea.vmem %s8, 64
        %v1832 = vld [vmem:[%s1831] sm:$0xff]
        %v1833 = vld [vmem:[%s1831 + $0x8] sm:$0xff]
        %v1834 = vld [vmem:[%s1831 + $0x10] sm:$0xff]
        %v1835 = vld [vmem:[%s1831 + $0x18] sm:$0xff]
        %v1836 = vpack.c.bf16 %v1833, %v1832
        %v1837 = vpack.c.bf16 %v1835, %v1834
        %s1838 = scalar_lea.vmem %s9, 2
        %v1839 = vld [vmem:[%s1838] sm:$0x1]
        %v1841 = vlaneseq
        %v1842 = vshrl.u32 %v1841, 7
        %v1843 = vsub.s32 0, %v1842
        %v1844 = vrot.slane %v1839, %v1843
        %1846 = vmatprep.subr.bf16.mxu0 0
        %1847 = vmatpush1.bf16.msra.mxu0 %v1836
        %1848 = vmatprep.subr.bf16.mxu0 0
        %1849 = vmatpush1.bf16.msra.mxu0 %v1837
        %1850 = vmatprep.subr.bf16.mxu0 0
        %1851 = vmatpush1.bf16.msra.mxu0 0
        %1852 = vmatprep.subr.bf16.mxu0 0
        %1853 = vmatpush1.bf16.msra.mxu0 0
        %1854 = vmatprep.subr.bf16.mxu0 0
        %1855 = vmatpush1.bf16.msra.mxu0 0
        %1856 = vmatprep.subr.bf16.mxu0 0
        %1857 = vmatpush1.bf16.msra.mxu0 0
        %1858 = vmatprep.subr.bf16.mxu0 0
        %1859 = vmatpush1.bf16.msra.mxu0 0
        %1860 = vmatprep.subr.bf16.mxu0 0
        %1861 = vmatpush1.bf16.msra.mxu0 0
        %1862 = vmatprep.subr.bf16.mxu0 0
        %1863 = vmatpush1.bf16.msra.mxu0 0
        %1864 = vmatprep.subr.bf16.mxu0 0
        %1865 = vmatpush1.bf16.msra.mxu0 0
        %1866 = vmatprep.subr.bf16.mxu0 0
        %1867 = vmatpush1.bf16.msra.mxu0 0
        %1868 = vmatprep.subr.bf16.mxu0 0
        %1869 = vmatpush1.bf16.msra.mxu0 0
        %1870 = vmatprep.subr.bf16.mxu0 0
        %1871 = vmatpush1.bf16.msra.mxu0 0
        %1872 = vmatprep.subr.bf16.mxu0 0
        %1873 = vmatpush1.bf16.msra.mxu0 0
        %1874 = vmatprep.subr.bf16.mxu0 0
        %1875 = vmatpush1.bf16.msra.mxu0 0
        %1876 = vmatprep.subr.bf16.mxu0 0
        %1877 = vmatpush1.bf16.msra.mxu0 0
        %1878 = vmatprep.mubr.bf16.mxu0 0
        %1879 = vmatmul.mubr.bf16.gmra.mrb[0].mxu0 %v1732
        %v1880 = vpop.f32.mrb[0].mxu0
        %v1881 = vadd.f32 %v1844, %v1880
        %v1882 = vpop.f32.mrb[0].mxu0
        %v1883 = vpop.f32.mrb[0].mxu0
        %v1884 = vadd.f32 %v1844, %v1883
        %v1885 = vpop.f32.mrb[0].mxu0
        %1886 = vdwg.mxu0
        %v1887 = vpack.c.bf16 %v1772, %v1769
        %v1888 = vpack.c.bf16 %v1828, %v1825
        %v1890 = vsel %vm952, %v1887, 0
        %v1893 = vsel %vm952, %v1888, 0
        %1895 = vmatprep.subr.bf16.mxu0 0
        %1896 = vmatpush1.bf16.xpose.msra.mxu0 %v1893
        %1897 = vmatprep.subr.bf16.mxu0 0
        %1898 = vmatpush1.bf16.xpose.msra.mxu0 0
        %1899 = vmatprep.subr.bf16.mxu0 0
        %1900 = vmatpush1.bf16.xpose.msra.mxu0 0
        %1901 = vmatprep.subr.bf16.mxu0 0
        %1902 = vmatpush1.bf16.xpose.msra.mxu0 0
        %1903 = vmatprep.subr.bf16.mxu0 0
        %1904 = vmatpush1.bf16.xpose.msra.mxu0 0
        %1905 = vmatprep.subr.bf16.mxu0 0
        %1906 = vmatpush1.bf16.xpose.msra.mxu0 0
        %1907 = vmatprep.subr.bf16.mxu0 0
        %1908 = vmatpush1.bf16.xpose.msra.mxu0 0
        %1909 = vmatprep.subr.bf16.mxu0 0
        %1910 = vmatpush1.bf16.xpose.msra.mxu0 0
        %1911 = vmatprep.subr.bf16.mxu0 0
        %1912 = vmatpush1.bf16.xpose.msra.mxu0 0
        %1913 = vmatprep.subr.bf16.mxu0 0
        %1914 = vmatpush1.bf16.xpose.msra.mxu0 0
        %1915 = vmatprep.subr.bf16.mxu0 0
        %1916 = vmatpush1.bf16.xpose.msra.mxu0 0
        %1917 = vmatprep.subr.bf16.mxu0 0
        %1918 = vmatpush1.bf16.xpose.msra.mxu0 0
        %1919 = vmatprep.subr.bf16.mxu0 0
        %1920 = vmatpush1.bf16.xpose.msra.mxu0 0
        %1921 = vmatprep.subr.bf16.mxu0 0
        %1922 = vmatpush1.bf16.xpose.msra.mxu0 0
        %1923 = vmatprep.subr.bf16.mxu0 0
        %1924 = vmatpush1.bf16.xpose.msra.mxu0 0
        %1925 = vmatprep.subr.bf16.mxu0 0
        %1926 = vmatpush1.bf16.xpose.msra.mxu0 0
        %1927 = vmatprep.mubr.bf16.mxu0 0
        %1928 = vmatmul.mubr.bf16.gmra.mrb[0].mxu0 %v1890
        %v1929 = vpop.f32.mrb[0].mxu0
        %v1930 = vadd.f32 0.0, %v1929
        %v1931 = vpop.f32.mrb[0].mxu0
        %v1932 = vpop.f32.mrb[0].mxu0
        %v1933 = vadd.f32 0.0, %v1932
        %v1934 = vpop.f32.mrb[0].mxu0
        %1935 = vdwg.mxu0
        %v1936 = vmul.f32 %v1930, 0.25
        %v1937 = vmul.f32 %v1933, 0.25
        %v1938 = vadd.f32 %v1936, %v1006
        %v1939 = vadd.f32 %v1937, %v1006
        %v1940 = vsel %vm1010, %v1938, -inf
        %1941 = vmax.xlane.f32.xlu0 %v1940
        %v1942 = vpop.xlane.xlu0 %1941
        %v1943 = vsel %vm1014, %v1939, -inf
        %1944 = vmax.xlane.f32.xlu0 %v1943
        %v1945 = vpop.xlane.xlu0 %1944
        %v1946 = vsub.f32 %v1938, %v1942
        %v1947 = vsub.f32 %v1939, %v1945
        %v1948 = vmul.f32 %v1946, 1.442695
        %v1949 = vpow.pop %v1948
        %v1950 = vmul.f32 %v1947, 1.442695
        %v1951 = vpow.pop %v1950
        %v1952 = vsel %vm1010, %v1949, 0.0
        %1953 = vadd.xlane.f32.xlu0 %v1952
        %v1954 = vpop.xlane.xlu0 %1953
        %v1955 = vsel %vm1014, %v1951, 0.0
        %1956 = vadd.xlane.f32.xlu0 %v1955
        %v1957 = vpop.xlane.xlu0 %1956
        %v1958 = vrcp.pop %v1954
        %v1959 = vrcp.pop %v1957
        %v1960 = vmul.f32 %v1949, %v1958
        %v1961 = vmul.f32 %v1951, %v1959
        %v1962 = vpack.c.bf16 %v1961, %v1960
        %v1963 = vpack.c.bf16 %v1884, %v1881
        %v1965 = vsel %vm1010, %v1962, 0
        %v1968 = vsel %vm1039, %v1963, 0
        %1970 = vmatprep.subr.bf16.mxu0 0
        %1971 = vmatpush1.bf16.msra.mxu0 %v1968
        %1972 = vmatprep.subr.bf16.mxu0 0
        %1973 = vmatpush1.bf16.msra.mxu0 0
        %1974 = vmatprep.subr.bf16.mxu0 0
        %1975 = vmatpush1.bf16.msra.mxu0 0
        %1976 = vmatprep.subr.bf16.mxu0 0
        %1977 = vmatpush1.bf16.msra.mxu0 0
        %1978 = vmatprep.subr.bf16.mxu0 0
        %1979 = vmatpush1.bf16.msra.mxu0 0
        %1980 = vmatprep.subr.bf16.mxu0 0
        %1981 = vmatpush1.bf16.msra.mxu0 0
        %1982 = vmatprep.subr.bf16.mxu0 0
        %1983 = vmatpush1.bf16.msra.mxu0 0
        %1984 = vmatprep.subr.bf16.mxu0 0
        %1985 = vmatpush1.bf16.msra.mxu0 0
        %1986 = vmatprep.subr.bf16.mxu0 0
        %1987 = vmatpush1.bf16.msra.mxu0 0
        %1988 = vmatprep.subr.bf16.mxu0 0
        %1989 = vmatpush1.bf16.msra.mxu0 0
        %1990 = vmatprep.subr.bf16.mxu0 0
        %1991 = vmatpush1.bf16.msra.mxu0 0
        %1992 = vmatprep.subr.bf16.mxu0 0
        %1993 = vmatpush1.bf16.msra.mxu0 0
        %1994 = vmatprep.subr.bf16.mxu0 0
        %1995 = vmatpush1.bf16.msra.mxu0 0
        %1996 = vmatprep.subr.bf16.mxu0 0
        %1997 = vmatpush1.bf16.msra.mxu0 0
        %1998 = vmatprep.subr.bf16.mxu0 0
        %1999 = vmatpush1.bf16.msra.mxu0 0
        %2000 = vmatprep.subr.bf16.mxu0 0
        %2001 = vmatpush1.bf16.msra.mxu0 0
        %2002 = vmatprep.mubr.bf16.mxu0 0
        %2003 = vmatmul.mubr.bf16.gmra.mrb[0].mxu0 %v1965
        %v2004 = vpop.f32.mrb[0].mxu0
        %v2005 = vadd.f32 0.0, %v2004
        %v2006 = vpop.f32.mrb[0].mxu0
        %v2007 = vpop.f32.mrb[0].mxu0
        %v2008 = vadd.f32 0.0, %v2007
        %v2009 = vpop.f32.mrb[0].mxu0
        %2010 = vdwg.mxu0
        %s2011 = scalar_lea.vmem %s10, 32
        %v2012 = vld [vmem:[%s2011] sm:$0xff]
        %v2013 = vld [vmem:[%s2011 + $0x8] sm:$0xff]
        %v2014 = vpack.c.bf16 %v2008, %v2005
        %v2015 = vpack.c.bf16 %v2013, %v2012
        %s2016 = scalar_lea.vmem %s4, 96
        %v2017 = vld [vmem:[%s2016] sm:$0xff]
        %v2018 = vld [vmem:[%s2016 + $0x8] sm:$0xff]
        %v2019 = vld [vmem:[%s2016 + $0x10] sm:$0xff]
        %v2020 = vld [vmem:[%s2016 + $0x18] sm:$0xff]
        %v2021 = vpack.c.bf16 %v2018, %v2017
        %v2022 = vpack.c.bf16 %v2020, %v2019
        %s2023 = scalar_lea.vmem %s5, 3
        %v2024 = vld [vmem:[%s2023] sm:$0x1]
        %v2026 = vlaneseq
        %v2027 = vshrl.u32 %v2026, 7
        %v2028 = vsub.s32 0, %v2027
        %v2029 = vrot.slane %v2024, %v2028
        %2031 = vmatprep.subr.bf16.mxu0 0
        %2032 = vmatpush1.bf16.msra.mxu0 %v2021
        %2033 = vmatprep.subr.bf16.mxu0 0
        %2034 = vmatpush1.bf16.msra.mxu0 %v2022
        %2035 = vmatprep.subr.bf16.mxu0 0
        %2036 = vmatpush1.bf16.msra.mxu0 0
        %2037 = vmatprep.subr.bf16.mxu0 0
        %2038 = vmatpush1.bf16.msra.mxu0 0
        %2039 = vmatprep.subr.bf16.mxu0 0
        %2040 = vmatpush1.bf16.msra.mxu0 0
        %2041 = vmatprep.subr.bf16.mxu0 0
        %2042 = vmatpush1.bf16.msra.mxu0 0
        %2043 = vmatprep.subr.bf16.mxu0 0
        %2044 = vmatpush1.bf16.msra.mxu0 0
        %2045 = vmatprep.subr.bf16.mxu0 0
        %2046 = vmatpush1.bf16.msra.mxu0 0
        %2047 = vmatprep.subr.bf16.mxu0 0
        %2048 = vmatpush1.bf16.msra.mxu0 0
        %2049 = vmatprep.subr.bf16.mxu0 0
        %2050 = vmatpush1.bf16.msra.mxu0 0
        %2051 = vmatprep.subr.bf16.mxu0 0
        %2052 = vmatpush1.bf16.msra.mxu0 0
        %2053 = vmatprep.subr.bf16.mxu0 0
        %2054 = vmatpush1.bf16.msra.mxu0 0
        %2055 = vmatprep.subr.bf16.mxu0 0
        %2056 = vmatpush1.bf16.msra.mxu0 0
        %2057 = vmatprep.subr.bf16.mxu0 0
        %2058 = vmatpush1.bf16.msra.mxu0 0
        %2059 = vmatprep.subr.bf16.mxu0 0
        %2060 = vmatpush1.bf16.msra.mxu0 0
        %2061 = vmatprep.subr.bf16.mxu0 0
        %2062 = vmatpush1.bf16.msra.mxu0 0
        %2063 = vmatprep.mubr.bf16.mxu0 0
        %2064 = vmatmul.mubr.bf16.gmra.mrb[0].mxu0 %v1732
        %v2065 = vpop.f32.mrb[0].mxu0
        %v2066 = vadd.f32 %v2029, %v2065
        %v2067 = vpop.f32.mrb[0].mxu0
        %v2068 = vpop.f32.mrb[0].mxu0
        %v2069 = vadd.f32 %v2029, %v2068
        %v2070 = vpop.f32.mrb[0].mxu0
        %2071 = vdwg.mxu0
        %s2072 = scalar_lea.vmem %s6, 96
        %v2073 = vld [vmem:[%s2072] sm:$0xff]
        %v2074 = vld [vmem:[%s2072 + $0x8] sm:$0xff]
        %v2075 = vld [vmem:[%s2072 + $0x10] sm:$0xff]
        %v2076 = vld [vmem:[%s2072 + $0x18] sm:$0xff]
        %v2077 = vpack.c.bf16 %v2074, %v2073
        %v2078 = vpack.c.bf16 %v2076, %v2075
        %s2079 = scalar_lea.vmem %s7, 3
        %v2080 = vld [vmem:[%s2079] sm:$0x1]
        %v2082 = vlaneseq
        %v2083 = vshrl.u32 %v2082, 7
        %v2084 = vsub.s32 0, %v2083
        %v2085 = vrot.slane %v2080, %v2084
        %2087 = vmatprep.subr.bf16.mxu0 0
        %2088 = vmatpush1.bf16.msra.mxu0 %v2077
        %2089 = vmatprep.subr.bf16.mxu0 0
        %2090 = vmatpush1.bf16.msra.mxu0 %v2078
        %2091 = vmatprep.subr.bf16.mxu0 0
        %2092 = vmatpush1.bf16.msra.mxu0 0
        %2093 = vmatprep.subr.bf16.mxu0 0
        %2094 = vmatpush1.bf16.msra.mxu0 0
        %2095 = vmatprep.subr.bf16.mxu0 0
        %2096 = vmatpush1.bf16.msra.mxu0 0
        %2097 = vmatprep.subr.bf16.mxu0 0
        %2098 = vmatpush1.bf16.msra.mxu0 0
        %2099 = vmatprep.subr.bf16.mxu0 0
        %2100 = vmatpush1.bf16.msra.mxu0 0
        %2101 = vmatprep.subr.bf16.mxu0 0
        %2102 = vmatpush1.bf16.msra.mxu0 0
        %2103 = vmatprep.subr.bf16.mxu0 0
        %2104 = vmatpush1.bf16.msra.mxu0 0
        %2105 = vmatprep.subr.bf16.mxu0 0
        %2106 = vmatpush1.bf16.msra.mxu0 0
        %2107 = vmatprep.subr.bf16.mxu0 0
        %2108 = vmatpush1.bf16.msra.mxu0 0
        %2109 = vmatprep.subr.bf16.mxu0 0
        %2110 = vmatpush1.bf16.msra.mxu0 0
        %2111 = vmatprep.subr.bf16.mxu0 0
        %2112 = vmatpush1.bf16.msra.mxu0 0
        %2113 = vmatprep.subr.bf16.mxu0 0
        %2114 = vmatpush1.bf16.msra.mxu0 0
        %2115 = vmatprep.subr.bf16.mxu0 0
        %2116 = vmatpush1.bf16.msra.mxu0 0
        %2117 = vmatprep.subr.bf16.mxu0 0
        %2118 = vmatpush1.bf16.msra.mxu0 0
        %2119 = vmatprep.mubr.bf16.mxu0 0
        %2120 = vmatmul.mubr.bf16.gmra.mrb[0].mxu0 %v1732
        %v2121 = vpop.f32.mrb[0].mxu0
        %v2122 = vadd.f32 %v2085, %v2121
        %v2123 = vpop.f32.mrb[0].mxu0
        %v2124 = vpop.f32.mrb[0].mxu0
        %v2125 = vadd.f32 %v2085, %v2124
        %v2126 = vpop.f32.mrb[0].mxu0
        %2127 = vdwg.mxu0
        %s2128 = scalar_lea.vmem %s8, 96
        %v2129 = vld [vmem:[%s2128] sm:$0xff]
        %v2130 = vld [vmem:[%s2128 + $0x8] sm:$0xff]
        %v2131 = vld [vmem:[%s2128 + $0x10] sm:$0xff]
        %v2132 = vld [vmem:[%s2128 + $0x18] sm:$0xff]
        %v2133 = vpack.c.bf16 %v2130, %v2129
        %v2134 = vpack.c.bf16 %v2132, %v2131
        %s2135 = scalar_lea.vmem %s9, 3
        %v2136 = vld [vmem:[%s2135] sm:$0x1]
        %v2138 = vlaneseq
        %v2139 = vshrl.u32 %v2138, 7
        %v2140 = vsub.s32 0, %v2139
        %v2141 = vrot.slane %v2136, %v2140
        %2143 = vmatprep.subr.bf16.mxu0 0
        %2144 = vmatpush1.bf16.msra.mxu0 %v2133
        %2145 = vmatprep.subr.bf16.mxu0 0
        %2146 = vmatpush1.bf16.msra.mxu0 %v2134
        %2147 = vmatprep.subr.bf16.mxu0 0
        %2148 = vmatpush1.bf16.msra.mxu0 0
        %2149 = vmatprep.subr.bf16.mxu0 0
        %2150 = vmatpush1.bf16.msra.mxu0 0
        %2151 = vmatprep.subr.bf16.mxu0 0
        %2152 = vmatpush1.bf16.msra.mxu0 0
        %2153 = vmatprep.subr.bf16.mxu0 0
        %2154 = vmatpush1.bf16.msra.mxu0 0
        %2155 = vmatprep.subr.bf16.mxu0 0
        %2156 = vmatpush1.bf16.msra.mxu0 0
        %2157 = vmatprep.subr.bf16.mxu0 0
        %2158 = vmatpush1.bf16.msra.mxu0 0
        %2159 = vmatprep.subr.bf16.mxu0 0
        %2160 = vmatpush1.bf16.msra.mxu0 0
        %2161 = vmatprep.subr.bf16.mxu0 0
        %2162 = vmatpush1.bf16.msra.mxu0 0
        %2163 = vmatprep.subr.bf16.mxu0 0
        %2164 = vmatpush1.bf16.msra.mxu0 0
        %2165 = vmatprep.subr.bf16.mxu0 0
        %2166 = vmatpush1.bf16.msra.mxu0 0
        %2167 = vmatprep.subr.bf16.mxu0 0
        %2168 = vmatpush1.bf16.msra.mxu0 0
        %2169 = vmatprep.subr.bf16.mxu0 0
        %2170 = vmatpush1.bf16.msra.mxu0 0
        %2171 = vmatprep.subr.bf16.mxu0 0
        %2172 = vmatpush1.bf16.msra.mxu0 0
        %2173 = vmatprep.subr.bf16.mxu0 0
        %2174 = vmatpush1.bf16.msra.mxu0 0
        %2175 = vmatprep.mubr.bf16.mxu0 0
        %2176 = vmatmul.mubr.bf16.gmra.mrb[0].mxu0 %v1732
        %v2177 = vpop.f32.mrb[0].mxu0
        %v2178 = vadd.f32 %v2141, %v2177
        %v2179 = vpop.f32.mrb[0].mxu0
        %v2180 = vpop.f32.mrb[0].mxu0
        %v2181 = vadd.f32 %v2141, %v2180
        %v2182 = vpop.f32.mrb[0].mxu0
        %2183 = vdwg.mxu0
        %v2184 = vpack.c.bf16 %v2069, %v2066
        %v2185 = vpack.c.bf16 %v2125, %v2122
        %v2187 = vsel %vm952, %v2184, 0
        %v2190 = vsel %vm952, %v2185, 0
        %2192 = vmatprep.subr.bf16.mxu0 0
        %2193 = vmatpush1.bf16.xpose.msra.mxu0 %v2190
        %2194 = vmatprep.subr.bf16.mxu0 0
        %2195 = vmatpush1.bf16.xpose.msra.mxu0 0
        %2196 = vmatprep.subr.bf16.mxu0 0
        %2197 = vmatpush1.bf16.xpose.msra.mxu0 0
        %2198 = vmatprep.subr.bf16.mxu0 0
        %2199 = vmatpush1.bf16.xpose.msra.mxu0 0
        %2200 = vmatprep.subr.bf16.mxu0 0
        %2201 = vmatpush1.bf16.xpose.msra.mxu0 0
        %2202 = vmatprep.subr.bf16.mxu0 0
        %2203 = vmatpush1.bf16.xpose.msra.mxu0 0
        %2204 = vmatprep.subr.bf16.mxu0 0
        %2205 = vmatpush1.bf16.xpose.msra.mxu0 0
        %2206 = vmatprep.subr.bf16.mxu0 0
        %2207 = vmatpush1.bf16.xpose.msra.mxu0 0
        %2208 = vmatprep.subr.bf16.mxu0 0
        %2209 = vmatpush1.bf16.xpose.msra.mxu0 0
        %2210 = vmatprep.subr.bf16.mxu0 0
        %2211 = vmatpush1.bf16.xpose.msra.mxu0 0
        %2212 = vmatprep.subr.bf16.mxu0 0
        %2213 = vmatpush1.bf16.xpose.msra.mxu0 0
        %2214 = vmatprep.subr.bf16.mxu0 0
        %2215 = vmatpush1.bf16.xpose.msra.mxu0 0
        %2216 = vmatprep.subr.bf16.mxu0 0
        %2217 = vmatpush1.bf16.xpose.msra.mxu0 0
        %2218 = vmatprep.subr.bf16.mxu0 0
        %2219 = vmatpush1.bf16.xpose.msra.mxu0 0
        %2220 = vmatprep.subr.bf16.mxu0 0
        %2221 = vmatpush1.bf16.xpose.msra.mxu0 0
        %2222 = vmatprep.subr.bf16.mxu0 0
        %2223 = vmatpush1.bf16.xpose.msra.mxu0 0
        %2224 = vmatprep.mubr.bf16.mxu0 0
        %2225 = vmatmul.mubr.bf16.gmra.mrb[0].mxu0 %v2187
        %v2226 = vpop.f32.mrb[0].mxu0
        %v2227 = vadd.f32 0.0, %v2226
        %v2228 = vpop.f32.mrb[0].mxu0
        %v2229 = vpop.f32.mrb[0].mxu0
        %v2230 = vadd.f32 0.0, %v2229
        %v2231 = vpop.f32.mrb[0].mxu0
        %2232 = vdwg.mxu0
        %v2233 = vmul.f32 %v2227, 0.25
        %v2234 = vmul.f32 %v2230, 0.25
        %v2235 = vadd.f32 %v2233, %v1006
        %v2236 = vadd.f32 %v2234, %v1006
        %v2237 = vsel %vm1010, %v2235, -inf
        %2238 = vmax.xlane.f32.xlu0 %v2237
        %v2239 = vpop.xlane.xlu0 %2238
        %v2240 = vsel %vm1014, %v2236, -inf
        %2241 = vmax.xlane.f32.xlu0 %v2240
        %v2242 = vpop.xlane.xlu0 %2241
        %v2243 = vsub.f32 %v2235, %v2239
        %v2244 = vsub.f32 %v2236, %v2242
        %v2245 = vmul.f32 %v2243, 1.442695
        %v2246 = vpow.pop %v2245
        %v2247 = vmul.f32 %v2244, 1.442695
        %v2248 = vpow.pop %v2247
        %v2249 = vsel %vm1010, %v2246, 0.0
        %2250 = vadd.xlane.f32.xlu0 %v2249
        %v2251 = vpop.xlane.xlu0 %2250
        %v2252 = vsel %vm1014, %v2248, 0.0
        %2253 = vadd.xlane.f32.xlu0 %v2252
        %v2254 = vpop.xlane.xlu0 %2253
        %v2255 = vrcp.pop %v2251
        %v2256 = vrcp.pop %v2254
        %v2257 = vmul.f32 %v2246, %v2255
        %v2258 = vmul.f32 %v2248, %v2256
        %v2259 = vpack.c.bf16 %v2258, %v2257
        %v2260 = vpack.c.bf16 %v2181, %v2178
        %v2262 = vsel %vm1010, %v2259, 0
        %v2265 = vsel %vm1039, %v2260, 0
        %2267 = vmatprep.subr.bf16.mxu0 0
        %2268 = vmatpush1.bf16.msra.mxu0 %v2265
        %2269 = vmatprep.subr.bf16.mxu0 0
        %2270 = vmatpush1.bf16.msra.mxu0 0
        %2271 = vmatprep.subr.bf16.mxu0 0
        %2272 = vmatpush1.bf16.msra.mxu0 0
        %2273 = vmatprep.subr.bf16.mxu0 0
        %2274 = vmatpush1.bf16.msra.mxu0 0
        %2275 = vmatprep.subr.bf16.mxu0 0
        %2276 = vmatpush1.bf16.msra.mxu0 0
        %2277 = vmatprep.subr.bf16.mxu0 0
        %2278 = vmatpush1.bf16.msra.mxu0 0
        %2279 = vmatprep.subr.bf16.mxu0 0
        %2280 = vmatpush1.bf16.msra.mxu0 0
        %2281 = vmatprep.subr.bf16.mxu0 0
        %2282 = vmatpush1.bf16.msra.mxu0 0
        %2283 = vmatprep.subr.bf16.mxu0 0
        %2284 = vmatpush1.bf16.msra.mxu0 0
        %2285 = vmatprep.subr.bf16.mxu0 0
        %2286 = vmatpush1.bf16.msra.mxu0 0
        %2287 = vmatprep.subr.bf16.mxu0 0
        %2288 = vmatpush1.bf16.msra.mxu0 0
        %2289 = vmatprep.subr.bf16.mxu0 0
        %2290 = vmatpush1.bf16.msra.mxu0 0
        %2291 = vmatprep.subr.bf16.mxu0 0
        %2292 = vmatpush1.bf16.msra.mxu0 0
        %2293 = vmatprep.subr.bf16.mxu0 0
        %2294 = vmatpush1.bf16.msra.mxu0 0
        %2295 = vmatprep.subr.bf16.mxu0 0
        %2296 = vmatpush1.bf16.msra.mxu0 0
        %2297 = vmatprep.subr.bf16.mxu0 0
        %2298 = vmatpush1.bf16.msra.mxu0 0
        %2299 = vmatprep.mubr.bf16.mxu0 0
        %2300 = vmatmul.mubr.bf16.gmra.mrb[0].mxu0 %v2262
        %v2301 = vpop.f32.mrb[0].mxu0
        %v2302 = vadd.f32 0.0, %v2301
        %v2303 = vpop.f32.mrb[0].mxu0
        %v2304 = vpop.f32.mrb[0].mxu0
        %v2305 = vadd.f32 0.0, %v2304
        %v2306 = vpop.f32.mrb[0].mxu0
        %2307 = vdwg.mxu0
        %s2308 = scalar_lea.vmem %s10, 48
        %v2309 = vld [vmem:[%s2308] sm:$0xff]
        %v2310 = vld [vmem:[%s2308 + $0x8] sm:$0xff]
        %v2311 = vpack.c.bf16 %v2305, %v2302
        %v2312 = vpack.c.bf16 %v2310, %v2309
        %v2314 = vsel %vm952, %v2311, 0
        %2316 = vmatprep.subr.bf16.mxu0 0
        %2317 = vmatpush1.bf16.msra.mxu0 %v2312
        %2318 = vmatprep.subr.bf16.mxu0 0
        %2319 = vmatpush1.bf16.msra.mxu0 0
        %2320 = vmatprep.subr.bf16.mxu0 0
        %2321 = vmatpush1.bf16.msra.mxu0 0
        %2322 = vmatprep.subr.bf16.mxu0 0
        %2323 = vmatpush1.bf16.msra.mxu0 0
        %2324 = vmatprep.subr.bf16.mxu0 0
        %2325 = vmatpush1.bf16.msra.mxu0 0
        %2326 = vmatprep.subr.bf16.mxu0 0
        %2327 = vmatpush1.bf16.msra.mxu0 0
        %2328 = vmatprep.subr.bf16.mxu0 0
        %2329 = vmatpush1.bf16.msra.mxu0 0
        %2330 = vmatprep.subr.bf16.mxu0 0
        %2331 = vmatpush1.bf16.msra.mxu0 0
        %2332 = vmatprep.subr.bf16.mxu0 0
        %2333 = vmatpush1.bf16.msra.mxu0 0
        %2334 = vmatprep.subr.bf16.mxu0 0
        %2335 = vmatpush1.bf16.msra.mxu0 0
        %2336 = vmatprep.subr.bf16.mxu0 0
        %2337 = vmatpush1.bf16.msra.mxu0 0
        %2338 = vmatprep.subr.bf16.mxu0 0
        %2339 = vmatpush1.bf16.msra.mxu0 0
        %2340 = vmatprep.subr.bf16.mxu0 0
        %2341 = vmatpush1.bf16.msra.mxu0 0
        %2342 = vmatprep.subr.bf16.mxu0 0
        %2343 = vmatpush1.bf16.msra.mxu0 0
        %2344 = vmatprep.subr.bf16.mxu0 0
        %2345 = vmatpush1.bf16.msra.mxu0 0
        %2346 = vmatprep.subr.bf16.mxu0 0
        %2347 = vmatpush1.bf16.msra.mxu0 0
        %2348 = vmatprep.mubr.bf16.mxu0 0
        %2349 = vmatmul.mubr.bf16.gmra.mrb[0].mxu0 %v2314
        %v2350 = vpop.f32.mrb[0].mxu0
        %v2351 = vadd.f32 0.0, %v2350
        %v2352 = vpop.f32.mrb[0].mxu0
        %v2353 = vpop.f32.mrb[0].mxu0
        %v2354 = vadd.f32 0.0, %v2353
        %v2355 = vpop.f32.mrb[0].mxu0
        %2356 = vdwg.mxu0
        %v2358 = vsel %vm952, %v2014, 0
        %2360 = vmatprep.subr.bf16.mxu0 0
        %2361 = vmatpush1.bf16.msra.mxu0 %v2015
        %2362 = vmatprep.subr.bf16.mxu0 0
        %2363 = vmatpush1.bf16.msra.mxu0 0
        %2364 = vmatprep.subr.bf16.mxu0 0
        %2365 = vmatpush1.bf16.msra.mxu0 0
        %2366 = vmatprep.subr.bf16.mxu0 0
        %2367 = vmatpush1.bf16.msra.mxu0 0
        %2368 = vmatprep.subr.bf16.mxu0 0
        %2369 = vmatpush1.bf16.msra.mxu0 0
        %2370 = vmatprep.subr.bf16.mxu0 0
        %2371 = vmatpush1.bf16.msra.mxu0 0
        %2372 = vmatprep.subr.bf16.mxu0 0
        %2373 = vmatpush1.bf16.msra.mxu0 0
        %2374 = vmatprep.subr.bf16.mxu0 0
        %2375 = vmatpush1.bf16.msra.mxu0 0
        %2376 = vmatprep.subr.bf16.mxu0 0
        %2377 = vmatpush1.bf16.msra.mxu0 0
        %2378 = vmatprep.subr.bf16.mxu0 0
        %2379 = vmatpush1.bf16.msra.mxu0 0
        %2380 = vmatprep.subr.bf16.mxu0 0
        %2381 = vmatpush1.bf16.msra.mxu0 0
        %2382 = vmatprep.subr.bf16.mxu0 0
        %2383 = vmatpush1.bf16.msra.mxu0 0
        %2384 = vmatprep.subr.bf16.mxu0 0
        %2385 = vmatpush1.bf16.msra.mxu0 0
        %2386 = vmatprep.subr.bf16.mxu0 0
        %2387 = vmatpush1.bf16.msra.mxu0 0
        %2388 = vmatprep.subr.bf16.mxu0 0
        %2389 = vmatpush1.bf16.msra.mxu0 0
        %2390 = vmatprep.subr.bf16.mxu0 0
        %2391 = vmatpush1.bf16.msra.mxu0 0
        %2392 = vmatprep.mubr.bf16.mxu0 0
        %2393 = vmatmul.mubr.bf16.gmra.mrb[0].mxu0 %v2358
        %v2394 = vpop.f32.mrb[0].mxu0
        %v2395 = vadd.f32 %v2351, %v2394
        %v2396 = vpop.f32.mrb[0].mxu0
        %v2397 = vpop.f32.mrb[0].mxu0
        %v2398 = vadd.f32 %v2354, %v2397
        %v2399 = vpop.f32.mrb[0].mxu0
        %2400 = vdwg.mxu0
        %s2401 = scalar_lea.vmem %s11, 1
        %v2402 = vld [vmem:[%s2401] sm:$0x1]
        %v2404 = vlaneseq
        %v2405 = vshrl.u32 %v2404, 7
        %v2406 = vsub.s32 0, %v2405
        %v2407 = vrot.slane %v2402, %v2406
        %v2409 = vadd.f32 %v2395, %v2407
        %v2410 = vadd.f32 %v2398, %v2407
        %v2411 = vadd.f32 %v1713, %v2409
        %v2412 = vadd.f32 %v1714, %v2410
        %s2413 = scalar_lea.vmem %s12, 1
        %v2414 = vld [vmem:[%s2413] sm:$0x1]
        %s2415 = scalar_lea.vmem %s13, 1
        %v2416 = vld [vmem:[%s2415] sm:$0x1]
        %v2417 = vsel %vm738, %v2411, 0.0
        %2418 = vadd.xlane.f32.xlu0 %v2417
        %v2419 = vpop.xlane.xlu0 %2418
        %v2420 = vsel %vm742, %v2412, 0.0
        %2421 = vadd.xlane.f32.xlu0 %v2420
        %v2422 = vpop.xlane.xlu0 %2421
        %v2423 = vmul.f32 %v2419, %v746
        %v2424 = vmul.f32 %v2422, %v746
        %v2425 = vsub.f32 %v2411, %v2423
        %v2426 = vsub.f32 %v2412, %v2424
        %v2427 = vmul.f32 %v2425, %v2425
        %v2428 = vmul.f32 %v2426, %v2426
        %v2429 = vsel %vm738, %v2427, 0.0
        %2430 = vadd.xlane.f32.xlu0 %v2429
        %v2431 = vpop.xlane.xlu0 %2430
        %v2432 = vsel %vm742, %v2428, 0.0
        %2433 = vadd.xlane.f32.xlu0 %v2432
        %v2434 = vpop.xlane.xlu0 %2433
        %v2435 = vmul.f32 %v2431, %v746
        %v2436 = vmul.f32 %v2434, %v746
        %v2437 = vadd.f32 %v2435, 1e-05
        %v2438 = vadd.f32 %v2436, 1e-05
        %v2439 = vrsqrt.pop %v2437
        %v2440 = vrsqrt.pop %v2438
        %v2441 = vmul.f32 %v2425, %v2439
        %v2442 = vmul.f32 %v2426, %v2440
        %v2444 = vlaneseq
        %v2445 = vshrl.u32 %v2444, 7
        %v2446 = vsub.s32 0, %v2445
        %v2447 = vrot.slane %v2414, %v2446
        %v2449 = vmul.f32 %v2441, %v2447
        %v2450 = vmul.f32 %v2442, %v2447
        %v2452 = vlaneseq
        %v2453 = vshrl.u32 %v2452, 7
        %v2454 = vsub.s32 0, %v2453
        %v2455 = vrot.slane %v2416, %v2454
        %v2457 = vadd.f32 %v2449, %v2455
        %v2458 = vadd.f32 %v2450, %v2455
        %s2459 = scalar_lea.vmem %s14, 32
        %v2460 = vld [vmem:[%s2459] sm:$0xff]
        %v2461 = vld [vmem:[%s2459 + $0x8] sm:$0xff]
        %v2462 = vld [vmem:[%s2459 + $0x10] sm:$0xff]
        %v2463 = vld [vmem:[%s2459 + $0x18] sm:$0xff]
        %v2464 = vpack.c.bf16 %v2458, %v2457
        %v2465 = vpack.c.bf16 %v2461, %v2460
        %v2466 = vpack.c.bf16 %v2463, %v2462
        %s2467 = scalar_lea.vmem %s15, 1
        %v2468 = vld [vmem:[%s2467] sm:$0x1]
        %v2470 = vlaneseq
        %v2471 = vshrl.u32 %v2470, 7
        %v2472 = vsub.s32 0, %v2471
        %v2473 = vrot.slane %v2468, %v2472
        %v2476 = vsel %vm738, %v2464, 0
        %2478 = vmatprep.subr.bf16.mxu0 0
        %2479 = vmatpush1.bf16.msra.mxu0 %v2465
        %2480 = vmatprep.subr.bf16.mxu0 0
        %2481 = vmatpush1.bf16.msra.mxu0 %v2466
        %2482 = vmatprep.subr.bf16.mxu0 0
        %2483 = vmatpush1.bf16.msra.mxu0 0
        %2484 = vmatprep.subr.bf16.mxu0 0
        %2485 = vmatpush1.bf16.msra.mxu0 0
        %2486 = vmatprep.subr.bf16.mxu0 0
        %2487 = vmatpush1.bf16.msra.mxu0 0
        %2488 = vmatprep.subr.bf16.mxu0 0
        %2489 = vmatpush1.bf16.msra.mxu0 0
        %2490 = vmatprep.subr.bf16.mxu0 0
        %2491 = vmatpush1.bf16.msra.mxu0 0
        %2492 = vmatprep.subr.bf16.mxu0 0
        %2493 = vmatpush1.bf16.msra.mxu0 0
        %2494 = vmatprep.subr.bf16.mxu0 0
        %2495 = vmatpush1.bf16.msra.mxu0 0
        %2496 = vmatprep.subr.bf16.mxu0 0
        %2497 = vmatpush1.bf16.msra.mxu0 0
        %2498 = vmatprep.subr.bf16.mxu0 0
        %2499 = vmatpush1.bf16.msra.mxu0 0
        %2500 = vmatprep.subr.bf16.mxu0 0
        %2501 = vmatpush1.bf16.msra.mxu0 0
        %2502 = vmatprep.subr.bf16.mxu0 0
        %2503 = vmatpush1.bf16.msra.mxu0 0
        %2504 = vmatprep.subr.bf16.mxu0 0
        %2505 = vmatpush1.bf16.msra.mxu0 0
        %2506 = vmatprep.subr.bf16.mxu0 0
        %2507 = vmatpush1.bf16.msra.mxu0 0
        %2508 = vmatprep.subr.bf16.mxu0 0
        %2509 = vmatpush1.bf16.msra.mxu0 0
        %2510 = vmatprep.mubr.bf16.mxu0 0
        %2511 = vmatmul.mubr.bf16.gmra.mrb[0].mxu0 %v2476
        %v2512 = vpop.f32.mrb[0].mxu0
        %v2513 = vadd.f32 %v2473, %v2512
        %v2514 = vpop.f32.mrb[0].mxu0
        %v2515 = vpop.f32.mrb[0].mxu0
        %v2516 = vadd.f32 %v2473, %v2515
        %v2517 = vpop.f32.mrb[0].mxu0
        %2518 = vdwg.mxu0
        %v2519 = vmul.f32 %v2513, %v2513
        %v2520 = vmul.f32 %v2516, %v2516
        %v2521 = vmul.f32 %v2513, %v2519
        %v2522 = vmul.f32 %v2516, %v2520
        %v2523 = vmul.f32 %v2521, 0.044715
        %v2524 = vmul.f32 %v2522, 0.044715
        %v2525 = vadd.f32 %v2513, %v2523
        %v2526 = vadd.f32 %v2516, %v2524
        %v2527 = vmul.f32 %v2525, 0.7978846
        %v2528 = vmul.f32 %v2526, 0.7978846
        %v2529 = vtanh.pop %v2527
        %v2530 = vtanh.pop %v2528
        %v2531 = vadd.f32 %v2529, 1.0
        %v2532 = vadd.f32 %v2530, 1.0
        %v2533 = vmul.f32 %v2531, 0.5
        %v2534 = vmul.f32 %v2532, 0.5
        %v2535 = vmul.f32 %v2513, %v2533
        %v2536 = vmul.f32 %v2516, %v2534
        %s2537 = scalar_lea.vmem %s16, 64
        %v2538 = vld [vmem:[%s2537] sm:$0xff]
        %v2539 = vld [vmem:[%s2537 + $0x8] sm:$0xff]
        %v2540 = vld [vmem:[%s2537 + $0x10] sm:$0xff]
        %v2541 = vld [vmem:[%s2537 + $0x18] sm:$0xff]
        %v2542 = vld [vmem:[%s2537 + $0x20] sm:$0xff]
        %v2543 = vld [vmem:[%s2537 + $0x28] sm:$0xff]
        %v2544 = vld [vmem:[%s2537 + $0x30] sm:$0xff]
        %v2545 = vld [vmem:[%s2537 + $0x38] sm:$0xff]
        %v2546 = vpack.c.bf16 %v2536, %v2535
        %v2547 = vpack.c.bf16 %v2539, %v2538
        %v2548 = vpack.c.bf16 %v2541, %v2540
        %v2549 = vpack.c.bf16 %v2543, %v2542
        %v2550 = vpack.c.bf16 %v2545, %v2544
        %s2551 = scalar_lea.vmem %s17, 1
        %v2552 = vld [vmem:[%s2551] sm:$0x1]
        %v2554 = vlaneseq
        %v2555 = vshrl.u32 %v2554, 7
        %v2556 = vsub.s32 0, %v2555
        %v2557 = vrot.slane %v2552, %v2556
        %v2560 = vsel %vm1624, %v2546, 0
        %2562 = vmatprep.subr.bf16.mxu0 0
        %2563 = vmatpush1.bf16.msra.mxu0 %v2547
        %2564 = vmatprep.subr.bf16.mxu0 0
        %2565 = vmatpush1.bf16.msra.mxu0 %v2548
        %2566 = vmatprep.subr.bf16.mxu0 0
        %2567 = vmatpush1.bf16.msra.mxu0 %v2549
        %2568 = vmatprep.subr.bf16.mxu0 0
        %2569 = vmatpush1.bf16.msra.mxu0 %v2550
        %2570 = vmatprep.subr.bf16.mxu0 0
        %2571 = vmatpush1.bf16.msra.mxu0 0
        %2572 = vmatprep.subr.bf16.mxu0 0
        %2573 = vmatpush1.bf16.msra.mxu0 0
        %2574 = vmatprep.subr.bf16.mxu0 0
        %2575 = vmatpush1.bf16.msra.mxu0 0
        %2576 = vmatprep.subr.bf16.mxu0 0
        %2577 = vmatpush1.bf16.msra.mxu0 0
        %2578 = vmatprep.subr.bf16.mxu0 0
        %2579 = vmatpush1.bf16.msra.mxu0 0
        %2580 = vmatprep.subr.bf16.mxu0 0
        %2581 = vmatpush1.bf16.msra.mxu0 0
        %2582 = vmatprep.subr.bf16.mxu0 0
        %2583 = vmatpush1.bf16.msra.mxu0 0
        %2584 = vmatprep.subr.bf16.mxu0 0
        %2585 = vmatpush1.bf16.msra.mxu0 0
        %2586 = vmatprep.subr.bf16.mxu0 0
        %2587 = vmatpush1.bf16.msra.mxu0 0
        %2588 = vmatprep.subr.bf16.mxu0 0
        %2589 = vmatpush1.bf16.msra.mxu0 0
        %2590 = vmatprep.subr.bf16.mxu0 0
        %2591 = vmatpush1.bf16.msra.mxu0 0
        %2592 = vmatprep.subr.bf16.mxu0 0
        %2593 = vmatpush1.bf16.msra.mxu0 0
        %2594 = vmatprep.mubr.bf16.mxu0 0
        %2595 = vmatmul.mubr.bf16.gmra.mrb[0].mxu0 %v2560
        %v2596 = vpop.f32.mrb[0].mxu0
        %v2597 = vadd.f32 %v2557, %v2596
        %v2598 = vpop.f32.mrb[0].mxu0
        %v2599 = vpop.f32.mrb[0].mxu0
        %v2600 = vadd.f32 %v2557, %v2599
        %v2601 = vpop.f32.mrb[0].mxu0
        %2602 = vdwg.mxu0
        %v2603 = vadd.f32 %v2457, %v2597
        %v2604 = vadd.f32 %v2458, %v2600
        %s2605 = scalar_lea.vmem %s18, 1
        %v2606 = vld [vmem:[%s2605] sm:$0x1]
        %s2607 = scalar_lea.vmem %s19, 1
        %v2608 = vld [vmem:[%s2607] sm:$0x1]
        %v2609 = vsel %vm738, %v2603, 0.0
        %2610 = vadd.xlane.f32.xlu0 %v2609
        %v2611 = vpop.xlane.xlu0 %2610
        %v2612 = vsel %vm742, %v2604, 0.0
        %2613 = vadd.xlane.f32.xlu0 %v2612
        %v2614 = vpop.xlane.xlu0 %2613
        %v2615 = vmul.f32 %v2611, %v746
        %v2616 = vmul.f32 %v2614, %v746
        %v2617 = vsub.f32 %v2603, %v2615
        %v2618 = vsub.f32 %v2604, %v2616
        %v2619 = vmul.f32 %v2617, %v2617
        %v2620 = vmul.f32 %v2618, %v2618
        %v2621 = vsel %vm738, %v2619, 0.0
        %2622 = vadd.xlane.f32.xlu0 %v2621
        %v2623 = vpop.xlane.xlu0 %2622
        %v2624 = vsel %vm742, %v2620, 0.0
        %2625 = vadd.xlane.f32.xlu0 %v2624
        %v2626 = vpop.xlane.xlu0 %2625
        %v2627 = vmul.f32 %v2623, %v746
        %v2628 = vmul.f32 %v2626, %v746
        %v2629 = vadd.f32 %v2627, 1e-05
        %v2630 = vadd.f32 %v2628, 1e-05
        %v2631 = vrsqrt.pop %v2629
        %v2632 = vrsqrt.pop %v2630
        %v2633 = vmul.f32 %v2617, %v2631
        %v2634 = vmul.f32 %v2618, %v2632
        %v2636 = vlaneseq
        %v2637 = vshrl.u32 %v2636, 7
        %v2638 = vsub.s32 0, %v2637
        %v2639 = vrot.slane %v2606, %v2638
        %v2641 = vmul.f32 %v2633, %v2639
        %v2642 = vmul.f32 %v2634, %v2639
        %v2644 = vlaneseq
        %v2645 = vshrl.u32 %v2644, 7
        %v2646 = vsub.s32 0, %v2645
        %v2647 = vrot.slane %v2608, %v2646
        %v2649 = vadd.f32 %v2641, %v2647
        %v2650 = vadd.f32 %v2642, %v2647
        %2651 = vst.msk [vmem:[%s718] sm:$0xff] %vm738, %v2649
        %2652 = vst.msk [vmem:[%s718 + $0x8] sm:$0x3] %vm742, %v2650
        %v2653 = vld [vmem:[%s20] sm:$0xff]
        %v2654 = vld [vmem:[%s20 + $0x8] sm:$0xff]
        %v2655 = vld [vmem:[%s20 + $0x10] sm:$0xff]
        %v2656 = vld [vmem:[%s20 + $0x18] sm:$0xff]
        %v2657 = vpack.c.bf16 %v2649, %v2649
        %v2658 = vpack.c.bf16 %v2654, %v2653
        %v2659 = vpack.c.bf16 %v2656, %v2655
        %v2660 = vld [vmem:[%s21] sm:$0x1]
        %v2662 = vsel %vm738, %v2657, 0
        %2664 = vmatprep.subr.bf16.mxu0 0
        %2665 = vmatpush1.bf16.msra.mxu0 %v2658
        %2666 = vmatprep.subr.bf16.mxu0 0
        %2667 = vmatpush1.bf16.msra.mxu0 %v2659
        %2668 = vmatprep.subr.bf16.mxu0 0
        %2669 = vmatpush1.bf16.msra.mxu0 0
        %2670 = vmatprep.subr.bf16.mxu0 0
        %2671 = vmatpush1.bf16.msra.mxu0 0
        %2672 = vmatprep.subr.bf16.mxu0 0
        %2673 = vmatpush1.bf16.msra.mxu0 0
        %2674 = vmatprep.subr.bf16.mxu0 0
        %2675 = vmatpush1.bf16.msra.mxu0 0
        %2676 = vmatprep.subr.bf16.mxu0 0
        %2677 = vmatpush1.bf16.msra.mxu0 0
        %2678 = vmatprep.subr.bf16.mxu0 0
        %2679 = vmatpush1.bf16.msra.mxu0 0
        %2680 = vmatprep.subr.bf16.mxu0 0
        %2681 = vmatpush1.bf16.msra.mxu0 0
        %2682 = vmatprep.subr.bf16.mxu0 0
        %2683 = vmatpush1.bf16.msra.mxu0 0
        %2684 = vmatprep.subr.bf16.mxu0 0
        %2685 = vmatpush1.bf16.msra.mxu0 0
        %2686 = vmatprep.subr.bf16.mxu0 0
        %2687 = vmatpush1.bf16.msra.mxu0 0
        %2688 = vmatprep.subr.bf16.mxu0 0
        %2689 = vmatpush1.bf16.msra.mxu0 0
        %2690 = vmatprep.subr.bf16.mxu0 0
        %2691 = vmatpush1.bf16.msra.mxu0 0
        %2692 = vmatprep.subr.bf16.mxu0 0
        %2693 = vmatpush1.bf16.msra.mxu0 0
        %2694 = vmatprep.subr.bf16.mxu0 0
        %2695 = vmatpush1.bf16.msra.mxu0 0
        %2696 = vmatprep.mubr.bf16.mxu0 0
        %2697 = vmatmul.mubr.bf16.gmra.mrb[0].mxu0 %v2662
        %v2698 = vpop.f32.mrb[0].mxu0
        %v2699 = vadd.f32 %v2660, %v2698
        %v2700 = vpop.f32.mrb[0].mxu0
        %v2701 = vpop.f32.mrb[0].mxu0
        %v2702 = vpop.f32.mrb[0].mxu0
        %2703 = vdwg.mxu0
        %v2704 = vtanh.pop %v2699
        %vm2705 = vcmask 253952
        %2706 = vst.msk [vmem:[%s724] sm:$0x1] %vm2705, %v2704
        %s2707 = sand.u32 %s521, 1
        %s2708 = scalar_lea.sflag [#allocation3], %s2707
        %s2709 = sand.u32 %s521, 1
        %s2710 = smul.addr %s2709, 16
        %s2711 = scalar_lea.vmem [#allocation2], %s2710
        %s2712 = sand.u32 %s547, 1
        %s2713 = scalar_lea.sflag [#allocation5], %s2712
        %s2714 = sand.u32 %s547, 1
        %s2715 = scalar_lea.vmem [#allocation4], %s2714
        // Predicated region
        $region109: #{roberta_ent_forward.1} parent=107 // pred_check
          %p2716 = pneg %p531
        $region110: #{roberta_ent_forward.1} parent=107 // pred_check_branch
          %2718 = sbr.rel (%p2716) target = $region112
        $region111: #{roberta_ent_forward.1} parent=107 // pred_region
          %s2720 = ssub.s32 256, 256
          %2721 = vsyncadd %s2708, %s2720
          %s2722 = smul.addr %s41, 2
          %s2723 = smul.addr %s2722, 128
          %s2724 = scalar_lea.hbm %s22, %s2723
          %s2725 = sshll.u32 %s2711, 4
          %s2726 = int_to_ptr.vmem [resolvable:$true] %s2725
          %2731 = dma.vmem_to_hbm [thread:$0]  %s2726, 256, %s2724, %s2708, 128, 128, 8
        $region112: #{roberta_ent_forward.1} parent=107 // pred_fallthru
          _
        // Predicated region
        $region113: #{roberta_ent_forward.1} parent=107 // pred_check
          %p2732 = pneg %p557
        $region114: #{roberta_ent_forward.1} parent=107 // pred_check_branch
          %2734 = sbr.rel (%p2732) target = $region116
        $region115: #{roberta_ent_forward.1} parent=107 // pred_region
          %s2736 = ssub.s32 16, 16
          %2737 = vsyncadd %s2713, %s2736
          %s2738 = smul.addr %s41, 16
          %s2739 = scalar_lea.hbm %s23, %s2738
          %s2741 = sshll.u32 %s2715, 4
          %s2742 = int_to_ptr.vmem [resolvable:$true] %s2741
          %2744 = dma.vmem_to_hbm [thread:$0]  %s2742, 16, %s2739, %s2713
        $region116: #{roberta_ent_forward.1} parent=107 // pred_fallthru
          _
      $region108: #{roberta_ent_forward.1} parent=5 // pred_fallthru
        _
      %p2745 = scmp.le.s32.totalorder 2, %s36
      // Predicated region
      $region117: #{roberta_ent_forward.1} parent=5 // pred_check
        %p2746 = pneg %p2745
      $region118: #{roberta_ent_forward.1} parent=5 // pred_check_branch
        %2748 = sbr.rel (%p2746) target = $region120
      $region119: #{roberta_ent_forward.1} parent=5 // pred_region
        %s2749 = ssub.s32 %s36, 2
        // Predicated region
        $region121: #{roberta_ent_forward.1} parent=119 // pred_check
          %p2750 = pneg %p537
        $region122: #{roberta_ent_forward.1} parent=119 // pred_check_branch
          %2752 = sbr.rel (%p2750) target = $region124
        $region123: #{roberta_ent_forward.1} parent=119 // pred_region
          %s2753 = sand.u32 %s522, 1
          %s2754 = scalar_lea.sflag [#allocation3], %s2753
          %s2755 = sand.u32 %s522, 1
          %s2756 = smul.addr %s2755, 16
          %s2757 = scalar_lea.vmem [#allocation2], %s2756
          %2758 = dma.done %s2754, 256
        $region124: #{roberta_ent_forward.1} parent=119 // pred_fallthru
          _
        // Predicated region
        $region125: #{roberta_ent_forward.1} parent=119 // pred_check
          %p2759 = pneg %p563
        $region126: #{roberta_ent_forward.1} parent=119 // pred_check_branch
          %2761 = sbr.rel (%p2759) target = $region128
        $region127: #{roberta_ent_forward.1} parent=119 // pred_region
          %s2762 = sand.u32 %s548, 1
          %s2763 = scalar_lea.sflag [#allocation5], %s2762
          %s2764 = sand.u32 %s548, 1
          %s2765 = scalar_lea.vmem [#allocation4], %s2764
          %2766 = dma.done %s2763, 16
        $region128: #{roberta_ent_forward.1} parent=119 // pred_fallthru
          _
      $region120: #{roberta_ent_forward.1} parent=5 // pred_fallthru
        _
    $region6: #{roberta_ent_forward.1} parent=1 // loop_footer
      %s40 = sadd.s32 1, %s36
    $region7: #{roberta_ent_forward.1} parent=1 // loop_footer_branch
      %35 = sbr.rel target = $region3
    $region8: #{roberta_ent_forward.1} parent=1 // loop_exit
      _
    %2767 = vsyncpa [#allocation3], 1
    %s2768 = scalar_lea.sflag [#allocation3], 1
    %2769 = vsyncpa %s2768, 1
    %2770 = vsyncpa [#allocation5], 1
    %s2771 = scalar_lea.sflag [#allocation5], 1
    %2772 = vsyncpa %s2771, 1

</llo_original>
